<compile_context>
chip_gen: v5e
topology: v5e:2x2
jax: 0.10.0
libtpu: 0.0.40
codegen_flags: <defaults>
</compile_context>

<pallas_src>
import functools
import math

import jax
import jax.numpy as jnp
from jax.experimental import pallas as pl
from jax.experimental.pallas import tpu as pltpu

NEG_INF = -1e20  # ParlAI neginf() for float32


def _layernorm(x, w, b, eps=1e-5):
    # matches torch.nn.LayerNorm (biased variance, eps inside sqrt)
    mean = jnp.mean(x, axis=-1, keepdims=True)
    var = jnp.mean(jnp.square(x - mean), axis=-1, keepdims=True)
    return (x - mean) * jax.lax.rsqrt(var + eps) * w + b


def decoder_layer_kernel(n_heads,
                         x_ref, enc_ref, enc_m_ref, kg_ref, kg_m_ref,
                         db_ref, db_m_ref,
                         wqkv_ref, bqkv_ref, wo_ref, bo_ref,
                         ln_w_ref, ln_b_ref,
                         ffn_w1_ref, ffn_b1_ref, ffn_w2_ref, ffn_b2_ref,
                         out_ref):
    bblk, S, D = x_ref.shape
    H = n_heads
    dh = D // H
    bf16 = jnp.bfloat16
    f32 = jnp.float32

    Le = enc_ref.shape[1]
    Lk = kg_ref.shape[1]
    Ld = db_ref.shape[1]

    # Flatten the batch block into the matmul M dimension for everything that
    # shares weights (layout-free leading-dim merge: S/L are multiples of 16).
    x = x_ref[...].reshape(bblk * S, D)
    enc = enc_ref[...].reshape(bblk * Le, D)
    kg = kg_ref[...].reshape(bblk * Lk, D)
    db = db_ref[...].reshape(bblk * Ld, D)

    # Additive attention biases, built ONCE per attention (hoisted out of the
    # head loop); `scores + bias` is a plain VPU add afterwards.
    rows = jax.lax.broadcasted_iota(jnp.int32, (S, S), 0)
    cols = jax.lax.broadcasted_iota(jnp.int32, (S, S), 1)
    causal_bias = jnp.where(
        jnp.broadcast_to((rows >= cols)[None], (bblk, S, S)), 0.0, NEG_INF
    ).astype(f32)

    def pad_bias(m_ref, Lkv):
        valid = m_ref[...] != 0.0                         # (bblk, 1, Lkv)
        return jnp.where(jnp.broadcast_to(valid, (bblk, S, Lkv)),
                         0.0, NEG_INF).astype(f32)

    enc_bias = pad_bias(enc_m_ref, Le)
    kg_bias = pad_bias(kg_m_ref, Lk)
    db_bias = pad_bias(db_m_ref, Ld)

    ffn_w1 = ffn_w1_ref[...]          # (D, F)  bf16
    ffn_b1 = ffn_b1_ref[...]          # (1, F)  f32
    ffn_w2 = ffn_w2_ref[...]          # (F, D)  bf16
    ffn_b2 = ffn_b2_ref[...]          # (1, D)  f32

    def mha(q_rows, kv_rows, bias, idx, Lq, Lkv, self_attn):
        """Multi-head attention. q_rows/kv_rows are flat (bblk*L, D) f32."""
        w = wqkv_ref[idx]             # (D, 3D) bf16, columns = [q | k | v], head-major
        b = bqkv_ref[idx]             # (1, 3D) f32, 1/sqrt(dh) folded into q part
        if self_attn:
            # q rows == kv rows -> single fused projection matmul
            qkv = jnp.dot(q_rows.astype(bf16), w, preferred_element_type=f32) + b
            q3 = qkv[:, :D].reshape(bblk, Lq, D)
            kv3 = qkv[:, D:].reshape(bblk, Lkv, 2 * D)
        else:
            q3 = (jnp.dot(q_rows.astype(bf16), w[:, :D],
                          preferred_element_type=f32) + b[:, :D]
                  ).reshape(bblk, Lq, D)
            kv3 = (jnp.dot(kv_rows.astype(bf16), w[:, D:],
                           preferred_element_type=f32) + b[:, D:]
                   ).reshape(bblk, Lkv, 2 * D)

        acc = jnp.zeros((bblk * Lq, D), f32)
        for h in range(H):            # H is tiny; heads statically unrolled
            q_h = q3[:, :, h * dh:(h + 1) * dh].astype(bf16)
            k_h = kv3[:, :, h * dh:(h + 1) * dh].astype(bf16)
            v_h = kv3[:, :, D + h * dh:D + (h + 1) * dh].astype(bf16)
            s = jnp.einsum('bqd,bkd->bqk', q_h, k_h,
                           preferred_element_type=f32)     # (bblk, Lq, Lkv)
            s = s + bias
            m = jnp.max(s, axis=-1, keepdims=True)
            e = jnp.exp(s - m)
            denom = jnp.sum(e, axis=-1, keepdims=True)
            ctx = jnp.einsum('bqk,bkd->bqd', e.astype(bf16), v_h,
                             preferred_element_type=f32)   # (bblk, Lq, dh)
            ctx = ctx * pl.reciprocal(denom, approx=True)   # deferred softmax norm
            # head output through its row-slab of the output projection (big-M matmul)
            acc = acc + jnp.dot(ctx.reshape(bblk * Lq, dh).astype(bf16),
                                wo_ref[idx, h], preferred_element_type=f32)
        return acc + bo_ref[idx]

    # 1) masked self-attention + norm1
    h_sa = mha(x, x, causal_bias, 0, S, S, True)
    x = _layernorm(x + h_sa, ln_w_ref[0], ln_b_ref[0])

    # 2) db encoder attention + norm2_db
    h_db = mha(x, db, db_bias, 1, S, Ld, False)
    x = _layernorm(x + h_db, ln_w_ref[1], ln_b_ref[1])

    # 3) kg encoder attention + norm2_kg
    h_kg = mha(x, kg, kg_bias, 2, S, Lk, False)
    x = _layernorm(x + h_kg, ln_w_ref[2], ln_b_ref[2])

    # 4) context encoder attention + norm2
    h_enc = mha(x, enc, enc_bias, 3, S, Le, False)
    x = _layernorm(x + h_enc, ln_w_ref[3], ln_b_ref[3])

    # 5) FFN (relu) + norm3
    hmid = jnp.dot(x.astype(bf16), ffn_w1, preferred_element_type=f32) + ffn_b1
    hmid = jnp.maximum(hmid, 0.0)
    y = jnp.dot(hmid.astype(bf16), ffn_w2, preferred_element_type=f32) + ffn_b2
    x = _layernorm(x + y, ln_w_ref[4], ln_b_ref[4])

    out_ref[...] = x.reshape(bblk, S, D)


def _round_up(n, m):
    return ((n + m - 1) // m) * m


def _pad_rows(a, target_len):
    pad = target_len - a.shape[1]
    if pad == 0:
        return a
    return jnp.pad(a, ((0, 0), (0, pad), (0, 0)))


def _pad_mask(m, target_len):
    pad = target_len - m.shape[1]
    if pad:
        m = jnp.pad(m, ((0, 0), (0, pad)))
    return m


def _pick_batch_block(B, bytes_per_example, act_budget_bytes=8 * 1024 * 1024):
    """Largest divisor of B such that (a) >=2 grid steps whenever B>=2 (>=4 when
    B>=4) so pipelining / megacore sharding are active, and (b) double-buffered
    activations stay within a VMEM budget (v7x has only 64 MiB total)."""
    max_bb_vmem = max(1, act_budget_bytes // (2 * bytes_per_example))
    target_nb = 4 if B >= 4 else (2 if B >= 2 else 1)
    divisors = [d for d in range(1, B + 1) if B % d == 0]
    ok = [d for d in divisors if d <= max_bb_vmem and B // d >= target_nb]
    if not ok:
        ok = [d for d in divisors if d <= max_bb_vmem] or [1]
    return max(ok)


def transformer_decoder_layer_kg(packed, n_heads, x, encoder_output, encoder_mask,
                                 kg_encoder_output, kg_encoder_mask,
                                 db_encoder_output, db_encoder_mask,
                                 batch_block=None):
    B, S, D = x.shape
    Le = encoder_output.shape[1]
    Lk = kg_encoder_output.shape[1]
    Ld = db_encoder_output.shape[1]

    # Pad every sequence axis to a multiple of 16 (bf16 min tile is (16,128)):
    # padded key columns are masked, padded query rows sliced off the output.
    S_p, Le_p, Lk_p, Ld_p = (_round_up(l, 16) for l in (S, Le, Lk, Ld))

    x_p = _pad_rows(x.astype(jnp.float32), S_p)
    enc_p = _pad_rows(encoder_output.astype(jnp.float32), Le_p)
    kg_p = _pad_rows(kg_encoder_output.astype(jnp.float32), Lk_p)
    db_p = _pad_rows(db_encoder_output.astype(jnp.float32), Ld_p)

    enc_m = _pad_mask(encoder_mask.astype(jnp.float32), Le_p).reshape(B, 1, Le_p)
    kg_m = _pad_mask(kg_encoder_mask.astype(jnp.float32), Lk_p).reshape(B, 1, Lk_p)
    db_m = _pad_mask(db_encoder_mask.astype(jnp.float32), Ld_p).reshape(B, 1, Ld_p)

    bytes_per_example = (2 * S_p + Le_p + Lk_p + Ld_p) * D * 4  # f32 in + out rows
    if batch_block is None:
        batch_block = _pick_batch_block(B, bytes_per_example)
    assert B % batch_block == 0, "batch_block must divide batch size"
    nb = B // batch_block

    weight_bytes = sum(int(v.size) * v.dtype.itemsize for v in packed.values())
    vmem_est = 2 * batch_block * bytes_per_example + 2 * weight_bytes
    vmem_limit = int(min(48 * 1024 * 1024, max(32 * 1024 * 1024, 2 * vmem_est)))

    def full_spec(arr):
        nd = arr.ndim
        return pl.BlockSpec(arr.shape, lambda g, _nd=nd: (0,) * _nd)

    def batched_spec(shape):
        nd = len(shape)
        return pl.BlockSpec(shape, lambda g, _nd=nd: (g,) + (0,) * (_nd - 1))

    kernel = functools.partial(decoder_layer_kernel, n_heads)

    out = pl.pallas_call(
        kernel,
        out_shape=jax.ShapeDtypeStruct((B, S_p, D), jnp.float32),
        grid=(nb,),
        in_specs=[
            batched_spec((batch_block, S_p, D)),      # x
            batched_spec((batch_block, Le_p, D)),     # encoder_output
            batched_spec((batch_block, 1, Le_p)),     # encoder_mask
            batched_spec((batch_block, Lk_p, D)),     # kg_encoder_output
            batched_spec((batch_block, 1, Lk_p)),     # kg_encoder_mask
            batched_spec((batch_block, Ld_p, D)),     # db_encoder_output
            batched_spec((batch_block, 1, Ld_p)),     # db_encoder_mask
            full_spec(packed["wqkv"]), full_spec(packed["bqkv"]),
            full_spec(packed["wo"]), full_spec(packed["bo"]),
            full_spec(packed["ln_w"]), full_spec(packed["ln_b"]),
            full_spec(packed["ffn_w1"]), full_spec(packed["ffn_b1"]),
            full_spec(packed["ffn_w2"]), full_spec(packed["ffn_b2"]),
        ],
        out_specs=batched_spec((batch_block, S_p, D)),
        compiler_params=pltpu.CompilerParams(
            # batch blocks are independent -> shard across v7x's two TensorCores;
            # nb >= 2 also lets double-buffering hide activation DMAs on v5e/v6e.
            dimension_semantics=("parallel",),
            vmem_limit_bytes=vmem_limit),
    )(x_p, enc_p, enc_m, kg_p, kg_m, db_p, db_m,
      packed["wqkv"], packed["bqkv"], packed["wo"], packed["bo"],
      packed["ln_w"], packed["ln_b"],
      packed["ffn_w1"], packed["ffn_b1"], packed["ffn_w2"], packed["ffn_b2"])

    return out[:, :S, :]


def init_params(key, dim, ffn_dim):
    ks = jax.random.split(key, 6)
    std = 0.02
    # attention order along axis 0: [self, db, kg, context]; axis 1: [q, k, v, out]
    attn_w = jax.random.normal(ks[0], (4, 4, dim, dim), jnp.float32) * std
    attn_b = jax.random.normal(ks[1], (4, 4, dim), jnp.float32) * std
    # layer norms along axis 0: [norm1, norm2_db, norm2_kg, norm2, norm3]
    ln_w = jnp.ones((5, 1, dim), jnp.float32)
    ln_b = jnp.zeros((5, 1, dim), jnp.float32)
    ffn_w1 = jax.random.normal(ks[2], (dim, ffn_dim), jnp.float32) * std
    ffn_b1 = jax.random.normal(ks[3], (1, ffn_dim), jnp.float32) * std
    ffn_w2 = jax.random.normal(ks[4], (ffn_dim, dim), jnp.float32) * std
    ffn_b2 = jax.random.normal(ks[5], (1, dim), jnp.float32) * std
    return dict(attn_w=attn_w, attn_b=attn_b, ln_w=ln_w, ln_b=ln_b,
                ffn_w1=ffn_w1, ffn_b1=ffn_b1, ffn_w2=ffn_w2, ffn_b2=ffn_b2)


def pack_params(raw, n_heads):
    """Fuse q|k|v weights into one lane-dense (D, 3D) slab per attention, fold the
    1/sqrt(dh) query scale into the q columns/bias, keep the output projection as
    per-head (dh, D) row slabs, and cast matmul weights to bf16 (MXU operands)."""
    attn_w = raw["attn_w"]            # (4, 4, D, D), (in, out) layout
    attn_b = raw["attn_b"]            # (4, 4, D)
    A = attn_w.shape[0]
    D = attn_w.shape[-1]
    H = n_heads
    dh = D // H
    scale = 1.0 / math.sqrt(dh)

    # columns within each section are head-major: head h = cols [h*dh, (h+1)*dh)
    wqkv = jnp.concatenate([attn_w[:, 0] * scale, attn_w[:, 1], attn_w[:, 2]],
                           axis=-1)                              # (A, D, 3D)
    bqkv = jnp.concatenate([attn_b[:, 0] * scale, attn_b[:, 1], attn_b[:, 2]],
                           axis=-1).reshape(A, 1, 3 * D)          # (A, 1, 3D)
    wo = attn_w[:, 3].reshape(A, H, dh, D)                        # head h = rows [h*dh,(h+1)*dh)
    bo = attn_b[:, 3].reshape(A, 1, D)

    bf16 = jnp.bfloat16
    return dict(wqkv=wqkv.astype(bf16), bqkv=bqkv,
                wo=wo.astype(bf16), bo=bo,
                ln_w=raw["ln_w"], ln_b=raw["ln_b"],
                ffn_w1=raw["ffn_w1"].astype(bf16), ffn_b1=raw["ffn_b1"],
                ffn_w2=raw["ffn_w2"].astype(bf16), ffn_b2=raw["ffn_b2"])


if __name__ == "__main__":
    key = jax.random.PRNGKey(0)
    k_param, k_x, k_enc, k_kg, k_db = jax.random.split(key, 5)

    n_heads = 2
    emb = 32          # embedding_size
    ffn = 64          # ffn_size
    B, S = 2, 8       # batch, decoder sequence length
    Le, Lk, Ld = 16, 8, 8   # context / kg / db encoder lengths

    raw_params = init_params(k_param, emb, ffn)
    packed_params = pack_params(raw_params, n_heads)

    x = jax.random.normal(k_x, (B, S, emb), jnp.float32)
    encoder_output = jax.random.normal(k_enc, (B, Le, emb), jnp.float32)
    kg_encoder_output = jax.random.normal(k_kg, (B, Lk, emb), jnp.float32)
    db_encoder_output = jax.random.normal(k_db, (B, Ld, emb), jnp.float32)

    # padding masks: 1 = valid token, 0 = pad (per-example lengths)
    encoder_mask = (jnp.arange(Le)[None, :] < jnp.array([12, 16])[:, None]).astype(jnp.float32)
    kg_encoder_mask = (jnp.arange(Lk)[None, :] < jnp.array([5, 8])[:, None]).astype(jnp.float32)
    db_encoder_mask = (jnp.arange(Ld)[None, :] < jnp.array([8, 3])[:, None]).astype(jnp.float32)

    out = transformer_decoder_layer_kg(
        packed_params, n_heads, x, encoder_output, encoder_mask,
        kg_encoder_output, kg_encoder_mask, db_encoder_output, db_encoder_mask)
    jax.block_until_ready(out)
    assert out.shape == (B, S, emb)
    assert bool(jnp.all(jnp.isfinite(out)))
    print("KERNEL_OK")
</pallas_src>

<mosaic_0001>
module attributes {stable_mosaic.version = 11 : i64} {
  func.func @decoder_layer_kernel(%arg0: i32, %arg1: memref<1x16x32xf32, #tpu.memory_space<vmem>>, %arg2: memref<1x16x32xf32, #tpu.memory_space<vmem>>, %arg3: memref<1x1x16xf32, #tpu.memory_space<vmem>>, %arg4: memref<1x16x32xf32, #tpu.memory_space<vmem>>, %arg5: memref<1x1x16xf32, #tpu.memory_space<vmem>>, %arg6: memref<1x16x32xf32, #tpu.memory_space<vmem>>, %arg7: memref<1x1x16xf32, #tpu.memory_space<vmem>>, %arg8: memref<4x32x96xbf16, #tpu.memory_space<vmem>>, %arg9: memref<4x1x96xf32, #tpu.memory_space<vmem>>, %arg10: memref<4x2x16x32xbf16, #tpu.memory_space<vmem>>, %arg11: memref<4x1x32xf32, #tpu.memory_space<vmem>>, %arg12: memref<5x1x32xf32, #tpu.memory_space<vmem>>, %arg13: memref<5x1x32xf32, #tpu.memory_space<vmem>>, %arg14: memref<32x64xbf16, #tpu.memory_space<vmem>>, %arg15: memref<1x64xf32, #tpu.memory_space<vmem>>, %arg16: memref<64x32xbf16, #tpu.memory_space<vmem>>, %arg17: memref<1x32xf32, #tpu.memory_space<vmem>>, %arg18: memref<1x16x32xf32, #tpu.memory_space<vmem>>) attributes {dimension_semantics = [#tpu.dimension_semantics<parallel>], iteration_bounds = array<i64: 2>, scalar_prefetch = 0 : i64, scratch_operands = 0 : i64, tpu.core_type = #tpu.core_type<tc>, window_params = [{transform_indices = @transform_0, window_bounds = array<i64: 1, 16, 32>}, {transform_indices = @transform_1, window_bounds = array<i64: 1, 16, 32>}, {transform_indices = @transform_2, window_bounds = array<i64: 1, 1, 16>}, {transform_indices = @transform_3, window_bounds = array<i64: 1, 16, 32>}, {transform_indices = @transform_4, window_bounds = array<i64: 1, 1, 16>}, {transform_indices = @transform_5, window_bounds = array<i64: 1, 16, 32>}, {transform_indices = @transform_6, window_bounds = array<i64: 1, 1, 16>}, {pipeline_mode = #tpu.pipeline_mode<synchronous>, transform_indices = @transform_7, window_bounds = array<i64: 4, 32, 96>}, {pipeline_mode = #tpu.pipeline_mode<synchronous>, transform_indices = @transform_8, window_bounds = array<i64: 4, 1, 96>}, {pipeline_mode = #tpu.pipeline_mode<synchronous>, transform_indices = @transform_9, window_bounds = array<i64: 4, 2, 16, 32>}, {pipeline_mode = #tpu.pipeline_mode<synchronous>, transform_indices = @transform_10, window_bounds = array<i64: 4, 1, 32>}, {pipeline_mode = #tpu.pipeline_mode<synchronous>, transform_indices = @transform_11, window_bounds = array<i64: 5, 1, 32>}, {pipeline_mode = #tpu.pipeline_mode<synchronous>, transform_indices = @transform_12, window_bounds = array<i64: 5, 1, 32>}, {pipeline_mode = #tpu.pipeline_mode<synchronous>, transform_indices = @transform_13, window_bounds = array<i64: 32, 64>}, {pipeline_mode = #tpu.pipeline_mode<synchronous>, transform_indices = @transform_14, window_bounds = array<i64: 1, 64>}, {pipeline_mode = #tpu.pipeline_mode<synchronous>, transform_indices = @transform_15, window_bounds = array<i64: 64, 32>}, {pipeline_mode = #tpu.pipeline_mode<synchronous>, transform_indices = @transform_16, window_bounds = array<i64: 1, 32>}, {transform_indices = @transform_17, window_bounds = array<i64: 1, 16, 32>}]} {
    %c0 = arith.constant 0 : index
    %c0_0 = arith.constant 0 : index
    %c0_1 = arith.constant 0 : index
    %0 = vector.load %arg1[%c0, %c0_0, %c0_1] : memref<1x16x32xf32, #tpu.memory_space<vmem>>, vector<1x16x32xf32>
    %1 = vector.shape_cast %0 : vector<1x16x32xf32> to vector<16x32xf32>
    %c0_2 = arith.constant 0 : index
    %c0_3 = arith.constant 0 : index
    %c0_4 = arith.constant 0 : index
    %2 = vector.load %arg2[%c0_2, %c0_3, %c0_4] : memref<1x16x32xf32, #tpu.memory_space<vmem>>, vector<1x16x32xf32>
    %3 = vector.shape_cast %2 : vector<1x16x32xf32> to vector<16x32xf32>
    %c0_5 = arith.constant 0 : index
    %c0_6 = arith.constant 0 : index
    %c0_7 = arith.constant 0 : index
    %4 = vector.load %arg4[%c0_5, %c0_6, %c0_7] : memref<1x16x32xf32, #tpu.memory_space<vmem>>, vector<1x16x32xf32>
    %5 = vector.shape_cast %4 : vector<1x16x32xf32> to vector<16x32xf32>
    %c0_8 = arith.constant 0 : index
    %c0_9 = arith.constant 0 : index
    %c0_10 = arith.constant 0 : index
    %6 = vector.load %arg6[%c0_8, %c0_9, %c0_10] : memref<1x16x32xf32, #tpu.memory_space<vmem>>, vector<1x16x32xf32>
    %7 = vector.shape_cast %6 : vector<1x16x32xf32> to vector<16x32xf32>
    %8 = tpu.iota {dimensions = array<i32: 0>} : vector<16x16xi32>
    %9 = tpu.iota {dimensions = array<i32: 1>} : vector<16x16xi32>
    %10 = arith.cmpi sge, %8, %9 : vector<16x16xi32>
    %11 = vector.shape_cast %10 : vector<16x16xi1> to vector<1x16x16xi1>
    %cst = arith.constant 0.000000e+00 : f32
    %cst_11 = arith.constant -1.000000e+20 : f32
    %12 = vector.broadcast %cst : f32 to vector<1x16x16xf32>
    %13 = vector.broadcast %cst_11 : f32 to vector<1x16x16xf32>
    %14 = arith.select %11, %12, %13 : vector<1x16x16xi1>, vector<1x16x16xf32>
    %c0_12 = arith.constant 0 : index
    %c0_13 = arith.constant 0 : index
    %c0_14 = arith.constant 0 : index
    %15 = vector.load %arg3[%c0_12, %c0_13, %c0_14] : memref<1x1x16xf32, #tpu.memory_space<vmem>>, vector<1x1x16xf32>
    %cst_15 = arith.constant 0.000000e+00 : f32
    %16 = vector.broadcast %cst_15 : f32 to vector<1x1x16xf32>
    %17 = arith.cmpf one, %15, %16 : vector<1x1x16xf32>
    %18 = vector.shape_cast %17 : vector<1x1x16xi1> to vector<1x1x16xi1>
    %19 = vector.broadcast %18 : vector<1x1x16xi1> to vector<1x16x16xi1>
    %cst_16 = arith.constant 0.000000e+00 : f32
    %cst_17 = arith.constant -1.000000e+20 : f32
    %20 = vector.broadcast %cst_16 : f32 to vector<1x16x16xf32>
    %21 = vector.broadcast %cst_17 : f32 to vector<1x16x16xf32>
    %22 = arith.select %19, %20, %21 : vector<1x16x16xi1>, vector<1x16x16xf32>
    %c0_18 = arith.constant 0 : index
    %c0_19 = arith.constant 0 : index
    %c0_20 = arith.constant 0 : index
    %23 = vector.load %arg5[%c0_18, %c0_19, %c0_20] : memref<1x1x16xf32, #tpu.memory_space<vmem>>, vector<1x1x16xf32>
    %cst_21 = arith.constant 0.000000e+00 : f32
    %24 = vector.broadcast %cst_21 : f32 to vector<1x1x16xf32>
    %25 = arith.cmpf one, %23, %24 : vector<1x1x16xf32>
    %26 = vector.shape_cast %25 : vector<1x1x16xi1> to vector<1x1x16xi1>
    %27 = vector.broadcast %26 : vector<1x1x16xi1> to vector<1x16x16xi1>
    %cst_22 = arith.constant 0.000000e+00 : f32
    %cst_23 = arith.constant -1.000000e+20 : f32
    %28 = vector.broadcast %cst_22 : f32 to vector<1x16x16xf32>
    %29 = vector.broadcast %cst_23 : f32 to vector<1x16x16xf32>
    %30 = arith.select %27, %28, %29 : vector<1x16x16xi1>, vector<1x16x16xf32>
    %c0_24 = arith.constant 0 : index
    %c0_25 = arith.constant 0 : index
    %c0_26 = arith.constant 0 : index
    %31 = vector.load %arg7[%c0_24, %c0_25, %c0_26] : memref<1x1x16xf32, #tpu.memory_space<vmem>>, vector<1x1x16xf32>
    %cst_27 = arith.constant 0.000000e+00 : f32
    %32 = vector.broadcast %cst_27 : f32 to vector<1x1x16xf32>
    %33 = arith.cmpf one, %31, %32 : vector<1x1x16xf32>
    %34 = vector.shape_cast %33 : vector<1x1x16xi1> to vector<1x1x16xi1>
    %35 = vector.broadcast %34 : vector<1x1x16xi1> to vector<1x16x16xi1>
    %cst_28 = arith.constant 0.000000e+00 : f32
    %cst_29 = arith.constant -1.000000e+20 : f32
    %36 = vector.broadcast %cst_28 : f32 to vector<1x16x16xf32>
    %37 = vector.broadcast %cst_29 : f32 to vector<1x16x16xf32>
    %38 = arith.select %35, %36, %37 : vector<1x16x16xi1>, vector<1x16x16xf32>
    %c0_30 = arith.constant 0 : index
    %c0_31 = arith.constant 0 : index
    %39 = vector.load %arg14[%c0_30, %c0_31] : memref<32x64xbf16, #tpu.memory_space<vmem>>, vector<32x64xbf16>
    %c0_32 = arith.constant 0 : index
    %c0_33 = arith.constant 0 : index
    %40 = vector.load %arg15[%c0_32, %c0_33] : memref<1x64xf32, #tpu.memory_space<vmem>>, vector<1x64xf32>
    %c0_34 = arith.constant 0 : index
    %c0_35 = arith.constant 0 : index
    %41 = vector.load %arg16[%c0_34, %c0_35] : memref<64x32xbf16, #tpu.memory_space<vmem>>, vector<64x32xbf16>
    %c0_36 = arith.constant 0 : index
    %c0_37 = arith.constant 0 : index
    %42 = vector.load %arg17[%c0_36, %c0_37] : memref<1x32xf32, #tpu.memory_space<vmem>>, vector<1x32xf32>
    %c0_38 = arith.constant 0 : index
    %c0_39 = arith.constant 0 : index
    %c0_40 = arith.constant 0 : index
    %43 = vector.load %arg8[%c0_38, %c0_39, %c0_40] : memref<4x32x96xbf16, #tpu.memory_space<vmem>>, vector<1x32x96xbf16>
    %44 = vector.shape_cast %43 : vector<1x32x96xbf16> to vector<32x96xbf16>
    %c0_41 = arith.constant 0 : index
    %c0_42 = arith.constant 0 : index
    %c0_43 = arith.constant 0 : index
    %45 = vector.load %arg9[%c0_41, %c0_42, %c0_43] : memref<4x1x96xf32, #tpu.memory_space<vmem>>, vector<1x1x96xf32>
    %46 = vector.shape_cast %45 : vector<1x1x96xf32> to vector<1x96xf32>
    %47 = arith.truncf %1 : vector<16x32xf32> to vector<16x32xbf16>
    %cst_44 = arith.constant dense<0.000000e+00> : vector<16x96xf32>
    %48 = tpu.matmul %47, %44, %cst_44 {dimension_numbers = #tpu.dot_dimension_numbers<[1], [0], [0], [1], [0, 0, 1, 1], [], []>} : vector<16x32xbf16>, vector<32x96xbf16>, vector<16x96xf32> -> vector<16x96xf32>
    %49 = vector.broadcast %46 : vector<1x96xf32> to vector<16x96xf32>
    %50 = arith.addf %48, %49 : vector<16x96xf32>
    %51 = vector.extract_strided_slice %50 {offsets = [0, 0], sizes = [16, 32], strides = [1, 1]} : vector<16x96xf32> to vector<16x32xf32>
    %52 = vector.shape_cast %51 : vector<16x32xf32> to vector<1x16x32xf32>
    %53 = vector.extract_strided_slice %50 {offsets = [0, 32], sizes = [16, 64], strides = [1, 1]} : vector<16x96xf32> to vector<16x64xf32>
    %54 = vector.shape_cast %53 : vector<16x64xf32> to vector<1x16x64xf32>
    %cst_45 = arith.constant 0.000000e+00 : f32
    %55 = vector.broadcast %cst_45 : f32 to vector<16x32xf32>
    %56 = vector.extract_strided_slice %52 {offsets = [0, 0, 0], sizes = [1, 16, 16], strides = [1, 1, 1]} : vector<1x16x32xf32> to vector<1x16x16xf32>
    %57 = arith.truncf %56 : vector<1x16x16xf32> to vector<1x16x16xbf16>
    %58 = vector.extract_strided_slice %54 {offsets = [0, 0, 0], sizes = [1, 16, 16], strides = [1, 1, 1]} : vector<1x16x64xf32> to vector<1x16x16xf32>
    %59 = arith.truncf %58 : vector<1x16x16xf32> to vector<1x16x16xbf16>
    %60 = vector.extract_strided_slice %54 {offsets = [0, 0, 32], sizes = [1, 16, 16], strides = [1, 1, 1]} : vector<1x16x64xf32> to vector<1x16x16xf32>
    %61 = arith.truncf %60 : vector<1x16x16xf32> to vector<1x16x16xbf16>
    "tpu.trace_start"() <{level = 10 : i32, message = "bqd,bkd->bqk"}> : () -> ()
    %cst_46 = arith.constant dense<0.000000e+00> : vector<1x16x16xf32>
    %62 = tpu.matmul %57, %59, %cst_46 {dimension_numbers = #tpu.dot_dimension_numbers<[2], [2], [1], [1], [0, 0, 0, 1, 1, 1], [0], [0]>} : vector<1x16x16xbf16>, vector<1x16x16xbf16>, vector<1x16x16xf32> -> vector<1x16x16xf32>
    "tpu.trace_stop"() : () -> ()
    %63 = arith.addf %62, %14 : vector<1x16x16xf32>
    %cst_47 = arith.constant dense<0xFF800000> : vector<1x16xf32>
    %64 = vector.multi_reduction <maximumf>, %63, %cst_47 [2] : vector<1x16x16xf32> to vector<1x16xf32>
    %65 = vector.shape_cast %64 : vector<1x16xf32> to vector<1x16x1xf32>
    %66 = vector.broadcast %65 : vector<1x16x1xf32> to vector<1x16x16xf32>
    %67 = arith.subf %63, %66 : vector<1x16x16xf32>
    %68 = math.exp %67 : vector<1x16x16xf32>
    %cst_48 = arith.constant dense<0.000000e+00> : vector<1x16xf32>
    %69 = vector.multi_reduction <add>, %68, %cst_48 [2] : vector<1x16x16xf32> to vector<1x16xf32>
    %70 = vector.shape_cast %69 : vector<1x16xf32> to vector<1x16x1xf32>
    %71 = arith.truncf %68 : vector<1x16x16xf32> to vector<1x16x16xbf16>
    "tpu.trace_start"() <{level = 10 : i32, message = "bqk,bkd->bqd"}> : () -> ()
    %cst_49 = arith.constant dense<0.000000e+00> : vector<1x16x16xf32>
    %72 = tpu.matmul %71, %61, %cst_49 {dimension_numbers = #tpu.dot_dimension_numbers<[2], [1], [1], [2], [0, 0, 0, 1, 1, 2], [0], [0]>} : vector<1x16x16xbf16>, vector<1x16x16xbf16>, vector<1x16x16xf32> -> vector<1x16x16xf32>
    "tpu.trace_stop"() : () -> ()
    %73 = tpu.reciprocal %70 {approx = true} : vector<1x16x1xf32> -> vector<1x16x1xf32>
    %74 = vector.broadcast %73 : vector<1x16x1xf32> to vector<1x16x16xf32>
    %75 = arith.mulf %72, %74 : vector<1x16x16xf32>
    %76 = vector.shape_cast %75 : vector<1x16x16xf32> to vector<16x16xf32>
    %77 = arith.truncf %76 : vector<16x16xf32> to vector<16x16xbf16>
    %c0_50 = arith.constant 0 : index
    %c0_51 = arith.constant 0 : index
    %c0_52 = arith.constant 0 : index
    %c0_53 = arith.constant 0 : index
    %78 = vector.load %arg10[%c0_50, %c0_51, %c0_52, %c0_53] : memref<4x2x16x32xbf16, #tpu.memory_space<vmem>>, vector<1x1x16x32xbf16>
    %79 = vector.shape_cast %78 : vector<1x1x16x32xbf16> to vector<16x32xbf16>
    %cst_54 = arith.constant dense<0.000000e+00> : vector<16x32xf32>
    %80 = tpu.matmul %77, %79, %cst_54 {dimension_numbers = #tpu.dot_dimension_numbers<[1], [0], [0], [1], [0, 0, 1, 1], [], []>} : vector<16x16xbf16>, vector<16x32xbf16>, vector<16x32xf32> -> vector<16x32xf32>
    %81 = arith.addf %55, %80 : vector<16x32xf32>
    %82 = vector.extract_strided_slice %52 {offsets = [0, 0, 16], sizes = [1, 16, 16], strides = [1, 1, 1]} : vector<1x16x32xf32> to vector<1x16x16xf32>
    %83 = arith.truncf %82 : vector<1x16x16xf32> to vector<1x16x16xbf16>
    %84 = vector.extract_strided_slice %54 {offsets = [0, 0, 16], sizes = [1, 16, 16], strides = [1, 1, 1]} : vector<1x16x64xf32> to vector<1x16x16xf32>
    %85 = arith.truncf %84 : vector<1x16x16xf32> to vector<1x16x16xbf16>
    %86 = vector.extract_strided_slice %54 {offsets = [0, 0, 48], sizes = [1, 16, 16], strides = [1, 1, 1]} : vector<1x16x64xf32> to vector<1x16x16xf32>
    %87 = arith.truncf %86 : vector<1x16x16xf32> to vector<1x16x16xbf16>
    "tpu.trace_start"() <{level = 10 : i32, message = "bqd,bkd->bqk"}> : () -> ()
    %cst_55 = arith.constant dense<0.000000e+00> : vector<1x16x16xf32>
    %88 = tpu.matmul %83, %85, %cst_55 {dimension_numbers = #tpu.dot_dimension_numbers<[2], [2], [1], [1], [0, 0, 0, 1, 1, 1], [0], [0]>} : vector<1x16x16xbf16>, vector<1x16x16xbf16>, vector<1x16x16xf32> -> vector<1x16x16xf32>
    "tpu.trace_stop"() : () -> ()
    %89 = arith.addf %88, %14 : vector<1x16x16xf32>
    %cst_56 = arith.constant dense<0xFF800000> : vector<1x16xf32>
    %90 = vector.multi_reduction <maximumf>, %89, %cst_56 [2] : vector<1x16x16xf32> to vector<1x16xf32>
    %91 = vector.shape_cast %90 : vector<1x16xf32> to vector<1x16x1xf32>
    %92 = vector.broadcast %91 : vector<1x16x1xf32> to vector<1x16x16xf32>
    %93 = arith.subf %89, %92 : vector<1x16x16xf32>
    %94 = math.exp %93 : vector<1x16x16xf32>
    %cst_57 = arith.constant dense<0.000000e+00> : vector<1x16xf32>
    %95 = vector.multi_reduction <add>, %94, %cst_57 [2] : vector<1x16x16xf32> to vector<1x16xf32>
    %96 = vector.shape_cast %95 : vector<1x16xf32> to vector<1x16x1xf32>
    %97 = arith.truncf %94 : vector<1x16x16xf32> to vector<1x16x16xbf16>
    "tpu.trace_start"() <{level = 10 : i32, message = "bqk,bkd->bqd"}> : () -> ()
    %cst_58 = arith.constant dense<0.000000e+00> : vector<1x16x16xf32>
    %98 = tpu.matmul %97, %87, %cst_58 {dimension_numbers = #tpu.dot_dimension_numbers<[2], [1], [1], [2], [0, 0, 0, 1, 1, 2], [0], [0]>} : vector<1x16x16xbf16>, vector<1x16x16xbf16>, vector<1x16x16xf32> -> vector<1x16x16xf32>
    "tpu.trace_stop"() : () -> ()
    %99 = tpu.reciprocal %96 {approx = true} : vector<1x16x1xf32> -> vector<1x16x1xf32>
    %100 = vector.broadcast %99 : vector<1x16x1xf32> to vector<1x16x16xf32>
    %101 = arith.mulf %98, %100 : vector<1x16x16xf32>
    %102 = vector.shape_cast %101 : vector<1x16x16xf32> to vector<16x16xf32>
    %103 = arith.truncf %102 : vector<16x16xf32> to vector<16x16xbf16>
    %c0_59 = arith.constant 0 : index
    %c1 = arith.constant 1 : index
    %c0_60 = arith.constant 0 : index
    %c0_61 = arith.constant 0 : index
    %104 = vector.load %arg10[%c0_59, %c1, %c0_60, %c0_61] : memref<4x2x16x32xbf16, #tpu.memory_space<vmem>>, vector<1x1x16x32xbf16>
    %105 = vector.shape_cast %104 : vector<1x1x16x32xbf16> to vector<16x32xbf16>
    %cst_62 = arith.constant dense<0.000000e+00> : vector<16x32xf32>
    %106 = tpu.matmul %103, %105, %cst_62 {dimension_numbers = #tpu.dot_dimension_numbers<[1], [0], [0], [1], [0, 0, 1, 1], [], []>} : vector<16x16xbf16>, vector<16x32xbf16>, vector<16x32xf32> -> vector<16x32xf32>
    %107 = arith.addf %81, %106 : vector<16x32xf32>
    %c0_63 = arith.constant 0 : index
    %c0_64 = arith.constant 0 : index
    %c0_65 = arith.constant 0 : index
    %108 = vector.load %arg11[%c0_63, %c0_64, %c0_65] : memref<4x1x32xf32, #tpu.memory_space<vmem>>, vector<1x1x32xf32>
    %109 = vector.shape_cast %108 : vector<1x1x32xf32> to vector<1x32xf32>
    %110 = vector.broadcast %109 : vector<1x32xf32> to vector<16x32xf32>
    %111 = arith.addf %107, %110 : vector<16x32xf32>
    %112 = arith.addf %1, %111 : vector<16x32xf32>
    %c0_66 = arith.constant 0 : index
    %c0_67 = arith.constant 0 : index
    %c0_68 = arith.constant 0 : index
    %113 = vector.load %arg12[%c0_66, %c0_67, %c0_68] : memref<5x1x32xf32, #tpu.memory_space<vmem>>, vector<1x1x32xf32>
    %114 = vector.shape_cast %113 : vector<1x1x32xf32> to vector<1x32xf32>
    %c0_69 = arith.constant 0 : index
    %c0_70 = arith.constant 0 : index
    %c0_71 = arith.constant 0 : index
    %115 = vector.load %arg13[%c0_69, %c0_70, %c0_71] : memref<5x1x32xf32, #tpu.memory_space<vmem>>, vector<1x1x32xf32>
    %116 = vector.shape_cast %115 : vector<1x1x32xf32> to vector<1x32xf32>
    %cst_72 = arith.constant dense<0.000000e+00> : vector<16xf32>
    %117 = vector.multi_reduction <add>, %112, %cst_72 [1] : vector<16x32xf32> to vector<16xf32>
    %118 = vector.shape_cast %117 : vector<16xf32> to vector<16x1xf32>
    %cst_73 = arith.constant 3.200000e+01 : f32
    %119 = vector.broadcast %cst_73 : f32 to vector<16x1xf32>
    %120 = arith.divf %118, %119 : vector<16x1xf32>
    %121 = vector.broadcast %120 : vector<16x1xf32> to vector<16x32xf32>
    %122 = arith.subf %112, %121 : vector<16x32xf32>
    %123 = arith.mulf %122, %122 : vector<16x32xf32>
    %cst_74 = arith.constant dense<0.000000e+00> : vector<16xf32>
    %124 = vector.multi_reduction <add>, %123, %cst_74 [1] : vector<16x32xf32> to vector<16xf32>
    %125 = vector.shape_cast %124 : vector<16xf32> to vector<16x1xf32>
    %cst_75 = arith.constant 3.200000e+01 : f32
    %126 = vector.broadcast %cst_75 : f32 to vector<16x1xf32>
    %127 = arith.divf %125, %126 : vector<16x1xf32>
    %128 = vector.broadcast %120 : vector<16x1xf32> to vector<16x32xf32>
    %129 = arith.subf %112, %128 : vector<16x32xf32>
    %cst_76 = arith.constant 9.99999974E-6 : f32
    %130 = vector.broadcast %cst_76 : f32 to vector<16x1xf32>
    %131 = arith.addf %127, %130 : vector<16x1xf32>
    %132 = math.rsqrt %131 : vector<16x1xf32>
    %133 = vector.broadcast %132 : vector<16x1xf32> to vector<16x32xf32>
    %134 = arith.mulf %129, %133 : vector<16x32xf32>
    %135 = vector.broadcast %114 : vector<1x32xf32> to vector<16x32xf32>
    %136 = arith.mulf %134, %135 : vector<16x32xf32>
    %137 = vector.broadcast %116 : vector<1x32xf32> to vector<16x32xf32>
    %138 = arith.addf %136, %137 : vector<16x32xf32>
    %c1_77 = arith.constant 1 : index
    %c0_78 = arith.constant 0 : index
    %c0_79 = arith.constant 0 : index
    %139 = vector.load %arg8[%c1_77, %c0_78, %c0_79] : memref<4x32x96xbf16, #tpu.memory_space<vmem>>, vector<1x32x96xbf16>
    %140 = vector.shape_cast %139 : vector<1x32x96xbf16> to vector<32x96xbf16>
    %c1_80 = arith.constant 1 : index
    %c0_81 = arith.constant 0 : index
    %c0_82 = arith.constant 0 : index
    %141 = vector.load %arg9[%c1_80, %c0_81, %c0_82] : memref<4x1x96xf32, #tpu.memory_space<vmem>>, vector<1x1x96xf32>
    %142 = vector.shape_cast %141 : vector<1x1x96xf32> to vector<1x96xf32>
    %143 = arith.truncf %138 : vector<16x32xf32> to vector<16x32xbf16>
    %144 = vector.extract_strided_slice %140 {offsets = [0, 0], sizes = [32, 32], strides = [1, 1]} : vector<32x96xbf16> to vector<32x32xbf16>
    %cst_83 = arith.constant dense<0.000000e+00> : vector<16x32xf32>
    %145 = tpu.matmul %143, %144, %cst_83 {dimension_numbers = #tpu.dot_dimension_numbers<[1], [0], [0], [1], [0, 0, 1, 1], [], []>} : vector<16x32xbf16>, vector<32x32xbf16>, vector<16x32xf32> -> vector<16x32xf32>
    %146 = vector.extract_strided_slice %142 {offsets = [0, 0], sizes = [1, 32], strides = [1, 1]} : vector<1x96xf32> to vector<1x32xf32>
    %147 = vector.broadcast %146 : vector<1x32xf32> to vector<16x32xf32>
    %148 = arith.addf %145, %147 : vector<16x32xf32>
    %149 = vector.shape_cast %148 : vector<16x32xf32> to vector<1x16x32xf32>
    %150 = arith.truncf %7 : vector<16x32xf32> to vector<16x32xbf16>
    %151 = vector.extract_strided_slice %140 {offsets = [0, 32], sizes = [32, 64], strides = [1, 1]} : vector<32x96xbf16> to vector<32x64xbf16>
    %cst_84 = arith.constant dense<0.000000e+00> : vector<16x64xf32>
    %152 = tpu.matmul %150, %151, %cst_84 {dimension_numbers = #tpu.dot_dimension_numbers<[1], [0], [0], [1], [0, 0, 1, 1], [], []>} : vector<16x32xbf16>, vector<32x64xbf16>, vector<16x64xf32> -> vector<16x64xf32>
    %153 = vector.extract_strided_slice %142 {offsets = [0, 32], sizes = [1, 64], strides = [1, 1]} : vector<1x96xf32> to vector<1x64xf32>
    %154 = vector.broadcast %153 : vector<1x64xf32> to vector<16x64xf32>
    %155 = arith.addf %152, %154 : vector<16x64xf32>
    %156 = vector.shape_cast %155 : vector<16x64xf32> to vector<1x16x64xf32>
    %cst_85 = arith.constant 0.000000e+00 : f32
    %157 = vector.broadcast %cst_85 : f32 to vector<16x32xf32>
    %158 = vector.extract_strided_slice %149 {offsets = [0, 0, 0], sizes = [1, 16, 16], strides = [1, 1, 1]} : vector<1x16x32xf32> to vector<1x16x16xf32>
    %159 = arith.truncf %158 : vector<1x16x16xf32> to vector<1x16x16xbf16>
    %160 = vector.extract_strided_slice %156 {offsets = [0, 0, 0], sizes = [1, 16, 16], strides = [1, 1, 1]} : vector<1x16x64xf32> to vector<1x16x16xf32>
    %161 = arith.truncf %160 : vector<1x16x16xf32> to vector<1x16x16xbf16>
    %162 = vector.extract_strided_slice %156 {offsets = [0, 0, 32], sizes = [1, 16, 16], strides = [1, 1, 1]} : vector<1x16x64xf32> to vector<1x16x16xf32>
    %163 = arith.truncf %162 : vector<1x16x16xf32> to vector<1x16x16xbf16>
    "tpu.trace_start"() <{level = 10 : i32, message = "bqd,bkd->bqk"}> : () -> ()
    %cst_86 = arith.constant dense<0.000000e+00> : vector<1x16x16xf32>
    %164 = tpu.matmul %159, %161, %cst_86 {dimension_numbers = #tpu.dot_dimension_numbers<[2], [2], [1], [1], [0, 0, 0, 1, 1, 1], [0], [0]>} : vector<1x16x16xbf16>, vector<1x16x16xbf16>, vector<1x16x16xf32> -> vector<1x16x16xf32>
    "tpu.trace_stop"() : () -> ()
    %165 = arith.addf %164, %38 : vector<1x16x16xf32>
    %cst_87 = arith.constant dense<0xFF800000> : vector<1x16xf32>
    %166 = vector.multi_reduction <maximumf>, %165, %cst_87 [2] : vector<1x16x16xf32> to vector<1x16xf32>
    %167 = vector.shape_cast %166 : vector<1x16xf32> to vector<1x16x1xf32>
    %168 = vector.broadcast %167 : vector<1x16x1xf32> to vector<1x16x16xf32>
    %169 = arith.subf %165, %168 : vector<1x16x16xf32>
    %170 = math.exp %169 : vector<1x16x16xf32>
    %cst_88 = arith.constant dense<0.000000e+00> : vector<1x16xf32>
    %171 = vector.multi_reduction <add>, %170, %cst_88 [2] : vector<1x16x16xf32> to vector<1x16xf32>
    %172 = vector.shape_cast %171 : vector<1x16xf32> to vector<1x16x1xf32>
    %173 = arith.truncf %170 : vector<1x16x16xf32> to vector<1x16x16xbf16>
    "tpu.trace_start"() <{level = 10 : i32, message = "bqk,bkd->bqd"}> : () -> ()
    %cst_89 = arith.constant dense<0.000000e+00> : vector<1x16x16xf32>
    %174 = tpu.matmul %173, %163, %cst_89 {dimension_numbers = #tpu.dot_dimension_numbers<[2], [1], [1], [2], [0, 0, 0, 1, 1, 2], [0], [0]>} : vector<1x16x16xbf16>, vector<1x16x16xbf16>, vector<1x16x16xf32> -> vector<1x16x16xf32>
    "tpu.trace_stop"() : () -> ()
    %175 = tpu.reciprocal %172 {approx = true} : vector<1x16x1xf32> -> vector<1x16x1xf32>
    %176 = vector.broadcast %175 : vector<1x16x1xf32> to vector<1x16x16xf32>
    %177 = arith.mulf %174, %176 : vector<1x16x16xf32>
    %178 = vector.shape_cast %177 : vector<1x16x16xf32> to vector<16x16xf32>
    %179 = arith.truncf %178 : vector<16x16xf32> to vector<16x16xbf16>
    %c1_90 = arith.constant 1 : index
    %c0_91 = arith.constant 0 : index
    %c0_92 = arith.constant 0 : index
    %c0_93 = arith.constant 0 : index
    %180 = vector.load %arg10[%c1_90, %c0_91, %c0_92, %c0_93] : memref<4x2x16x32xbf16, #tpu.memory_space<vmem>>, vector<1x1x16x32xbf16>
    %181 = vector.shape_cast %180 : vector<1x1x16x32xbf16> to vector<16x32xbf16>
    %cst_94 = arith.constant dense<0.000000e+00> : vector<16x32xf32>
    %182 = tpu.matmul %179, %181, %cst_94 {dimension_numbers = #tpu.dot_dimension_numbers<[1], [0], [0], [1], [0, 0, 1, 1], [], []>} : vector<16x16xbf16>, vector<16x32xbf16>, vector<16x32xf32> -> vector<16x32xf32>
    %183 = arith.addf %157, %182 : vector<16x32xf32>
    %184 = vector.extract_strided_slice %149 {offsets = [0, 0, 16], sizes = [1, 16, 16], strides = [1, 1, 1]} : vector<1x16x32xf32> to vector<1x16x16xf32>
    %185 = arith.truncf %184 : vector<1x16x16xf32> to vector<1x16x16xbf16>
    %186 = vector.extract_strided_slice %156 {offsets = [0, 0, 16], sizes = [1, 16, 16], strides = [1, 1, 1]} : vector<1x16x64xf32> to vector<1x16x16xf32>
    %187 = arith.truncf %186 : vector<1x16x16xf32> to vector<1x16x16xbf16>
    %188 = vector.extract_strided_slice %156 {offsets = [0, 0, 48], sizes = [1, 16, 16], strides = [1, 1, 1]} : vector<1x16x64xf32> to vector<1x16x16xf32>
    %189 = arith.truncf %188 : vector<1x16x16xf32> to vector<1x16x16xbf16>
    "tpu.trace_start"() <{level = 10 : i32, message = "bqd,bkd->bqk"}> : () -> ()
    %cst_95 = arith.constant dense<0.000000e+00> : vector<1x16x16xf32>
    %190 = tpu.matmul %185, %187, %cst_95 {dimension_numbers = #tpu.dot_dimension_numbers<[2], [2], [1], [1], [0, 0, 0, 1, 1, 1], [0], [0]>} : vector<1x16x16xbf16>, vector<1x16x16xbf16>, vector<1x16x16xf32> -> vector<1x16x16xf32>
    "tpu.trace_stop"() : () -> ()
    %191 = arith.addf %190, %38 : vector<1x16x16xf32>
    %cst_96 = arith.constant dense<0xFF800000> : vector<1x16xf32>
    %192 = vector.multi_reduction <maximumf>, %191, %cst_96 [2] : vector<1x16x16xf32> to vector<1x16xf32>
    %193 = vector.shape_cast %192 : vector<1x16xf32> to vector<1x16x1xf32>
    %194 = vector.broadcast %193 : vector<1x16x1xf32> to vector<1x16x16xf32>
    %195 = arith.subf %191, %194 : vector<1x16x16xf32>
    %196 = math.exp %195 : vector<1x16x16xf32>
    %cst_97 = arith.constant dense<0.000000e+00> : vector<1x16xf32>
    %197 = vector.multi_reduction <add>, %196, %cst_97 [2] : vector<1x16x16xf32> to vector<1x16xf32>
    %198 = vector.shape_cast %197 : vector<1x16xf32> to vector<1x16x1xf32>
    %199 = arith.truncf %196 : vector<1x16x16xf32> to vector<1x16x16xbf16>
    "tpu.trace_start"() <{level = 10 : i32, message = "bqk,bkd->bqd"}> : () -> ()
    %cst_98 = arith.constant dense<0.000000e+00> : vector<1x16x16xf32>
    %200 = tpu.matmul %199, %189, %cst_98 {dimension_numbers = #tpu.dot_dimension_numbers<[2], [1], [1], [2], [0, 0, 0, 1, 1, 2], [0], [0]>} : vector<1x16x16xbf16>, vector<1x16x16xbf16>, vector<1x16x16xf32> -> vector<1x16x16xf32>
    "tpu.trace_stop"() : () -> ()
    %201 = tpu.reciprocal %198 {approx = true} : vector<1x16x1xf32> -> vector<1x16x1xf32>
    %202 = vector.broadcast %201 : vector<1x16x1xf32> to vector<1x16x16xf32>
    %203 = arith.mulf %200, %202 : vector<1x16x16xf32>
    %204 = vector.shape_cast %203 : vector<1x16x16xf32> to vector<16x16xf32>
    %205 = arith.truncf %204 : vector<16x16xf32> to vector<16x16xbf16>
    %c1_99 = arith.constant 1 : index
    %c1_100 = arith.constant 1 : index
    %c0_101 = arith.constant 0 : index
    %c0_102 = arith.constant 0 : index
    %206 = vector.load %arg10[%c1_99, %c1_100, %c0_101, %c0_102] : memref<4x2x16x32xbf16, #tpu.memory_space<vmem>>, vector<1x1x16x32xbf16>
    %207 = vector.shape_cast %206 : vector<1x1x16x32xbf16> to vector<16x32xbf16>
    %cst_103 = arith.constant dense<0.000000e+00> : vector<16x32xf32>
    %208 = tpu.matmul %205, %207, %cst_103 {dimension_numbers = #tpu.dot_dimension_numbers<[1], [0], [0], [1], [0, 0, 1, 1], [], []>} : vector<16x16xbf16>, vector<16x32xbf16>, vector<16x32xf32> -> vector<16x32xf32>
    %209 = arith.addf %183, %208 : vector<16x32xf32>
    %c1_104 = arith.constant 1 : index
    %c0_105 = arith.constant 0 : index
    %c0_106 = arith.constant 0 : index
    %210 = vector.load %arg11[%c1_104, %c0_105, %c0_106] : memref<4x1x32xf32, #tpu.memory_space<vmem>>, vector<1x1x32xf32>
    %211 = vector.shape_cast %210 : vector<1x1x32xf32> to vector<1x32xf32>
    %212 = vector.broadcast %211 : vector<1x32xf32> to vector<16x32xf32>
    %213 = arith.addf %209, %212 : vector<16x32xf32>
    %214 = arith.addf %138, %213 : vector<16x32xf32>
    %c1_107 = arith.constant 1 : index
    %c0_108 = arith.constant 0 : index
    %c0_109 = arith.constant 0 : index
    %215 = vector.load %arg12[%c1_107, %c0_108, %c0_109] : memref<5x1x32xf32, #tpu.memory_space<vmem>>, vector<1x1x32xf32>
    %216 = vector.shape_cast %215 : vector<1x1x32xf32> to vector<1x32xf32>
    %c1_110 = arith.constant 1 : index
    %c0_111 = arith.constant 0 : index
    %c0_112 = arith.constant 0 : index
    %217 = vector.load %arg13[%c1_110, %c0_111, %c0_112] : memref<5x1x32xf32, #tpu.memory_space<vmem>>, vector<1x1x32xf32>
    %218 = vector.shape_cast %217 : vector<1x1x32xf32> to vector<1x32xf32>
    %cst_113 = arith.constant dense<0.000000e+00> : vector<16xf32>
    %219 = vector.multi_reduction <add>, %214, %cst_113 [1] : vector<16x32xf32> to vector<16xf32>
    %220 = vector.shape_cast %219 : vector<16xf32> to vector<16x1xf32>
    %cst_114 = arith.constant 3.200000e+01 : f32
    %221 = vector.broadcast %cst_114 : f32 to vector<16x1xf32>
    %222 = arith.divf %220, %221 : vector<16x1xf32>
    %223 = vector.broadcast %222 : vector<16x1xf32> to vector<16x32xf32>
    %224 = arith.subf %214, %223 : vector<16x32xf32>
    %225 = arith.mulf %224, %224 : vector<16x32xf32>
    %cst_115 = arith.constant dense<0.000000e+00> : vector<16xf32>
    %226 = vector.multi_reduction <add>, %225, %cst_115 [1] : vector<16x32xf32> to vector<16xf32>
    %227 = vector.shape_cast %226 : vector<16xf32> to vector<16x1xf32>
    %cst_116 = arith.constant 3.200000e+01 : f32
    %228 = vector.broadcast %cst_116 : f32 to vector<16x1xf32>
    %229 = arith.divf %227, %228 : vector<16x1xf32>
    %230 = vector.broadcast %222 : vector<16x1xf32> to vector<16x32xf32>
    %231 = arith.subf %214, %230 : vector<16x32xf32>
    %cst_117 = arith.constant 9.99999974E-6 : f32
    %232 = vector.broadcast %cst_117 : f32 to vector<16x1xf32>
    %233 = arith.addf %229, %232 : vector<16x1xf32>
    %234 = math.rsqrt %233 : vector<16x1xf32>
    %235 = vector.broadcast %234 : vector<16x1xf32> to vector<16x32xf32>
    %236 = arith.mulf %231, %235 : vector<16x32xf32>
    %237 = vector.broadcast %216 : vector<1x32xf32> to vector<16x32xf32>
    %238 = arith.mulf %236, %237 : vector<16x32xf32>
    %239 = vector.broadcast %218 : vector<1x32xf32> to vector<16x32xf32>
    %240 = arith.addf %238, %239 : vector<16x32xf32>
    %c2 = arith.constant 2 : index
    %c0_118 = arith.constant 0 : index
    %c0_119 = arith.constant 0 : index
    %241 = vector.load %arg8[%c2, %c0_118, %c0_119] : memref<4x32x96xbf16, #tpu.memory_space<vmem>>, vector<1x32x96xbf16>
    %242 = vector.shape_cast %241 : vector<1x32x96xbf16> to vector<32x96xbf16>
    %c2_120 = arith.constant 2 : index
    %c0_121 = arith.constant 0 : index
    %c0_122 = arith.constant 0 : index
    %243 = vector.load %arg9[%c2_120, %c0_121, %c0_122] : memref<4x1x96xf32, #tpu.memory_space<vmem>>, vector<1x1x96xf32>
    %244 = vector.shape_cast %243 : vector<1x1x96xf32> to vector<1x96xf32>
    %245 = arith.truncf %240 : vector<16x32xf32> to vector<16x32xbf16>
    %246 = vector.extract_strided_slice %242 {offsets = [0, 0], sizes = [32, 32], strides = [1, 1]} : vector<32x96xbf16> to vector<32x32xbf16>
    %cst_123 = arith.constant dense<0.000000e+00> : vector<16x32xf32>
    %247 = tpu.matmul %245, %246, %cst_123 {dimension_numbers = #tpu.dot_dimension_numbers<[1], [0], [0], [1], [0, 0, 1, 1], [], []>} : vector<16x32xbf16>, vector<32x32xbf16>, vector<16x32xf32> -> vector<16x32xf32>
    %248 = vector.extract_strided_slice %244 {offsets = [0, 0], sizes = [1, 32], strides = [1, 1]} : vector<1x96xf32> to vector<1x32xf32>
    %249 = vector.broadcast %248 : vector<1x32xf32> to vector<16x32xf32>
    %250 = arith.addf %247, %249 : vector<16x32xf32>
    %251 = vector.shape_cast %250 : vector<16x32xf32> to vector<1x16x32xf32>
    %252 = arith.truncf %5 : vector<16x32xf32> to vector<16x32xbf16>
    %253 = vector.extract_strided_slice %242 {offsets = [0, 32], sizes = [32, 64], strides = [1, 1]} : vector<32x96xbf16> to vector<32x64xbf16>
    %cst_124 = arith.constant dense<0.000000e+00> : vector<16x64xf32>
    %254 = tpu.matmul %252, %253, %cst_124 {dimension_numbers = #tpu.dot_dimension_numbers<[1], [0], [0], [1], [0, 0, 1, 1], [], []>} : vector<16x32xbf16>, vector<32x64xbf16>, vector<16x64xf32> -> vector<16x64xf32>
    %255 = vector.extract_strided_slice %244 {offsets = [0, 32], sizes = [1, 64], strides = [1, 1]} : vector<1x96xf32> to vector<1x64xf32>
    %256 = vector.broadcast %255 : vector<1x64xf32> to vector<16x64xf32>
    %257 = arith.addf %254, %256 : vector<16x64xf32>
    %258 = vector.shape_cast %257 : vector<16x64xf32> to vector<1x16x64xf32>
    %cst_125 = arith.constant 0.000000e+00 : f32
    %259 = vector.broadcast %cst_125 : f32 to vector<16x32xf32>
    %260 = vector.extract_strided_slice %251 {offsets = [0, 0, 0], sizes = [1, 16, 16], strides = [1, 1, 1]} : vector<1x16x32xf32> to vector<1x16x16xf32>
    %261 = arith.truncf %260 : vector<1x16x16xf32> to vector<1x16x16xbf16>
    %262 = vector.extract_strided_slice %258 {offsets = [0, 0, 0], sizes = [1, 16, 16], strides = [1, 1, 1]} : vector<1x16x64xf32> to vector<1x16x16xf32>
    %263 = arith.truncf %262 : vector<1x16x16xf32> to vector<1x16x16xbf16>
    %264 = vector.extract_strided_slice %258 {offsets = [0, 0, 32], sizes = [1, 16, 16], strides = [1, 1, 1]} : vector<1x16x64xf32> to vector<1x16x16xf32>
    %265 = arith.truncf %264 : vector<1x16x16xf32> to vector<1x16x16xbf16>
    "tpu.trace_start"() <{level = 10 : i32, message = "bqd,bkd->bqk"}> : () -> ()
    %cst_126 = arith.constant dense<0.000000e+00> : vector<1x16x16xf32>
    %266 = tpu.matmul %261, %263, %cst_126 {dimension_numbers = #tpu.dot_dimension_numbers<[2], [2], [1], [1], [0, 0, 0, 1, 1, 1], [0], [0]>} : vector<1x16x16xbf16>, vector<1x16x16xbf16>, vector<1x16x16xf32> -> vector<1x16x16xf32>
    "tpu.trace_stop"() : () -> ()
    %267 = arith.addf %266, %30 : vector<1x16x16xf32>
    %cst_127 = arith.constant dense<0xFF800000> : vector<1x16xf32>
    %268 = vector.multi_reduction <maximumf>, %267, %cst_127 [2] : vector<1x16x16xf32> to vector<1x16xf32>
    %269 = vector.shape_cast %268 : vector<1x16xf32> to vector<1x16x1xf32>
    %270 = vector.broadcast %269 : vector<1x16x1xf32> to vector<1x16x16xf32>
    %271 = arith.subf %267, %270 : vector<1x16x16xf32>
    %272 = math.exp %271 : vector<1x16x16xf32>
    %cst_128 = arith.constant dense<0.000000e+00> : vector<1x16xf32>
    %273 = vector.multi_reduction <add>, %272, %cst_128 [2] : vector<1x16x16xf32> to vector<1x16xf32>
    %274 = vector.shape_cast %273 : vector<1x16xf32> to vector<1x16x1xf32>
    %275 = arith.truncf %272 : vector<1x16x16xf32> to vector<1x16x16xbf16>
    "tpu.trace_start"() <{level = 10 : i32, message = "bqk,bkd->bqd"}> : () -> ()
    %cst_129 = arith.constant dense<0.000000e+00> : vector<1x16x16xf32>
    %276 = tpu.matmul %275, %265, %cst_129 {dimension_numbers = #tpu.dot_dimension_numbers<[2], [1], [1], [2], [0, 0, 0, 1, 1, 2], [0], [0]>} : vector<1x16x16xbf16>, vector<1x16x16xbf16>, vector<1x16x16xf32> -> vector<1x16x16xf32>
    "tpu.trace_stop"() : () -> ()
    %277 = tpu.reciprocal %274 {approx = true} : vector<1x16x1xf32> -> vector<1x16x1xf32>
    %278 = vector.broadcast %277 : vector<1x16x1xf32> to vector<1x16x16xf32>
    %279 = arith.mulf %276, %278 : vector<1x16x16xf32>
    %280 = vector.shape_cast %279 : vector<1x16x16xf32> to vector<16x16xf32>
    %281 = arith.truncf %280 : vector<16x16xf32> to vector<16x16xbf16>
    %c2_130 = arith.constant 2 : index
    %c0_131 = arith.constant 0 : index
    %c0_132 = arith.constant 0 : index
    %c0_133 = arith.constant 0 : index
    %282 = vector.load %arg10[%c2_130, %c0_131, %c0_132, %c0_133] : memref<4x2x16x32xbf16, #tpu.memory_space<vmem>>, vector<1x1x16x32xbf16>
    %283 = vector.shape_cast %282 : vector<1x1x16x32xbf16> to vector<16x32xbf16>
    %cst_134 = arith.constant dense<0.000000e+00> : vector<16x32xf32>
    %284 = tpu.matmul %281, %283, %cst_134 {dimension_numbers = #tpu.dot_dimension_numbers<[1], [0], [0], [1], [0, 0, 1, 1], [], []>} : vector<16x16xbf16>, vector<16x32xbf16>, vector<16x32xf32> -> vector<16x32xf32>
    %285 = arith.addf %259, %284 : vector<16x32xf32>
    %286 = vector.extract_strided_slice %251 {offsets = [0, 0, 16], sizes = [1, 16, 16], strides = [1, 1, 1]} : vector<1x16x32xf32> to vector<1x16x16xf32>
    %287 = arith.truncf %286 : vector<1x16x16xf32> to vector<1x16x16xbf16>
    %288 = vector.extract_strided_slice %258 {offsets = [0, 0, 16], sizes = [1, 16, 16], strides = [1, 1, 1]} : vector<1x16x64xf32> to vector<1x16x16xf32>
    %289 = arith.truncf %288 : vector<1x16x16xf32> to vector<1x16x16xbf16>
    %290 = vector.extract_strided_slice %258 {offsets = [0, 0, 48], sizes = [1, 16, 16], strides = [1, 1, 1]} : vector<1x16x64xf32> to vector<1x16x16xf32>
    %291 = arith.truncf %290 : vector<1x16x16xf32> to vector<1x16x16xbf16>
    "tpu.trace_start"() <{level = 10 : i32, message = "bqd,bkd->bqk"}> : () -> ()
    %cst_135 = arith.constant dense<0.000000e+00> : vector<1x16x16xf32>
    %292 = tpu.matmul %287, %289, %cst_135 {dimension_numbers = #tpu.dot_dimension_numbers<[2], [2], [1], [1], [0, 0, 0, 1, 1, 1], [0], [0]>} : vector<1x16x16xbf16>, vector<1x16x16xbf16>, vector<1x16x16xf32> -> vector<1x16x16xf32>
    "tpu.trace_stop"() : () -> ()
    %293 = arith.addf %292, %30 : vector<1x16x16xf32>
    %cst_136 = arith.constant dense<0xFF800000> : vector<1x16xf32>
    %294 = vector.multi_reduction <maximumf>, %293, %cst_136 [2] : vector<1x16x16xf32> to vector<1x16xf32>
    %295 = vector.shape_cast %294 : vector<1x16xf32> to vector<1x16x1xf32>
    %296 = vector.broadcast %295 : vector<1x16x1xf32> to vector<1x16x16xf32>
    %297 = arith.subf %293, %296 : vector<1x16x16xf32>
    %298 = math.exp %297 : vector<1x16x16xf32>
    %cst_137 = arith.constant dense<0.000000e+00> : vector<1x16xf32>
    %299 = vector.multi_reduction <add>, %298, %cst_137 [2] : vector<1x16x16xf32> to vector<1x16xf32>
    %300 = vector.shape_cast %299 : vector<1x16xf32> to vector<1x16x1xf32>
    %301 = arith.truncf %298 : vector<1x16x16xf32> to vector<1x16x16xbf16>
    "tpu.trace_start"() <{level = 10 : i32, message = "bqk,bkd->bqd"}> : () -> ()
    %cst_138 = arith.constant dense<0.000000e+00> : vector<1x16x16xf32>
    %302 = tpu.matmul %301, %291, %cst_138 {dimension_numbers = #tpu.dot_dimension_numbers<[2], [1], [1], [2], [0, 0, 0, 1, 1, 2], [0], [0]>} : vector<1x16x16xbf16>, vector<1x16x16xbf16>, vector<1x16x16xf32> -> vector<1x16x16xf32>
    "tpu.trace_stop"() : () -> ()
    %303 = tpu.reciprocal %300 {approx = true} : vector<1x16x1xf32> -> vector<1x16x1xf32>
    %304 = vector.broadcast %303 : vector<1x16x1xf32> to vector<1x16x16xf32>
    %305 = arith.mulf %302, %304 : vector<1x16x16xf32>
    %306 = vector.shape_cast %305 : vector<1x16x16xf32> to vector<16x16xf32>
    %307 = arith.truncf %306 : vector<16x16xf32> to vector<16x16xbf16>
    %c2_139 = arith.constant 2 : index
    %c1_140 = arith.constant 1 : index
    %c0_141 = arith.constant 0 : index
    %c0_142 = arith.constant 0 : index
    %308 = vector.load %arg10[%c2_139, %c1_140, %c0_141, %c0_142] : memref<4x2x16x32xbf16, #tpu.memory_space<vmem>>, vector<1x1x16x32xbf16>
    %309 = vector.shape_cast %308 : vector<1x1x16x32xbf16> to vector<16x32xbf16>
    %cst_143 = arith.constant dense<0.000000e+00> : vector<16x32xf32>
    %310 = tpu.matmul %307, %309, %cst_143 {dimension_numbers = #tpu.dot_dimension_numbers<[1], [0], [0], [1], [0, 0, 1, 1], [], []>} : vector<16x16xbf16>, vector<16x32xbf16>, vector<16x32xf32> -> vector<16x32xf32>
    %311 = arith.addf %285, %310 : vector<16x32xf32>
    %c2_144 = arith.constant 2 : index
    %c0_145 = arith.constant 0 : index
    %c0_146 = arith.constant 0 : index
    %312 = vector.load %arg11[%c2_144, %c0_145, %c0_146] : memref<4x1x32xf32, #tpu.memory_space<vmem>>, vector<1x1x32xf32>
    %313 = vector.shape_cast %312 : vector<1x1x32xf32> to vector<1x32xf32>
    %314 = vector.broadcast %313 : vector<1x32xf32> to vector<16x32xf32>
    %315 = arith.addf %311, %314 : vector<16x32xf32>
    %316 = arith.addf %240, %315 : vector<16x32xf32>
    %c2_147 = arith.constant 2 : index
    %c0_148 = arith.constant 0 : index
    %c0_149 = arith.constant 0 : index
    %317 = vector.load %arg12[%c2_147, %c0_148, %c0_149] : memref<5x1x32xf32, #tpu.memory_space<vmem>>, vector<1x1x32xf32>
    %318 = vector.shape_cast %317 : vector<1x1x32xf32> to vector<1x32xf32>
    %c2_150 = arith.constant 2 : index
    %c0_151 = arith.constant 0 : index
    %c0_152 = arith.constant 0 : index
    %319 = vector.load %arg13[%c2_150, %c0_151, %c0_152] : memref<5x1x32xf32, #tpu.memory_space<vmem>>, vector<1x1x32xf32>
    %320 = vector.shape_cast %319 : vector<1x1x32xf32> to vector<1x32xf32>
    %cst_153 = arith.constant dense<0.000000e+00> : vector<16xf32>
    %321 = vector.multi_reduction <add>, %316, %cst_153 [1] : vector<16x32xf32> to vector<16xf32>
    %322 = vector.shape_cast %321 : vector<16xf32> to vector<16x1xf32>
    %cst_154 = arith.constant 3.200000e+01 : f32
    %323 = vector.broadcast %cst_154 : f32 to vector<16x1xf32>
    %324 = arith.divf %322, %323 : vector<16x1xf32>
    %325 = vector.broadcast %324 : vector<16x1xf32> to vector<16x32xf32>
    %326 = arith.subf %316, %325 : vector<16x32xf32>
    %327 = arith.mulf %326, %326 : vector<16x32xf32>
    %cst_155 = arith.constant dense<0.000000e+00> : vector<16xf32>
    %328 = vector.multi_reduction <add>, %327, %cst_155 [1] : vector<16x32xf32> to vector<16xf32>
    %329 = vector.shape_cast %328 : vector<16xf32> to vector<16x1xf32>
    %cst_156 = arith.constant 3.200000e+01 : f32
    %330 = vector.broadcast %cst_156 : f32 to vector<16x1xf32>
    %331 = arith.divf %329, %330 : vector<16x1xf32>
    %332 = vector.broadcast %324 : vector<16x1xf32> to vector<16x32xf32>
    %333 = arith.subf %316, %332 : vector<16x32xf32>
    %cst_157 = arith.constant 9.99999974E-6 : f32
    %334 = vector.broadcast %cst_157 : f32 to vector<16x1xf32>
    %335 = arith.addf %331, %334 : vector<16x1xf32>
    %336 = math.rsqrt %335 : vector<16x1xf32>
    %337 = vector.broadcast %336 : vector<16x1xf32> to vector<16x32xf32>
    %338 = arith.mulf %333, %337 : vector<16x32xf32>
    %339 = vector.broadcast %318 : vector<1x32xf32> to vector<16x32xf32>
    %340 = arith.mulf %338, %339 : vector<16x32xf32>
    %341 = vector.broadcast %320 : vector<1x32xf32> to vector<16x32xf32>
    %342 = arith.addf %340, %341 : vector<16x32xf32>
    %c3 = arith.constant 3 : index
    %c0_158 = arith.constant 0 : index
    %c0_159 = arith.constant 0 : index
    %343 = vector.load %arg8[%c3, %c0_158, %c0_159] : memref<4x32x96xbf16, #tpu.memory_space<vmem>>, vector<1x32x96xbf16>
    %344 = vector.shape_cast %343 : vector<1x32x96xbf16> to vector<32x96xbf16>
    %c3_160 = arith.constant 3 : index
    %c0_161 = arith.constant 0 : index
    %c0_162 = arith.constant 0 : index
    %345 = vector.load %arg9[%c3_160, %c0_161, %c0_162] : memref<4x1x96xf32, #tpu.memory_space<vmem>>, vector<1x1x96xf32>
    %346 = vector.shape_cast %345 : vector<1x1x96xf32> to vector<1x96xf32>
    %347 = arith.truncf %342 : vector<16x32xf32> to vector<16x32xbf16>
    %348 = vector.extract_strided_slice %344 {offsets = [0, 0], sizes = [32, 32], strides = [1, 1]} : vector<32x96xbf16> to vector<32x32xbf16>
    %cst_163 = arith.constant dense<0.000000e+00> : vector<16x32xf32>
    %349 = tpu.matmul %347, %348, %cst_163 {dimension_numbers = #tpu.dot_dimension_numbers<[1], [0], [0], [1], [0, 0, 1, 1], [], []>} : vector<16x32xbf16>, vector<32x32xbf16>, vector<16x32xf32> -> vector<16x32xf32>
    %350 = vector.extract_strided_slice %346 {offsets = [0, 0], sizes = [1, 32], strides = [1, 1]} : vector<1x96xf32> to vector<1x32xf32>
    %351 = vector.broadcast %350 : vector<1x32xf32> to vector<16x32xf32>
    %352 = arith.addf %349, %351 : vector<16x32xf32>
    %353 = vector.shape_cast %352 : vector<16x32xf32> to vector<1x16x32xf32>
    %354 = arith.truncf %3 : vector<16x32xf32> to vector<16x32xbf16>
    %355 = vector.extract_strided_slice %344 {offsets = [0, 32], sizes = [32, 64], strides = [1, 1]} : vector<32x96xbf16> to vector<32x64xbf16>
    %cst_164 = arith.constant dense<0.000000e+00> : vector<16x64xf32>
    %356 = tpu.matmul %354, %355, %cst_164 {dimension_numbers = #tpu.dot_dimension_numbers<[1], [0], [0], [1], [0, 0, 1, 1], [], []>} : vector<16x32xbf16>, vector<32x64xbf16>, vector<16x64xf32> -> vector<16x64xf32>
    %357 = vector.extract_strided_slice %346 {offsets = [0, 32], sizes = [1, 64], strides = [1, 1]} : vector<1x96xf32> to vector<1x64xf32>
    %358 = vector.broadcast %357 : vector<1x64xf32> to vector<16x64xf32>
    %359 = arith.addf %356, %358 : vector<16x64xf32>
    %360 = vector.shape_cast %359 : vector<16x64xf32> to vector<1x16x64xf32>
    %cst_165 = arith.constant 0.000000e+00 : f32
    %361 = vector.broadcast %cst_165 : f32 to vector<16x32xf32>
    %362 = vector.extract_strided_slice %353 {offsets = [0, 0, 0], sizes = [1, 16, 16], strides = [1, 1, 1]} : vector<1x16x32xf32> to vector<1x16x16xf32>
    %363 = arith.truncf %362 : vector<1x16x16xf32> to vector<1x16x16xbf16>
    %364 = vector.extract_strided_slice %360 {offsets = [0, 0, 0], sizes = [1, 16, 16], strides = [1, 1, 1]} : vector<1x16x64xf32> to vector<1x16x16xf32>
    %365 = arith.truncf %364 : vector<1x16x16xf32> to vector<1x16x16xbf16>
    %366 = vector.extract_strided_slice %360 {offsets = [0, 0, 32], sizes = [1, 16, 16], strides = [1, 1, 1]} : vector<1x16x64xf32> to vector<1x16x16xf32>
    %367 = arith.truncf %366 : vector<1x16x16xf32> to vector<1x16x16xbf16>
    "tpu.trace_start"() <{level = 10 : i32, message = "bqd,bkd->bqk"}> : () -> ()
    %cst_166 = arith.constant dense<0.000000e+00> : vector<1x16x16xf32>
    %368 = tpu.matmul %363, %365, %cst_166 {dimension_numbers = #tpu.dot_dimension_numbers<[2], [2], [1], [1], [0, 0, 0, 1, 1, 1], [0], [0]>} : vector<1x16x16xbf16>, vector<1x16x16xbf16>, vector<1x16x16xf32> -> vector<1x16x16xf32>
    "tpu.trace_stop"() : () -> ()
    %369 = arith.addf %368, %22 : vector<1x16x16xf32>
    %cst_167 = arith.constant dense<0xFF800000> : vector<1x16xf32>
    %370 = vector.multi_reduction <maximumf>, %369, %cst_167 [2] : vector<1x16x16xf32> to vector<1x16xf32>
    %371 = vector.shape_cast %370 : vector<1x16xf32> to vector<1x16x1xf32>
    %372 = vector.broadcast %371 : vector<1x16x1xf32> to vector<1x16x16xf32>
    %373 = arith.subf %369, %372 : vector<1x16x16xf32>
    %374 = math.exp %373 : vector<1x16x16xf32>
    %cst_168 = arith.constant dense<0.000000e+00> : vector<1x16xf32>
    %375 = vector.multi_reduction <add>, %374, %cst_168 [2] : vector<1x16x16xf32> to vector<1x16xf32>
    %376 = vector.shape_cast %375 : vector<1x16xf32> to vector<1x16x1xf32>
    %377 = arith.truncf %374 : vector<1x16x16xf32> to vector<1x16x16xbf16>
    "tpu.trace_start"() <{level = 10 : i32, message = "bqk,bkd->bqd"}> : () -> ()
    %cst_169 = arith.constant dense<0.000000e+00> : vector<1x16x16xf32>
    %378 = tpu.matmul %377, %367, %cst_169 {dimension_numbers = #tpu.dot_dimension_numbers<[2], [1], [1], [2], [0, 0, 0, 1, 1, 2], [0], [0]>} : vector<1x16x16xbf16>, vector<1x16x16xbf16>, vector<1x16x16xf32> -> vector<1x16x16xf32>
    "tpu.trace_stop"() : () -> ()
    %379 = tpu.reciprocal %376 {approx = true} : vector<1x16x1xf32> -> vector<1x16x1xf32>
    %380 = vector.broadcast %379 : vector<1x16x1xf32> to vector<1x16x16xf32>
    %381 = arith.mulf %378, %380 : vector<1x16x16xf32>
    %382 = vector.shape_cast %381 : vector<1x16x16xf32> to vector<16x16xf32>
    %383 = arith.truncf %382 : vector<16x16xf32> to vector<16x16xbf16>
    %c3_170 = arith.constant 3 : index
    %c0_171 = arith.constant 0 : index
    %c0_172 = arith.constant 0 : index
    %c0_173 = arith.constant 0 : index
    %384 = vector.load %arg10[%c3_170, %c0_171, %c0_172, %c0_173] : memref<4x2x16x32xbf16, #tpu.memory_space<vmem>>, vector<1x1x16x32xbf16>
    %385 = vector.shape_cast %384 : vector<1x1x16x32xbf16> to vector<16x32xbf16>
    %cst_174 = arith.constant dense<0.000000e+00> : vector<16x32xf32>
    %386 = tpu.matmul %383, %385, %cst_174 {dimension_numbers = #tpu.dot_dimension_numbers<[1], [0], [0], [1], [0, 0, 1, 1], [], []>} : vector<16x16xbf16>, vector<16x32xbf16>, vector<16x32xf32> -> vector<16x32xf32>
    %387 = arith.addf %361, %386 : vector<16x32xf32>
    %388 = vector.extract_strided_slice %353 {offsets = [0, 0, 16], sizes = [1, 16, 16], strides = [1, 1, 1]} : vector<1x16x32xf32> to vector<1x16x16xf32>
    %389 = arith.truncf %388 : vector<1x16x16xf32> to vector<1x16x16xbf16>
    %390 = vector.extract_strided_slice %360 {offsets = [0, 0, 16], sizes = [1, 16, 16], strides = [1, 1, 1]} : vector<1x16x64xf32> to vector<1x16x16xf32>
    %391 = arith.truncf %390 : vector<1x16x16xf32> to vector<1x16x16xbf16>
    %392 = vector.extract_strided_slice %360 {offsets = [0, 0, 48], sizes = [1, 16, 16], strides = [1, 1, 1]} : vector<1x16x64xf32> to vector<1x16x16xf32>
    %393 = arith.truncf %392 : vector<1x16x16xf32> to vector<1x16x16xbf16>
    "tpu.trace_start"() <{level = 10 : i32, message = "bqd,bkd->bqk"}> : () -> ()
    %cst_175 = arith.constant dense<0.000000e+00> : vector<1x16x16xf32>
    %394 = tpu.matmul %389, %391, %cst_175 {dimension_numbers = #tpu.dot_dimension_numbers<[2], [2], [1], [1], [0, 0, 0, 1, 1, 1], [0], [0]>} : vector<1x16x16xbf16>, vector<1x16x16xbf16>, vector<1x16x16xf32> -> vector<1x16x16xf32>
    "tpu.trace_stop"() : () -> ()
    %395 = arith.addf %394, %22 : vector<1x16x16xf32>
    %cst_176 = arith.constant dense<0xFF800000> : vector<1x16xf32>
    %396 = vector.multi_reduction <maximumf>, %395, %cst_176 [2] : vector<1x16x16xf32> to vector<1x16xf32>
    %397 = vector.shape_cast %396 : vector<1x16xf32> to vector<1x16x1xf32>
    %398 = vector.broadcast %397 : vector<1x16x1xf32> to vector<1x16x16xf32>
    %399 = arith.subf %395, %398 : vector<1x16x16xf32>
    %400 = math.exp %399 : vector<1x16x16xf32>
    %cst_177 = arith.constant dense<0.000000e+00> : vector<1x16xf32>
    %401 = vector.multi_reduction <add>, %400, %cst_177 [2] : vector<1x16x16xf32> to vector<1x16xf32>
    %402 = vector.shape_cast %401 : vector<1x16xf32> to vector<1x16x1xf32>
    %403 = arith.truncf %400 : vector<1x16x16xf32> to vector<1x16x16xbf16>
    "tpu.trace_start"() <{level = 10 : i32, message = "bqk,bkd->bqd"}> : () -> ()
    %cst_178 = arith.constant dense<0.000000e+00> : vector<1x16x16xf32>
    %404 = tpu.matmul %403, %393, %cst_178 {dimension_numbers = #tpu.dot_dimension_numbers<[2], [1], [1], [2], [0, 0, 0, 1, 1, 2], [0], [0]>} : vector<1x16x16xbf16>, vector<1x16x16xbf16>, vector<1x16x16xf32> -> vector<1x16x16xf32>
    "tpu.trace_stop"() : () -> ()
    %405 = tpu.reciprocal %402 {approx = true} : vector<1x16x1xf32> -> vector<1x16x1xf32>
    %406 = vector.broadcast %405 : vector<1x16x1xf32> to vector<1x16x16xf32>
    %407 = arith.mulf %404, %406 : vector<1x16x16xf32>
    %408 = vector.shape_cast %407 : vector<1x16x16xf32> to vector<16x16xf32>
    %409 = arith.truncf %408 : vector<16x16xf32> to vector<16x16xbf16>
    %c3_179 = arith.constant 3 : index
    %c1_180 = arith.constant 1 : index
    %c0_181 = arith.constant 0 : index
    %c0_182 = arith.constant 0 : index
    %410 = vector.load %arg10[%c3_179, %c1_180, %c0_181, %c0_182] : memref<4x2x16x32xbf16, #tpu.memory_space<vmem>>, vector<1x1x16x32xbf16>
    %411 = vector.shape_cast %410 : vector<1x1x16x32xbf16> to vector<16x32xbf16>
    %cst_183 = arith.constant dense<0.000000e+00> : vector<16x32xf32>
    %412 = tpu.matmul %409, %411, %cst_183 {dimension_numbers = #tpu.dot_dimension_numbers<[1], [0], [0], [1], [0, 0, 1, 1], [], []>} : vector<16x16xbf16>, vector<16x32xbf16>, vector<16x32xf32> -> vector<16x32xf32>
    %413 = arith.addf %387, %412 : vector<16x32xf32>
    %c3_184 = arith.constant 3 : index
    %c0_185 = arith.constant 0 : index
    %c0_186 = arith.constant 0 : index
    %414 = vector.load %arg11[%c3_184, %c0_185, %c0_186] : memref<4x1x32xf32, #tpu.memory_space<vmem>>, vector<1x1x32xf32>
    %415 = vector.shape_cast %414 : vector<1x1x32xf32> to vector<1x32xf32>
    %416 = vector.broadcast %415 : vector<1x32xf32> to vector<16x32xf32>
    %417 = arith.addf %413, %416 : vector<16x32xf32>
    %418 = arith.addf %342, %417 : vector<16x32xf32>
    %c3_187 = arith.constant 3 : index
    %c0_188 = arith.constant 0 : index
    %c0_189 = arith.constant 0 : index
    %419 = vector.load %arg12[%c3_187, %c0_188, %c0_189] : memref<5x1x32xf32, #tpu.memory_space<vmem>>, vector<1x1x32xf32>
    %420 = vector.shape_cast %419 : vector<1x1x32xf32> to vector<1x32xf32>
    %c3_190 = arith.constant 3 : index
    %c0_191 = arith.constant 0 : index
    %c0_192 = arith.constant 0 : index
    %421 = vector.load %arg13[%c3_190, %c0_191, %c0_192] : memref<5x1x32xf32, #tpu.memory_space<vmem>>, vector<1x1x32xf32>
    %422 = vector.shape_cast %421 : vector<1x1x32xf32> to vector<1x32xf32>
    %cst_193 = arith.constant dense<0.000000e+00> : vector<16xf32>
    %423 = vector.multi_reduction <add>, %418, %cst_193 [1] : vector<16x32xf32> to vector<16xf32>
    %424 = vector.shape_cast %423 : vector<16xf32> to vector<16x1xf32>
    %cst_194 = arith.constant 3.200000e+01 : f32
    %425 = vector.broadcast %cst_194 : f32 to vector<16x1xf32>
    %426 = arith.divf %424, %425 : vector<16x1xf32>
    %427 = vector.broadcast %426 : vector<16x1xf32> to vector<16x32xf32>
    %428 = arith.subf %418, %427 : vector<16x32xf32>
    %429 = arith.mulf %428, %428 : vector<16x32xf32>
    %cst_195 = arith.constant dense<0.000000e+00> : vector<16xf32>
    %430 = vector.multi_reduction <add>, %429, %cst_195 [1] : vector<16x32xf32> to vector<16xf32>
    %431 = vector.shape_cast %430 : vector<16xf32> to vector<16x1xf32>
    %cst_196 = arith.constant 3.200000e+01 : f32
    %432 = vector.broadcast %cst_196 : f32 to vector<16x1xf32>
    %433 = arith.divf %431, %432 : vector<16x1xf32>
    %434 = vector.broadcast %426 : vector<16x1xf32> to vector<16x32xf32>
    %435 = arith.subf %418, %434 : vector<16x32xf32>
    %cst_197 = arith.constant 9.99999974E-6 : f32
    %436 = vector.broadcast %cst_197 : f32 to vector<16x1xf32>
    %437 = arith.addf %433, %436 : vector<16x1xf32>
    %438 = math.rsqrt %437 : vector<16x1xf32>
    %439 = vector.broadcast %438 : vector<16x1xf32> to vector<16x32xf32>
    %440 = arith.mulf %435, %439 : vector<16x32xf32>
    %441 = vector.broadcast %420 : vector<1x32xf32> to vector<16x32xf32>
    %442 = arith.mulf %440, %441 : vector<16x32xf32>
    %443 = vector.broadcast %422 : vector<1x32xf32> to vector<16x32xf32>
    %444 = arith.addf %442, %443 : vector<16x32xf32>
    %445 = arith.truncf %444 : vector<16x32xf32> to vector<16x32xbf16>
    %cst_198 = arith.constant dense<0.000000e+00> : vector<16x64xf32>
    %446 = tpu.matmul %445, %39, %cst_198 {dimension_numbers = #tpu.dot_dimension_numbers<[1], [0], [0], [1], [0, 0, 1, 1], [], []>} : vector<16x32xbf16>, vector<32x64xbf16>, vector<16x64xf32> -> vector<16x64xf32>
    %447 = vector.broadcast %40 : vector<1x64xf32> to vector<16x64xf32>
    %448 = arith.addf %446, %447 : vector<16x64xf32>
    %cst_199 = arith.constant 0.000000e+00 : f32
    %449 = vector.broadcast %cst_199 : f32 to vector<16x64xf32>
    %450 = arith.maximumf %448, %449 : vector<16x64xf32>
    %451 = arith.truncf %450 : vector<16x64xf32> to vector<16x64xbf16>
    %cst_200 = arith.constant dense<0.000000e+00> : vector<16x32xf32>
    %452 = tpu.matmul %451, %41, %cst_200 {dimension_numbers = #tpu.dot_dimension_numbers<[1], [0], [0], [1], [0, 0, 1, 1], [], []>} : vector<16x64xbf16>, vector<64x32xbf16>, vector<16x32xf32> -> vector<16x32xf32>
    %453 = vector.broadcast %42 : vector<1x32xf32> to vector<16x32xf32>
    %454 = arith.addf %452, %453 : vector<16x32xf32>
    %455 = arith.addf %444, %454 : vector<16x32xf32>
    %c4 = arith.constant 4 : index
    %c0_201 = arith.constant 0 : index
    %c0_202 = arith.constant 0 : index
    %456 = vector.load %arg12[%c4, %c0_201, %c0_202] : memref<5x1x32xf32, #tpu.memory_space<vmem>>, vector<1x1x32xf32>
    %457 = vector.shape_cast %456 : vector<1x1x32xf32> to vector<1x32xf32>
    %c4_203 = arith.constant 4 : index
    %c0_204 = arith.constant 0 : index
    %c0_205 = arith.constant 0 : index
    %458 = vector.load %arg13[%c4_203, %c0_204, %c0_205] : memref<5x1x32xf32, #tpu.memory_space<vmem>>, vector<1x1x32xf32>
    %459 = vector.shape_cast %458 : vector<1x1x32xf32> to vector<1x32xf32>
    %cst_206 = arith.constant dense<0.000000e+00> : vector<16xf32>
    %460 = vector.multi_reduction <add>, %455, %cst_206 [1] : vector<16x32xf32> to vector<16xf32>
    %461 = vector.shape_cast %460 : vector<16xf32> to vector<16x1xf32>
    %cst_207 = arith.constant 3.200000e+01 : f32
    %462 = vector.broadcast %cst_207 : f32 to vector<16x1xf32>
    %463 = arith.divf %461, %462 : vector<16x1xf32>
    %464 = vector.broadcast %463 : vector<16x1xf32> to vector<16x32xf32>
    %465 = arith.subf %455, %464 : vector<16x32xf32>
    %466 = arith.mulf %465, %465 : vector<16x32xf32>
    %cst_208 = arith.constant dense<0.000000e+00> : vector<16xf32>
    %467 = vector.multi_reduction <add>, %466, %cst_208 [1] : vector<16x32xf32> to vector<16xf32>
    %468 = vector.shape_cast %467 : vector<16xf32> to vector<16x1xf32>
    %cst_209 = arith.constant 3.200000e+01 : f32
    %469 = vector.broadcast %cst_209 : f32 to vector<16x1xf32>
    %470 = arith.divf %468, %469 : vector<16x1xf32>
    %471 = vector.broadcast %463 : vector<16x1xf32> to vector<16x32xf32>
    %472 = arith.subf %455, %471 : vector<16x32xf32>
    %cst_210 = arith.constant 9.99999974E-6 : f32
    %473 = vector.broadcast %cst_210 : f32 to vector<16x1xf32>
    %474 = arith.addf %470, %473 : vector<16x1xf32>
    %475 = math.rsqrt %474 : vector<16x1xf32>
    %476 = vector.broadcast %475 : vector<16x1xf32> to vector<16x32xf32>
    %477 = arith.mulf %472, %476 : vector<16x32xf32>
    %478 = vector.broadcast %457 : vector<1x32xf32> to vector<16x32xf32>
    %479 = arith.mulf %477, %478 : vector<16x32xf32>
    %480 = vector.broadcast %459 : vector<1x32xf32> to vector<16x32xf32>
    %481 = arith.addf %479, %480 : vector<16x32xf32>
    %482 = vector.shape_cast %481 : vector<16x32xf32> to vector<1x16x32xf32>
    %c0_211 = arith.constant 0 : index
    %c0_212 = arith.constant 0 : index
    %c0_213 = arith.constant 0 : index
    %483 = vector.load %arg18[%c0_211, %c0_212, %c0_213] : memref<1x16x32xf32, #tpu.memory_space<vmem>>, vector<1x16x32xf32>
    tpu.vector_store %arg18[%c0_211, %c0_212, %c0_213], %482 {strides = array<i32>} : memref<1x16x32xf32, #tpu.memory_space<vmem>>, vector<1x16x32xf32>,
    return
  }
  func.func @transform_0(%arg0: i32) -> (i32, i32, i32) {
    %c0_i32 = arith.constant 0 : i32
    %c0_i32_0 = arith.constant 0 : i32
    %c0_i32_1 = arith.constant 0 : i32
    return %arg0, %c0_i32, %c0_i32_0 : i32, i32, i32
  }
  func.func @transform_1(%arg0: i32) -> (i32, i32, i32) {
    %c0_i32 = arith.constant 0 : i32
    %c0_i32_0 = arith.constant 0 : i32
    %c0_i32_1 = arith.constant 0 : i32
    return %arg0, %c0_i32, %c0_i32_0 : i32, i32, i32
  }
  func.func @transform_2(%arg0: i32) -> (i32, i32, i32) {
    %c0_i32 = arith.constant 0 : i32
    %c0_i32_0 = arith.constant 0 : i32
    %c0_i32_1 = arith.constant 0 : i32
    return %arg0, %c0_i32, %c0_i32_0 : i32, i32, i32
  }
  func.func @transform_3(%arg0: i32) -> (i32, i32, i32) {
    %c0_i32 = arith.constant 0 : i32
    %c0_i32_0 = arith.constant 0 : i32
    %c0_i32_1 = arith.constant 0 : i32
    return %arg0, %c0_i32, %c0_i32_0 : i32, i32, i32
  }
  func.func @transform_4(%arg0: i32) -> (i32, i32, i32) {
    %c0_i32 = arith.constant 0 : i32
    %c0_i32_0 = arith.constant 0 : i32
    %c0_i32_1 = arith.constant 0 : i32
    return %arg0, %c0_i32, %c0_i32_0 : i32, i32, i32
  }
  func.func @transform_5(%arg0: i32) -> (i32, i32, i32) {
    %c0_i32 = arith.constant 0 : i32
    %c0_i32_0 = arith.constant 0 : i32
    %c0_i32_1 = arith.constant 0 : i32
    return %arg0, %c0_i32, %c0_i32_0 : i32, i32, i32
  }
  func.func @transform_6(%arg0: i32) -> (i32, i32, i32) {
    %c0_i32 = arith.constant 0 : i32
    %c0_i32_0 = arith.constant 0 : i32
    %c0_i32_1 = arith.constant 0 : i32
    return %arg0, %c0_i32, %c0_i32_0 : i32, i32, i32
  }
  func.func @transform_7(%arg0: i32) -> (i32, i32, i32) {
    %c0_i32 = arith.constant 0 : i32
    %c0_i32_0 = arith.constant 0 : i32
    %c0_i32_1 = arith.constant 0 : i32
    %c0_i32_2 = arith.constant 0 : i32
    return %c0_i32, %c0_i32_0, %c0_i32_1 : i32, i32, i32
  }
  func.func @transform_8(%arg0: i32) -> (i32, i32, i32) {
    %c0_i32 = arith.constant 0 : i32
    %c0_i32_0 = arith.constant 0 : i32
    %c0_i32_1 = arith.constant 0 : i32
    %c0_i32_2 = arith.constant 0 : i32
    return %c0_i32, %c0_i32_0, %c0_i32_1 : i32, i32, i32
  }
  func.func @transform_9(%arg0: i32) -> (i32, i32, i32, i32) {
    %c0_i32 = arith.constant 0 : i32
    %c0_i32_0 = arith.constant 0 : i32
    %c0_i32_1 = arith.constant 0 : i32
    %c0_i32_2 = arith.constant 0 : i32
    %c0_i32_3 = arith.constant 0 : i32
    return %c0_i32, %c0_i32_0, %c0_i32_1, %c0_i32_2 : i32, i32, i32, i32
  }
  func.func @transform_10(%arg0: i32) -> (i32, i32, i32) {
    %c0_i32 = arith.constant 0 : i32
    %c0_i32_0 = arith.constant 0 : i32
    %c0_i32_1 = arith.constant 0 : i32
    %c0_i32_2 = arith.constant 0 : i32
    return %c0_i32, %c0_i32_0, %c0_i32_1 : i32, i32, i32
  }
  func.func @transform_11(%arg0: i32) -> (i32, i32, i32) {
    %c0_i32 = arith.constant 0 : i32
    %c0_i32_0 = arith.constant 0 : i32
    %c0_i32_1 = arith.constant 0 : i32
    %c0_i32_2 = arith.constant 0 : i32
    return %c0_i32, %c0_i32_0, %c0_i32_1 : i32, i32, i32
  }
  func.func @transform_12(%arg0: i32) -> (i32, i32, i32) {
    %c0_i32 = arith.constant 0 : i32
    %c0_i32_0 = arith.constant 0 : i32
    %c0_i32_1 = arith.constant 0 : i32
    %c0_i32_2 = arith.constant 0 : i32
    return %c0_i32, %c0_i32_0, %c0_i32_1 : i32, i32, i32
  }
  func.func @transform_13(%arg0: i32) -> (i32, i32) {
    %c0_i32 = arith.constant 0 : i32
    %c0_i32_0 = arith.constant 0 : i32
    %c0_i32_1 = arith.constant 0 : i32
    return %c0_i32, %c0_i32_0 : i32, i32
  }
  func.func @transform_14(%arg0: i32) -> (i32, i32) {
    %c0_i32 = arith.constant 0 : i32
    %c0_i32_0 = arith.constant 0 : i32
    %c0_i32_1 = arith.constant 0 : i32
    return %c0_i32, %c0_i32_0 : i32, i32
  }
  func.func @transform_15(%arg0: i32) -> (i32, i32) {
    %c0_i32 = arith.constant 0 : i32
    %c0_i32_0 = arith.constant 0 : i32
    %c0_i32_1 = arith.constant 0 : i32
    return %c0_i32, %c0_i32_0 : i32, i32
  }
  func.func @transform_16(%arg0: i32) -> (i32, i32) {
    %c0_i32 = arith.constant 0 : i32
    %c0_i32_0 = arith.constant 0 : i32
    %c0_i32_1 = arith.constant 0 : i32
    return %c0_i32, %c0_i32_0 : i32, i32
  }
  func.func @transform_17(%arg0: i32) -> (i32, i32, i32) {
    %c0_i32 = arith.constant 0 : i32
    %c0_i32_0 = arith.constant 0 : i32
    %c0_i32_1 = arith.constant 0 : i32
    return %arg0, %c0_i32, %c0_i32_0 : i32, i32, i32
  }
}

</mosaic_0001>

<llo_original>
// kernel: tpu_custom_call.1
$region0: #{tpu_custom_call.1}
  #allocation0 [shape = 'u32[]', space=smem, size = 0x4, offset = 0x4, fixed_abs, tag = 'smem constant byte address 0x4 - core index']
  #allocation1 [shape = 'u32[72,128]{1,0:T(1,128)}', space=vmem, size = 0x9000, scoped, tag = 'internal scratch']
  %s0 = inlined_call_operand.vmem [shape: f32[2,16,32], index: 0, kind: input, shape index: {}]
  %s1 = inlined_call_operand.hbm [shape: f32[2,16,32], index: 1, kind: input, shape index: {}]
  %s2 = inlined_call_operand.hbm [shape: f32[2,1,16], index: 2, kind: input, shape index: {}]
  %s3 = inlined_call_operand.hbm [shape: f32[2,16,32], index: 3, kind: input, shape index: {}]
  %s4 = inlined_call_operand.hbm [shape: f32[2,1,16], index: 4, kind: input, shape index: {}]
  %s5 = inlined_call_operand.hbm [shape: f32[2,16,32], index: 5, kind: input, shape index: {}]
  %s6 = inlined_call_operand.hbm [shape: f32[2,1,16], index: 6, kind: input, shape index: {}]
  %s7 = inlined_call_operand.hbm [shape: bf16[4,32,96], index: 7, kind: input, shape index: {}]
  %s8 = inlined_call_operand.hbm [shape: f32[4,1,96], index: 8, kind: input, shape index: {}]
  %s9 = inlined_call_operand.hbm [shape: bf16[4,2,16,32], index: 9, kind: input, shape index: {}]
  %s10 = inlined_call_operand.hbm [shape: f32[4,1,32], index: 10, kind: input, shape index: {}]
  %s11 = inlined_call_operand.vmem [shape: f32[5,1,32], index: 11, kind: input, shape index: {}]
  %s12 = inlined_call_operand.vmem [shape: f32[5,1,32], index: 12, kind: input, shape index: {}]
  %s13 = inlined_call_operand.vmem [shape: bf16[32,64], index: 13, kind: input, shape index: {}]
  %s14 = inlined_call_operand.vmem [shape: f32[1,64], index: 14, kind: input, shape index: {}]
  %s15 = inlined_call_operand.vmem [shape: bf16[64,32], index: 15, kind: input, shape index: {}]
  %s16 = inlined_call_operand.vmem [shape: f32[1,32], index: 16, kind: input, shape index: {}]
  %s17 = inlined_call_operand.hbm [shape: f32[2,16,32], index: 17, kind: output, shape index: {}]
  %s18 = sld [smem:[#allocation0]]
  $region141: #{tpu_custom_call.1} parent=0
    _
  %s20 = ssub.s32 1, %s18
  %s21 = scalar_select 0, %s20, %s18
  $region1: #{tpu_custom_call.1} parent=0
    #allocation2 [shape = 'u8[16384]{0}', space=vmem, size = 0x4000, scoped, tag = 'input window, operand 1']
    #allocation3 [shape = 's32[2]{0}', space=sflag, size = 0x8, scoped, tag = 'scoped memory for tpu_custom_call.1']
    #allocation4 [shape = 's32[2]{0}', space=sflag, size = 0x8, scoped, tag = 'scoped memory for tpu_custom_call.1']
    #allocation5 [shape = 'u8[1024]{0}', space=vmem, size = 0x400, scoped, tag = 'input window, operand 2']
    #allocation6 [shape = 's32[2]{0}', space=sflag, size = 0x8, scoped, tag = 'scoped memory for tpu_custom_call.1']
    #allocation7 [shape = 'u8[16384]{0}', space=vmem, size = 0x4000, scoped, tag = 'input window, operand 3']
    #allocation8 [shape = 'u8[1024]{0}', space=vmem, size = 0x400, scoped, tag = 'input window, operand 4']
    #allocation9 [shape = 's32[2]{0}', space=sflag, size = 0x8, scoped, tag = 'scoped memory for tpu_custom_call.1']
    #allocation10 [shape = 'u8[16384]{0}', space=vmem, size = 0x4000, scoped, tag = 'input window, operand 5']
    #allocation11 [shape = 'u8[1024]{0}', space=vmem, size = 0x400, scoped, tag = 'input window, operand 6']
    #allocation12 [shape = 's32[2]{0}', space=sflag, size = 0x8, scoped, tag = 'scoped memory for tpu_custom_call.1']
    #allocation13 [shape = 'u8[32768]{0}', space=vmem, size = 0x8000, scoped, tag = 'input window, operand 7, single buffered']
    #allocation14 [shape = 'u8[2048]{0}', space=vmem, size = 0x800, scoped, tag = 'input window, operand 8, single buffered']
    #allocation15 [shape = 's32[1]{0}', space=sflag, size = 0x4, scoped, tag = 'scoped memory for tpu_custom_call.1']
    #allocation16 [shape = 'u8[32768]{0}', space=vmem, size = 0x8000, scoped, tag = 'input window, operand 9, single buffered']
    #allocation17 [shape = 'u8[2048]{0}', space=vmem, size = 0x800, scoped, tag = 'input window, operand 10, single buffered']
    #allocation18 [shape = 's32[1]{0}', space=sflag, size = 0x4, scoped, tag = 'scoped memory for tpu_custom_call.1']
    #allocation19 [shape = 'u8[16384]{0}', space=vmem, size = 0x4000, scoped, tag = 'output window, operand 0']
    %22 = vsyncpa [#allocation3], 0
    %s23 = scalar_lea.sflag [#allocation3], 1
    %24 = vsyncpa %s23, 0
    %25 = vsyncpa [#allocation6], 0
    %s26 = scalar_lea.sflag [#allocation6], 1
    %27 = vsyncpa %s26, 0
    %28 = vsyncpa [#allocation9], 0
    %s29 = scalar_lea.sflag [#allocation9], 1
    %30 = vsyncpa %s29, 0
    %31 = vsyncpa [#allocation12], 0
    %s32 = scalar_lea.sflag [#allocation12], 1
    %33 = vsyncpa %s32, 0
    %34 = vsyncpa [#allocation15], 0
    %35 = vsyncpa [#allocation18], 0
    %36 = vsyncpa [#allocation4], 0
    %s37 = scalar_lea.sflag [#allocation4], 1
    %38 = vsyncpa %s37, 0
    loop: start=0, step=1, limit=4
    $region2: #{tpu_custom_call.1} parent=1 // loop_pre_header
      _
    $region3: #{tpu_custom_call.1} parent=1 // loop_header
      %s40 = sphi 0, %s44
      %p41 = scmp.ge.s32.totalorder %s40, 4
      %s50 = sphi 0, %s52
      %s53 = sphi 0, %s50
      %s54 = sphi 0, %s53
      %s70 = sphi 0, %s54
      %s76 = sphi 0, %s78
      %s79 = sphi 0, %s76
      %s80 = sphi 0, %s79
      %s96 = sphi 0, %s80
      %s102 = sphi 0, %s104
      %s105 = sphi 0, %s102
      %s106 = sphi 0, %s105
      %s122 = sphi 0, %s106
      %s128 = sphi 0, %s130
      %s131 = sphi 0, %s128
      %s132 = sphi 0, %s131
      %s148 = sphi 0, %s132
      %s154 = sphi 0, %s156
      %s157 = sphi 0, %s154
      %s158 = sphi 0, %s157
      %s174 = sphi 0, %s158
      %s180 = sphi 0, %s182
      %s183 = sphi 0, %s180
      %s184 = sphi 0, %s183
      %s200 = sphi 0, %s184
      %s206 = sphi 0, %s208
      %s209 = sphi 0, %s206
      %s210 = sphi 0, %s209
      %s226 = sphi 0, %s210
      %s230 = sphi 0, %s230
      %s232 = sphi 0, %s230
      %s233 = sphi 0, %s232
      %s247 = sphi 0, %s233
      %s251 = sphi 0, %s251
      %s253 = sphi 0, %s251
      %s254 = sphi 0, %s253
      %s268 = sphi 0, %s254
      %s272 = sphi 0, %s272
      %s274 = sphi 0, %s272
      %s275 = sphi 0, %s274
      %s289 = sphi 0, %s275
      %s293 = sphi 0, %s293
      %s295 = sphi 0, %s293
      %s296 = sphi 0, %s295
      %s310 = sphi 0, %s296
      %s314 = sphi 0, %s314
      %s316 = sphi 0, %s314
      %s317 = sphi 0, %s316
      %s331 = sphi 0, %s317
      %s335 = sphi 0, %s335
      %s337 = sphi 0, %s335
      %s338 = sphi 0, %s337
      %s352 = sphi 0, %s338
      %s356 = sphi 0, %s356
      %s358 = sphi 0, %s356
      %s359 = sphi 0, %s358
      %s373 = sphi 0, %s359
      %s377 = sphi 0, %s377
      %s379 = sphi 0, %s377
      %s380 = sphi 0, %s379
      %s394 = sphi 0, %s380
      %s398 = sphi 0, %s398
      %s400 = sphi 0, %s398
      %s401 = sphi 0, %s400
      %s415 = sphi 0, %s401
      %s419 = sphi 0, %s419
      %s421 = sphi 0, %s419
      %s422 = sphi 0, %s421
      %s436 = sphi 0, %s422
      %s442 = sphi 0, %s444
      %s445 = sphi 0, %s442
      %s446 = sphi 0, %s445
      %s462 = sphi 0, %s446
    $region4: #{tpu_custom_call.1} parent=1 // loop_header_branch
      %43 = sbr.rel (%p41) target = $region8
    $region5: #{tpu_custom_call.1} parent=1 // loop_body
      %s45 = ssub.s32 %s40, 1
      %s46 = ssub.s32 %s40, 2
      %s47 = sadd.s32 %s40, 1
      %s48 = ssub.s32 %s40, %s47
      %p49 = scmp.eq.s32.totalorder %s48, 0
      %s51 = sadd.s32 %s50, 1
      %s52 = scalar_select %p49, %s50, %s51
      %p55 = pneg %p49
      %p56 = scmp.eq.s32.totalorder %s40, 1
      %p57 = por %p55, %p56
      %p58 = scmp.ne.s32.totalorder %s50, %s53
      %p59 = scmp.eq.s32.totalorder %s40, 0
      %p60 = por %p58, %p59
      %p61 = scmp.ne.s32.totalorder %s50, %s53
      %p62 = scmp.eq.s32.totalorder %s45, 1
      %p63 = por %p61, %p62
      %p64 = scmp.ne.s32.totalorder %s53, %s54
      %p65 = scmp.eq.s32.totalorder %s45, 0
      %p66 = por %p64, %p65
      %p67 = scmp.ne.s32.totalorder %s53, %s54
      %p68 = scmp.eq.s32.totalorder %s46, 1
      %p69 = por %p67, %p68
      %p71 = scmp.ne.s32.totalorder %s54, %s70
      %p72 = scmp.eq.s32.totalorder %s46, 0
      %p73 = por %p71, %p72
      %s74 = ssub.s32 %s40, %s47
      %p75 = scmp.eq.s32.totalorder %s74, 0
      %s77 = sadd.s32 %s76, 1
      %s78 = scalar_select %p75, %s76, %s77
      %p81 = pneg %p75
      %p82 = scmp.eq.s32.totalorder %s40, 1
      %p83 = por %p81, %p82
      %p84 = scmp.ne.s32.totalorder %s76, %s79
      %p85 = scmp.eq.s32.totalorder %s40, 0
      %p86 = por %p84, %p85
      %p87 = scmp.ne.s32.totalorder %s76, %s79
      %p88 = scmp.eq.s32.totalorder %s45, 1
      %p89 = por %p87, %p88
      %p90 = scmp.ne.s32.totalorder %s79, %s80
      %p91 = scmp.eq.s32.totalorder %s45, 0
      %p92 = por %p90, %p91
      %p93 = scmp.ne.s32.totalorder %s79, %s80
      %p94 = scmp.eq.s32.totalorder %s46, 1
      %p95 = por %p93, %p94
      %p97 = scmp.ne.s32.totalorder %s80, %s96
      %p98 = scmp.eq.s32.totalorder %s46, 0
      %p99 = por %p97, %p98
      %s100 = ssub.s32 %s40, %s47
      %p101 = scmp.eq.s32.totalorder %s100, 0
      %s103 = sadd.s32 %s102, 1
      %s104 = scalar_select %p101, %s102, %s103
      %p107 = pneg %p101
      %p108 = scmp.eq.s32.totalorder %s40, 1
      %p109 = por %p107, %p108
      %p110 = scmp.ne.s32.totalorder %s102, %s105
      %p111 = scmp.eq.s32.totalorder %s40, 0
      %p112 = por %p110, %p111
      %p113 = scmp.ne.s32.totalorder %s102, %s105
      %p114 = scmp.eq.s32.totalorder %s45, 1
      %p115 = por %p113, %p114
      %p116 = scmp.ne.s32.totalorder %s105, %s106
      %p117 = scmp.eq.s32.totalorder %s45, 0
      %p118 = por %p116, %p117
      %p119 = scmp.ne.s32.totalorder %s105, %s106
      %p120 = scmp.eq.s32.totalorder %s46, 1
      %p121 = por %p119, %p120
      %p123 = scmp.ne.s32.totalorder %s106, %s122
      %p124 = scmp.eq.s32.totalorder %s46, 0
      %p125 = por %p123, %p124
      %s126 = ssub.s32 %s40, %s47
      %p127 = scmp.eq.s32.totalorder %s126, 0
      %s129 = sadd.s32 %s128, 1
      %s130 = scalar_select %p127, %s128, %s129
      %p133 = pneg %p127
      %p134 = scmp.eq.s32.totalorder %s40, 1
      %p135 = por %p133, %p134
      %p136 = scmp.ne.s32.totalorder %s128, %s131
      %p137 = scmp.eq.s32.totalorder %s40, 0
      %p138 = por %p136, %p137
      %p139 = scmp.ne.s32.totalorder %s128, %s131
      %p140 = scmp.eq.s32.totalorder %s45, 1
      %p141 = por %p139, %p140
      %p142 = scmp.ne.s32.totalorder %s131, %s132
      %p143 = scmp.eq.s32.totalorder %s45, 0
      %p144 = por %p142, %p143
      %p145 = scmp.ne.s32.totalorder %s131, %s132
      %p146 = scmp.eq.s32.totalorder %s46, 1
      %p147 = por %p145, %p146
      %p149 = scmp.ne.s32.totalorder %s132, %s148
      %p150 = scmp.eq.s32.totalorder %s46, 0
      %p151 = por %p149, %p150
      %s152 = ssub.s32 %s40, %s47
      %p153 = scmp.eq.s32.totalorder %s152, 0
      %s155 = sadd.s32 %s154, 1
      %s156 = scalar_select %p153, %s154, %s155
      %p159 = pneg %p153
      %p160 = scmp.eq.s32.totalorder %s40, 1
      %p161 = por %p159, %p160
      %p162 = scmp.ne.s32.totalorder %s154, %s157
      %p163 = scmp.eq.s32.totalorder %s40, 0
      %p164 = por %p162, %p163
      %p165 = scmp.ne.s32.totalorder %s154, %s157
      %p166 = scmp.eq.s32.totalorder %s45, 1
      %p167 = por %p165, %p166
      %p168 = scmp.ne.s32.totalorder %s157, %s158
      %p169 = scmp.eq.s32.totalorder %s45, 0
      %p170 = por %p168, %p169
      %p171 = scmp.ne.s32.totalorder %s157, %s158
      %p172 = scmp.eq.s32.totalorder %s46, 1
      %p173 = por %p171, %p172
      %p175 = scmp.ne.s32.totalorder %s158, %s174
      %p176 = scmp.eq.s32.totalorder %s46, 0
      %p177 = por %p175, %p176
      %s178 = ssub.s32 %s40, %s47
      %p179 = scmp.eq.s32.totalorder %s178, 0
      %s181 = sadd.s32 %s180, 1
      %s182 = scalar_select %p179, %s180, %s181
      %p185 = pneg %p179
      %p186 = scmp.eq.s32.totalorder %s40, 1
      %p187 = por %p185, %p186
      %p188 = scmp.ne.s32.totalorder %s180, %s183
      %p189 = scmp.eq.s32.totalorder %s40, 0
      %p190 = por %p188, %p189
      %p191 = scmp.ne.s32.totalorder %s180, %s183
      %p192 = scmp.eq.s32.totalorder %s45, 1
      %p193 = por %p191, %p192
      %p194 = scmp.ne.s32.totalorder %s183, %s184
      %p195 = scmp.eq.s32.totalorder %s45, 0
      %p196 = por %p194, %p195
      %p197 = scmp.ne.s32.totalorder %s183, %s184
      %p198 = scmp.eq.s32.totalorder %s46, 1
      %p199 = por %p197, %p198
      %p201 = scmp.ne.s32.totalorder %s184, %s200
      %p202 = scmp.eq.s32.totalorder %s46, 0
      %p203 = por %p201, %p202
      %s204 = ssub.s32 %s40, %s47
      %p205 = scmp.eq.s32.totalorder %s204, 0
      %s207 = sadd.s32 %s206, 1
      %s208 = scalar_select %p205, %s206, %s207
      %p211 = pneg %p205
      %p212 = scmp.eq.s32.totalorder %s40, 1
      %p213 = por %p211, %p212
      %p214 = scmp.ne.s32.totalorder %s206, %s209
      %p215 = scmp.eq.s32.totalorder %s40, 0
      %p216 = por %p214, %p215
      %p217 = scmp.ne.s32.totalorder %s206, %s209
      %p218 = scmp.eq.s32.totalorder %s45, 1
      %p219 = por %p217, %p218
      %p220 = scmp.ne.s32.totalorder %s209, %s210
      %p221 = scmp.eq.s32.totalorder %s45, 0
      %p222 = por %p220, %p221
      %p223 = scmp.ne.s32.totalorder %s209, %s210
      %p224 = scmp.eq.s32.totalorder %s46, 1
      %p225 = por %p223, %p224
      %p227 = scmp.ne.s32.totalorder %s210, %s226
      %p228 = scmp.eq.s32.totalorder %s46, 0
      %p229 = por %p227, %p228
      %s231 = sadd.s32 %s230, 1
      %p234 = scmp.eq.s32.totalorder %s40, 1
      %p235 = scmp.ne.s32.totalorder %s230, %s232
      %p236 = scmp.eq.s32.totalorder %s40, 0
      %p237 = por %p235, %p236
      %p238 = scmp.ne.s32.totalorder %s230, %s232
      %p239 = scmp.eq.s32.totalorder %s45, 1
      %p240 = por %p238, %p239
      %p241 = scmp.ne.s32.totalorder %s232, %s233
      %p242 = scmp.eq.s32.totalorder %s45, 0
      %p243 = por %p241, %p242
      %p244 = scmp.ne.s32.totalorder %s232, %s233
      %p245 = scmp.eq.s32.totalorder %s46, 1
      %p246 = por %p244, %p245
      %p248 = scmp.ne.s32.totalorder %s233, %s247
      %p249 = scmp.eq.s32.totalorder %s46, 0
      %p250 = por %p248, %p249
      %s252 = sadd.s32 %s251, 1
      %p255 = scmp.eq.s32.totalorder %s40, 1
      %p256 = scmp.ne.s32.totalorder %s251, %s253
      %p257 = scmp.eq.s32.totalorder %s40, 0
      %p258 = por %p256, %p257
      %p259 = scmp.ne.s32.totalorder %s251, %s253
      %p260 = scmp.eq.s32.totalorder %s45, 1
      %p261 = por %p259, %p260
      %p262 = scmp.ne.s32.totalorder %s253, %s254
      %p263 = scmp.eq.s32.totalorder %s45, 0
      %p264 = por %p262, %p263
      %p265 = scmp.ne.s32.totalorder %s253, %s254
      %p266 = scmp.eq.s32.totalorder %s46, 1
      %p267 = por %p265, %p266
      %p269 = scmp.ne.s32.totalorder %s254, %s268
      %p270 = scmp.eq.s32.totalorder %s46, 0
      %p271 = por %p269, %p270
      %s273 = sadd.s32 %s272, 1
      %p276 = scmp.eq.s32.totalorder %s40, 1
      %p277 = scmp.ne.s32.totalorder %s272, %s274
      %p278 = scmp.eq.s32.totalorder %s40, 0
      %p279 = por %p277, %p278
      %p280 = scmp.ne.s32.totalorder %s272, %s274
      %p281 = scmp.eq.s32.totalorder %s45, 1
      %p282 = por %p280, %p281
      %p283 = scmp.ne.s32.totalorder %s274, %s275
      %p284 = scmp.eq.s32.totalorder %s45, 0
      %p285 = por %p283, %p284
      %p286 = scmp.ne.s32.totalorder %s274, %s275
      %p287 = scmp.eq.s32.totalorder %s46, 1
      %p288 = por %p286, %p287
      %p290 = scmp.ne.s32.totalorder %s275, %s289
      %p291 = scmp.eq.s32.totalorder %s46, 0
      %p292 = por %p290, %p291
      %s294 = sadd.s32 %s293, 1
      %p297 = scmp.eq.s32.totalorder %s40, 1
      %p298 = scmp.ne.s32.totalorder %s293, %s295
      %p299 = scmp.eq.s32.totalorder %s40, 0
      %p300 = por %p298, %p299
      %p301 = scmp.ne.s32.totalorder %s293, %s295
      %p302 = scmp.eq.s32.totalorder %s45, 1
      %p303 = por %p301, %p302
      %p304 = scmp.ne.s32.totalorder %s295, %s296
      %p305 = scmp.eq.s32.totalorder %s45, 0
      %p306 = por %p304, %p305
      %p307 = scmp.ne.s32.totalorder %s295, %s296
      %p308 = scmp.eq.s32.totalorder %s46, 1
      %p309 = por %p307, %p308
      %p311 = scmp.ne.s32.totalorder %s296, %s310
      %p312 = scmp.eq.s32.totalorder %s46, 0
      %p313 = por %p311, %p312
      %s315 = sadd.s32 %s314, 1
      %p318 = scmp.eq.s32.totalorder %s40, 1
      %p319 = scmp.ne.s32.totalorder %s314, %s316
      %p320 = scmp.eq.s32.totalorder %s40, 0
      %p321 = por %p319, %p320
      %p322 = scmp.ne.s32.totalorder %s314, %s316
      %p323 = scmp.eq.s32.totalorder %s45, 1
      %p324 = por %p322, %p323
      %p325 = scmp.ne.s32.totalorder %s316, %s317
      %p326 = scmp.eq.s32.totalorder %s45, 0
      %p327 = por %p325, %p326
      %p328 = scmp.ne.s32.totalorder %s316, %s317
      %p329 = scmp.eq.s32.totalorder %s46, 1
      %p330 = por %p328, %p329
      %p332 = scmp.ne.s32.totalorder %s317, %s331
      %p333 = scmp.eq.s32.totalorder %s46, 0
      %p334 = por %p332, %p333
      %s336 = sadd.s32 %s335, 1
      %p339 = scmp.eq.s32.totalorder %s40, 1
      %p340 = scmp.ne.s32.totalorder %s335, %s337
      %p341 = scmp.eq.s32.totalorder %s40, 0
      %p342 = por %p340, %p341
      %p343 = scmp.ne.s32.totalorder %s335, %s337
      %p344 = scmp.eq.s32.totalorder %s45, 1
      %p345 = por %p343, %p344
      %p346 = scmp.ne.s32.totalorder %s337, %s338
      %p347 = scmp.eq.s32.totalorder %s45, 0
      %p348 = por %p346, %p347
      %p349 = scmp.ne.s32.totalorder %s337, %s338
      %p350 = scmp.eq.s32.totalorder %s46, 1
      %p351 = por %p349, %p350
      %p353 = scmp.ne.s32.totalorder %s338, %s352
      %p354 = scmp.eq.s32.totalorder %s46, 0
      %p355 = por %p353, %p354
      %s357 = sadd.s32 %s356, 1
      %p360 = scmp.eq.s32.totalorder %s40, 1
      %p361 = scmp.ne.s32.totalorder %s356, %s358
      %p362 = scmp.eq.s32.totalorder %s40, 0
      %p363 = por %p361, %p362
      %p364 = scmp.ne.s32.totalorder %s356, %s358
      %p365 = scmp.eq.s32.totalorder %s45, 1
      %p366 = por %p364, %p365
      %p367 = scmp.ne.s32.totalorder %s358, %s359
      %p368 = scmp.eq.s32.totalorder %s45, 0
      %p369 = por %p367, %p368
      %p370 = scmp.ne.s32.totalorder %s358, %s359
      %p371 = scmp.eq.s32.totalorder %s46, 1
      %p372 = por %p370, %p371
      %p374 = scmp.ne.s32.totalorder %s359, %s373
      %p375 = scmp.eq.s32.totalorder %s46, 0
      %p376 = por %p374, %p375
      %s378 = sadd.s32 %s377, 1
      %p381 = scmp.eq.s32.totalorder %s40, 1
      %p382 = scmp.ne.s32.totalorder %s377, %s379
      %p383 = scmp.eq.s32.totalorder %s40, 0
      %p384 = por %p382, %p383
      %p385 = scmp.ne.s32.totalorder %s377, %s379
      %p386 = scmp.eq.s32.totalorder %s45, 1
      %p387 = por %p385, %p386
      %p388 = scmp.ne.s32.totalorder %s379, %s380
      %p389 = scmp.eq.s32.totalorder %s45, 0
      %p390 = por %p388, %p389
      %p391 = scmp.ne.s32.totalorder %s379, %s380
      %p392 = scmp.eq.s32.totalorder %s46, 1
      %p393 = por %p391, %p392
      %p395 = scmp.ne.s32.totalorder %s380, %s394
      %p396 = scmp.eq.s32.totalorder %s46, 0
      %p397 = por %p395, %p396
      %s399 = sadd.s32 %s398, 1
      %p402 = scmp.eq.s32.totalorder %s40, 1
      %p403 = scmp.ne.s32.totalorder %s398, %s400
      %p404 = scmp.eq.s32.totalorder %s40, 0
      %p405 = por %p403, %p404
      %p406 = scmp.ne.s32.totalorder %s398, %s400
      %p407 = scmp.eq.s32.totalorder %s45, 1
      %p408 = por %p406, %p407
      %p409 = scmp.ne.s32.totalorder %s400, %s401
      %p410 = scmp.eq.s32.totalorder %s45, 0
      %p411 = por %p409, %p410
      %p412 = scmp.ne.s32.totalorder %s400, %s401
      %p413 = scmp.eq.s32.totalorder %s46, 1
      %p414 = por %p412, %p413
      %p416 = scmp.ne.s32.totalorder %s401, %s415
      %p417 = scmp.eq.s32.totalorder %s46, 0
      %p418 = por %p416, %p417
      %s420 = sadd.s32 %s419, 1
      %p423 = scmp.eq.s32.totalorder %s40, 1
      %p424 = scmp.ne.s32.totalorder %s419, %s421
      %p425 = scmp.eq.s32.totalorder %s40, 0
      %p426 = por %p424, %p425
      %p427 = scmp.ne.s32.totalorder %s419, %s421
      %p428 = scmp.eq.s32.totalorder %s45, 1
      %p429 = por %p427, %p428
      %p430 = scmp.ne.s32.totalorder %s421, %s422
      %p431 = scmp.eq.s32.totalorder %s45, 0
      %p432 = por %p430, %p431
      %p433 = scmp.ne.s32.totalorder %s421, %s422
      %p434 = scmp.eq.s32.totalorder %s46, 1
      %p435 = por %p433, %p434
      %p437 = scmp.ne.s32.totalorder %s422, %s436
      %p438 = scmp.eq.s32.totalorder %s46, 0
      %p439 = por %p437, %p438
      %s440 = ssub.s32 %s40, %s47
      %p441 = scmp.eq.s32.totalorder %s440, 0
      %s443 = sadd.s32 %s442, 1
      %s444 = scalar_select %p441, %s442, %s443
      %p447 = pneg %p441
      %p448 = scmp.eq.s32.totalorder %s40, 1
      %p449 = por %p447, %p448
      %p450 = scmp.ne.s32.totalorder %s442, %s445
      %p451 = scmp.eq.s32.totalorder %s40, 0
      %p452 = por %p450, %p451
      %p453 = scmp.ne.s32.totalorder %s442, %s445
      %p454 = scmp.eq.s32.totalorder %s45, 1
      %p455 = por %p453, %p454
      %p456 = scmp.ne.s32.totalorder %s445, %s446
      %p457 = scmp.eq.s32.totalorder %s45, 0
      %p458 = por %p456, %p457
      %p459 = scmp.ne.s32.totalorder %s445, %s446
      %p460 = scmp.eq.s32.totalorder %s46, 1
      %p461 = por %p459, %p460
      %p463 = scmp.ne.s32.totalorder %s446, %s462
      %p464 = scmp.eq.s32.totalorder %s46, 0
      %p465 = por %p463, %p464
      %p466 = scmp.le.s32.totalorder 1, %s40
      %p467 = scmp.lt.s32.totalorder %s40, 3
      %p468 = pnand %p466, %p467
      %p469 = pneg %p468
      // Predicated region
      $region9: #{tpu_custom_call.1} parent=5 // pred_check
        _
      $region10: #{tpu_custom_call.1} parent=5 // pred_check_branch
        %471 = sbr.rel (%p468) target = $region12
      $region11: #{tpu_custom_call.1} parent=5 // pred_region
        %s472 = ssub.s32 %s40, 1
        // Predicated region
        $region13: #{tpu_custom_call.1} parent=11 // pred_check
          %p473 = pneg %p243
        $region14: #{tpu_custom_call.1} parent=11 // pred_check_branch
          %475 = sbr.rel (%p473) target = $region16
        $region15: #{tpu_custom_call.1} parent=11 // pred_region
          %477 = vsyncadd [#allocation12], 0
          %s478 = sshll.u32 %s7, 4
          %s479 = int_to_ptr.hbm [resolvable:$true] %s478
          %s480 = sshll.u32 [#allocation13], 4
          %s481 = int_to_ptr.vmem [resolvable:$true] %s480
          %486 = dma.hbm_to_vmem [thread:$0]  %s479, 1024, %s481, [#allocation12], 64, 64, 4
        $region16: #{tpu_custom_call.1} parent=11 // pred_fallthru
          _
        // Predicated region
        $region17: #{tpu_custom_call.1} parent=11 // pred_check
          %p487 = pneg %p264
        $region18: #{tpu_custom_call.1} parent=11 // pred_check_branch
          %489 = sbr.rel (%p487) target = $region20
        $region19: #{tpu_custom_call.1} parent=11 // pred_region
          %491 = vsyncadd [#allocation15], 0
          %s492 = sshll.u32 %s8, 4
          %s493 = int_to_ptr.hbm [resolvable:$true] %s492
          %s494 = sshll.u32 [#allocation14], 4
          %s495 = int_to_ptr.vmem [resolvable:$true] %s494
          %500 = dma.hbm_to_vmem [thread:$0]  %s493, 64, %s495, [#allocation15], 16, 16, 1
        $region20: #{tpu_custom_call.1} parent=11 // pred_fallthru
          _
        // Predicated region
        $region21: #{tpu_custom_call.1} parent=11 // pred_check
          %p501 = pneg %p285
        $region22: #{tpu_custom_call.1} parent=11 // pred_check_branch
          %503 = sbr.rel (%p501) target = $region24
        $region23: #{tpu_custom_call.1} parent=11 // pred_region
          %505 = vsyncadd [#allocation15], 0
          %s506 = sshll.u32 %s9, 4
          %s507 = int_to_ptr.hbm [resolvable:$true] %s506
          %s508 = sshll.u32 [#allocation16], 4
          %s509 = int_to_ptr.vmem [resolvable:$true] %s508
          %514 = dma.hbm_to_vmem [thread:$0]  %s507, 1024, %s509, [#allocation15], 64, 64, 4
        $region24: #{tpu_custom_call.1} parent=11 // pred_fallthru
          _
        // Predicated region
        $region25: #{tpu_custom_call.1} parent=11 // pred_check
          %p515 = pneg %p306
        $region26: #{tpu_custom_call.1} parent=11 // pred_check_branch
          %517 = sbr.rel (%p515) target = $region28
        $region27: #{tpu_custom_call.1} parent=11 // pred_region
          %519 = vsyncadd [#allocation18], 0
          %s520 = sshll.u32 %s10, 4
          %s521 = int_to_ptr.hbm [resolvable:$true] %s520
          %s522 = sshll.u32 [#allocation17], 4
          %s523 = int_to_ptr.vmem [resolvable:$true] %s522
          %528 = dma.hbm_to_vmem [thread:$0]  %s521, 64, %s523, [#allocation18], 16, 16, 1
        $region28: #{tpu_custom_call.1} parent=11 // pred_fallthru
          _
        // Predicated region
        $region29: #{tpu_custom_call.1} parent=11 // pred_check
          %p529 = pneg %p327
        $region30: #{tpu_custom_call.1} parent=11 // pred_check_branch
          %531 = sbr.rel (%p529) target = $region32
        $region31: #{tpu_custom_call.1} parent=11 // pred_region
          _
        $region32: #{tpu_custom_call.1} parent=11 // pred_fallthru
          _
        // Predicated region
        $region33: #{tpu_custom_call.1} parent=11 // pred_check
          %p532 = pneg %p348
        $region34: #{tpu_custom_call.1} parent=11 // pred_check_branch
          %534 = sbr.rel (%p532) target = $region36
        $region35: #{tpu_custom_call.1} parent=11 // pred_region
          _
        $region36: #{tpu_custom_call.1} parent=11 // pred_fallthru
          _
        // Predicated region
        $region37: #{tpu_custom_call.1} parent=11 // pred_check
          %p535 = pneg %p369
        $region38: #{tpu_custom_call.1} parent=11 // pred_check_branch
          %537 = sbr.rel (%p535) target = $region40
        $region39: #{tpu_custom_call.1} parent=11 // pred_region
          _
        $region40: #{tpu_custom_call.1} parent=11 // pred_fallthru
          _
        // Predicated region
        $region41: #{tpu_custom_call.1} parent=11 // pred_check
          %p538 = pneg %p390
        $region42: #{tpu_custom_call.1} parent=11 // pred_check_branch
          %540 = sbr.rel (%p538) target = $region44
        $region43: #{tpu_custom_call.1} parent=11 // pred_region
          _
        $region44: #{tpu_custom_call.1} parent=11 // pred_fallthru
          _
        // Predicated region
        $region45: #{tpu_custom_call.1} parent=11 // pred_check
          %p541 = pneg %p411
        $region46: #{tpu_custom_call.1} parent=11 // pred_check_branch
          %543 = sbr.rel (%p541) target = $region48
        $region47: #{tpu_custom_call.1} parent=11 // pred_region
          _
        $region48: #{tpu_custom_call.1} parent=11 // pred_fallthru
          _
        // Predicated region
        $region49: #{tpu_custom_call.1} parent=11 // pred_check
          %p544 = pneg %p432
        $region50: #{tpu_custom_call.1} parent=11 // pred_check_branch
          %546 = sbr.rel (%p544) target = $region52
        $region51: #{tpu_custom_call.1} parent=11 // pred_region
          _
        $region52: #{tpu_custom_call.1} parent=11 // pred_fallthru
          _
      $region12: #{tpu_custom_call.1} parent=5 // pred_fallthru
        _
      %p547 = scmp.lt.s32.totalorder %s40, 2
      // Predicated region
      $region53: #{tpu_custom_call.1} parent=5 // pred_check
        %p548 = pneg %p547
      $region54: #{tpu_custom_call.1} parent=5 // pred_check_branch
        %550 = sbr.rel (%p548) target = $region56
      $region55: #{tpu_custom_call.1} parent=5 // pred_region
        // Predicated region
        $region57: #{tpu_custom_call.1} parent=55 // pred_check
          %p551 = pneg %p60
        $region58: #{tpu_custom_call.1} parent=55 // pred_check_branch
          %553 = sbr.rel (%p551) target = $region60
        $region59: #{tpu_custom_call.1} parent=55 // pred_region
          %p554 = scmp.lt.s32.totalorder %s40, 1
          %s555 = scalar_select %p554, %s40, 1
          %s556 = smul.addr %s555, 2
          %s557 = smul.addr %s556, 8
          %s558 = scalar_lea.vmem %s0, %s557
        $region60: #{tpu_custom_call.1} parent=55 // pred_fallthru
          _
        // Predicated region
        $region61: #{tpu_custom_call.1} parent=55 // pred_check
          %p559 = pneg %p86
        $region62: #{tpu_custom_call.1} parent=55 // pred_check_branch
          %561 = sbr.rel (%p559) target = $region64
        $region63: #{tpu_custom_call.1} parent=55 // pred_region
          %s562 = sand.u32 %s76, 1
          %s563 = scalar_lea.sflag [#allocation3], %s562
          %s564 = sand.u32 %s76, 1
          %s565 = smul.addr %s564, 16
          %s566 = scalar_lea.vmem [#allocation2], %s565
          %568 = vsyncadd %s563, 0
          %s569 = smul.addr %s40, 2
          %s570 = smul.addr %s569, 8
          %s571 = scalar_lea.hbm %s1, %s570
          %s572 = sshll.u32 %s571, 4
          %s573 = int_to_ptr.hbm [resolvable:$true] %s572
          %s574 = sshll.u32 %s566, 4
          %s575 = int_to_ptr.vmem [resolvable:$true] %s574
          %580 = dma.hbm_to_vmem [thread:$0]  %s573, 256, %s575, %s563, 128, 128, 8
        $region64: #{tpu_custom_call.1} parent=55 // pred_fallthru
          _
        // Predicated region
        $region65: #{tpu_custom_call.1} parent=55 // pred_check
          %p581 = pneg %p112
        $region66: #{tpu_custom_call.1} parent=55 // pred_check_branch
          %583 = sbr.rel (%p581) target = $region68
        $region67: #{tpu_custom_call.1} parent=55 // pred_region
          %s584 = sand.u32 %s40, 1
          %s585 = scalar_lea.sflag [#allocation6], %s584
          %s586 = sand.u32 %s102, 1
          %s587 = scalar_lea.vmem [#allocation5], %s586
          %589 = vsyncadd %s585, 0
          %s590 = scalar_lea.hbm %s2, %s40
          %s592 = sshll.u32 %s590, 4
          %s593 = int_to_ptr.hbm [resolvable:$true] %s592
          %s594 = sshll.u32 %s587, 4
          %s595 = int_to_ptr.vmem [resolvable:$true] %s594
          %597 = dma.hbm_to_vmem [thread:$0]  %s593, 16, %s595, %s585
        $region68: #{tpu_custom_call.1} parent=55 // pred_fallthru
          _
        // Predicated region
        $region69: #{tpu_custom_call.1} parent=55 // pred_check
          %p598 = pneg %p138
        $region70: #{tpu_custom_call.1} parent=55 // pred_check_branch
          %600 = sbr.rel (%p598) target = $region72
        $region71: #{tpu_custom_call.1} parent=55 // pred_region
          %s601 = sand.u32 %s40, 1
          %s602 = scalar_lea.sflag [#allocation6], %s601
          %s603 = sand.u32 %s128, 1
          %s604 = smul.addr %s603, 16
          %s605 = scalar_lea.vmem [#allocation7], %s604
          %607 = vsyncadd %s602, 0
          %s608 = smul.addr %s40, 2
          %s609 = smul.addr %s608, 8
          %s610 = scalar_lea.hbm %s3, %s609
          %s611 = sshll.u32 %s610, 4
          %s612 = int_to_ptr.hbm [resolvable:$true] %s611
          %s613 = sshll.u32 %s605, 4
          %s614 = int_to_ptr.vmem [resolvable:$true] %s613
          %619 = dma.hbm_to_vmem [thread:$0]  %s612, 256, %s614, %s602, 128, 128, 8
        $region72: #{tpu_custom_call.1} parent=55 // pred_fallthru
          _
        // Predicated region
        $region73: #{tpu_custom_call.1} parent=55 // pred_check
          %p620 = pneg %p164
        $region74: #{tpu_custom_call.1} parent=55 // pred_check_branch
          %622 = sbr.rel (%p620) target = $region76
        $region75: #{tpu_custom_call.1} parent=55 // pred_region
          %s623 = sand.u32 %s40, 1
          %s624 = scalar_lea.sflag [#allocation9], %s623
          %s625 = sand.u32 %s154, 1
          %s626 = scalar_lea.vmem [#allocation8], %s625
          %628 = vsyncadd %s624, 0
          %s629 = scalar_lea.hbm %s4, %s40
          %s631 = sshll.u32 %s629, 4
          %s632 = int_to_ptr.hbm [resolvable:$true] %s631
          %s633 = sshll.u32 %s626, 4
          %s634 = int_to_ptr.vmem [resolvable:$true] %s633
          %636 = dma.hbm_to_vmem [thread:$0]  %s632, 16, %s634, %s624
        $region76: #{tpu_custom_call.1} parent=55 // pred_fallthru
          _
        // Predicated region
        $region77: #{tpu_custom_call.1} parent=55 // pred_check
          %p637 = pneg %p190
        $region78: #{tpu_custom_call.1} parent=55 // pred_check_branch
          %639 = sbr.rel (%p637) target = $region80
        $region79: #{tpu_custom_call.1} parent=55 // pred_region
          %s640 = sand.u32 %s40, 1
          %s641 = scalar_lea.sflag [#allocation9], %s640
          %s642 = sand.u32 %s180, 1
          %s643 = smul.addr %s642, 16
          %s644 = scalar_lea.vmem [#allocation10], %s643
          %646 = vsyncadd %s641, 0
          %s647 = smul.addr %s40, 2
          %s648 = smul.addr %s647, 8
          %s649 = scalar_lea.hbm %s5, %s648
          %s650 = sshll.u32 %s649, 4
          %s651 = int_to_ptr.hbm [resolvable:$true] %s650
          %s652 = sshll.u32 %s644, 4
          %s653 = int_to_ptr.vmem [resolvable:$true] %s652
          %658 = dma.hbm_to_vmem [thread:$0]  %s651, 256, %s653, %s641, 128, 128, 8
        $region80: #{tpu_custom_call.1} parent=55 // pred_fallthru
          _
        // Predicated region
        $region81: #{tpu_custom_call.1} parent=55 // pred_check
          %p659 = pneg %p216
        $region82: #{tpu_custom_call.1} parent=55 // pred_check_branch
          %661 = sbr.rel (%p659) target = $region84
        $region83: #{tpu_custom_call.1} parent=55 // pred_region
          %s662 = sand.u32 %s40, 1
          %s663 = scalar_lea.sflag [#allocation12], %s662
          %s664 = sand.u32 %s206, 1
          %s665 = scalar_lea.vmem [#allocation11], %s664
          %667 = vsyncadd %s663, 0
          %s668 = scalar_lea.hbm %s6, %s40
          %s670 = sshll.u32 %s668, 4
          %s671 = int_to_ptr.hbm [resolvable:$true] %s670
          %s672 = sshll.u32 %s665, 4
          %s673 = int_to_ptr.vmem [resolvable:$true] %s672
          %675 = dma.hbm_to_vmem [thread:$0]  %s671, 16, %s673, %s663
        $region84: #{tpu_custom_call.1} parent=55 // pred_fallthru
          _
      $region56: #{tpu_custom_call.1} parent=5 // pred_fallthru
        _
      %p676 = scmp.le.s32.totalorder 1, %s40
      %p677 = scmp.lt.s32.totalorder %s40, 3
      %p678 = pnand %p676, %p677
      %p679 = pneg %p678
      // Predicated region
      $region85: #{tpu_custom_call.1} parent=5 // pred_check
        _
      $region86: #{tpu_custom_call.1} parent=5 // pred_check_branch
        %681 = sbr.rel (%p678) target = $region88
      $region87: #{tpu_custom_call.1} parent=5 // pred_region
        %s682 = ssub.s32 %s40, 1
        %s683 = sand.u32 %s79, 1
        %s684 = scalar_lea.sflag [#allocation3], %s683
        %s685 = sand.u32 %s79, 1
        %s686 = smul.addr %s685, 16
        %s687 = scalar_lea.vmem [#allocation2], %s686
        // Predicated region
        $region89: #{tpu_custom_call.1} parent=87 // pred_check
          %p688 = pneg %p92
        $region90: #{tpu_custom_call.1} parent=87 // pred_check_branch
          %690 = sbr.rel (%p688) target = $region92
        $region91: #{tpu_custom_call.1} parent=87 // pred_region
          %692 = dma.done %s684, 256
        $region92: #{tpu_custom_call.1} parent=87 // pred_fallthru
          _
        %s693 = sand.u32 %s45, 1
        %s694 = scalar_lea.sflag [#allocation6], %s693
        %s695 = sand.u32 %s105, 1
        %s696 = scalar_lea.vmem [#allocation5], %s695
        // Predicated region
        $region93: #{tpu_custom_call.1} parent=87 // pred_check
          %p697 = pneg %p118
        $region94: #{tpu_custom_call.1} parent=87 // pred_check_branch
          %699 = sbr.rel (%p697) target = $region96
        $region95: #{tpu_custom_call.1} parent=87 // pred_region
          %701 = dma.done %s694, 16
        $region96: #{tpu_custom_call.1} parent=87 // pred_fallthru
          _
        %s702 = sand.u32 %s45, 1
        %s703 = scalar_lea.sflag [#allocation6], %s702
        %s704 = sand.u32 %s131, 1
        %s705 = smul.addr %s704, 16
        %s706 = scalar_lea.vmem [#allocation7], %s705
        // Predicated region
        $region97: #{tpu_custom_call.1} parent=87 // pred_check
          %p707 = pneg %p144
        $region98: #{tpu_custom_call.1} parent=87 // pred_check_branch
          %709 = sbr.rel (%p707) target = $region100
        $region99: #{tpu_custom_call.1} parent=87 // pred_region
          %711 = dma.done %s703, 256
        $region100: #{tpu_custom_call.1} parent=87 // pred_fallthru
          _
        %s712 = sand.u32 %s45, 1
        %s713 = scalar_lea.sflag [#allocation9], %s712
        %s714 = sand.u32 %s157, 1
        %s715 = scalar_lea.vmem [#allocation8], %s714
        // Predicated region
        $region101: #{tpu_custom_call.1} parent=87 // pred_check
          %p716 = pneg %p170
        $region102: #{tpu_custom_call.1} parent=87 // pred_check_branch
          %718 = sbr.rel (%p716) target = $region104
        $region103: #{tpu_custom_call.1} parent=87 // pred_region
          %720 = dma.done %s713, 16
        $region104: #{tpu_custom_call.1} parent=87 // pred_fallthru
          _
        %s721 = sand.u32 %s45, 1
        %s722 = scalar_lea.sflag [#allocation9], %s721
        %s723 = sand.u32 %s183, 1
        %s724 = smul.addr %s723, 16
        %s725 = scalar_lea.vmem [#allocation10], %s724
        // Predicated region
        $region105: #{tpu_custom_call.1} parent=87 // pred_check
          %p726 = pneg %p196
        $region106: #{tpu_custom_call.1} parent=87 // pred_check_branch
          %728 = sbr.rel (%p726) target = $region108
        $region107: #{tpu_custom_call.1} parent=87 // pred_region
          %730 = dma.done %s722, 256
        $region108: #{tpu_custom_call.1} parent=87 // pred_fallthru
          _
        %s731 = sand.u32 %s45, 1
        %s732 = scalar_lea.sflag [#allocation12], %s731
        %s733 = sand.u32 %s209, 1
        %s734 = scalar_lea.vmem [#allocation11], %s733
        // Predicated region
        $region109: #{tpu_custom_call.1} parent=87 // pred_check
          %p735 = pneg %p222
        $region110: #{tpu_custom_call.1} parent=87 // pred_check_branch
          %737 = sbr.rel (%p735) target = $region112
        $region111: #{tpu_custom_call.1} parent=87 // pred_region
          %739 = dma.done %s732, 16
        $region112: #{tpu_custom_call.1} parent=87 // pred_fallthru
          _
        // Predicated region
        $region113: #{tpu_custom_call.1} parent=87 // pred_check
          %p740 = pneg %p243
        $region114: #{tpu_custom_call.1} parent=87 // pred_check_branch
          %742 = sbr.rel (%p740) target = $region116
        $region115: #{tpu_custom_call.1} parent=87 // pred_region
          %744 = dma.done [#allocation12], 1024
        $region116: #{tpu_custom_call.1} parent=87 // pred_fallthru
          _
        // Predicated region
        $region117: #{tpu_custom_call.1} parent=87 // pred_check
          %p745 = pneg %p264
        $region118: #{tpu_custom_call.1} parent=87 // pred_check_branch
          %747 = sbr.rel (%p745) target = $region120
        $region119: #{tpu_custom_call.1} parent=87 // pred_region
          %749 = dma.done [#allocation15], 64
        $region120: #{tpu_custom_call.1} parent=87 // pred_fallthru
          _
        // Predicated region
        $region121: #{tpu_custom_call.1} parent=87 // pred_check
          %p750 = pneg %p285
        $region122: #{tpu_custom_call.1} parent=87 // pred_check_branch
          %752 = sbr.rel (%p750) target = $region124
        $region123: #{tpu_custom_call.1} parent=87 // pred_region
          %754 = dma.done [#allocation15], 1024
        $region124: #{tpu_custom_call.1} parent=87 // pred_fallthru
          _
        // Predicated region
        $region125: #{tpu_custom_call.1} parent=87 // pred_check
          %p755 = pneg %p306
        $region126: #{tpu_custom_call.1} parent=87 // pred_check_branch
          %757 = sbr.rel (%p755) target = $region128
        $region127: #{tpu_custom_call.1} parent=87 // pred_region
          %759 = dma.done [#allocation18], 64
        $region128: #{tpu_custom_call.1} parent=87 // pred_fallthru
          _
        %p760 = scmp.lt.s32.totalorder %s45, 1
        %s761 = scalar_select %p760, %s45, 1
        %s762 = smul.addr %s761, 2
        %s763 = smul.addr %s762, 8
        %s764 = scalar_lea.vmem %s0, %s763
        %p765 = pneg %p66
        %p766 = pneg %p63
        %s767 = sand.u32 %s79, 1
        %s768 = scalar_lea.sflag [#allocation3], %s767
        %s769 = sand.u32 %s79, 1
        %s770 = smul.addr %s769, 16
        %s771 = scalar_lea.vmem [#allocation2], %s770
        %p772 = pneg %p92
        %p773 = pneg %p89
        %s774 = sand.u32 %s45, 1
        %s775 = scalar_lea.sflag [#allocation6], %s774
        %s776 = sand.u32 %s105, 1
        %s777 = scalar_lea.vmem [#allocation5], %s776
        %p778 = pneg %p118
        %p779 = pneg %p115
        %s780 = sand.u32 %s45, 1
        %s781 = scalar_lea.sflag [#allocation6], %s780
        %s782 = sand.u32 %s131, 1
        %s783 = smul.addr %s782, 16
        %s784 = scalar_lea.vmem [#allocation7], %s783
        %p785 = pneg %p144
        %p786 = pneg %p141
        %s787 = sand.u32 %s45, 1
        %s788 = scalar_lea.sflag [#allocation9], %s787
        %s789 = sand.u32 %s157, 1
        %s790 = scalar_lea.vmem [#allocation8], %s789
        %p791 = pneg %p170
        %p792 = pneg %p167
        %s793 = sand.u32 %s45, 1
        %s794 = scalar_lea.sflag [#allocation9], %s793
        %s795 = sand.u32 %s183, 1
        %s796 = smul.addr %s795, 16
        %s797 = scalar_lea.vmem [#allocation10], %s796
        %p798 = pneg %p196
        %p799 = pneg %p193
        %s800 = sand.u32 %s45, 1
        %s801 = scalar_lea.sflag [#allocation12], %s800
        %s802 = sand.u32 %s209, 1
        %s803 = scalar_lea.vmem [#allocation11], %s802
        %p804 = pneg %p222
        %p805 = pneg %p219
        %p806 = pneg %p243
        %p807 = pneg %p240
        %p808 = pneg %p264
        %p809 = pneg %p261
        %p810 = pneg %p285
        %p811 = pneg %p282
        %p812 = pneg %p306
        %p813 = pneg %p303
        %p814 = pneg %p327
        %p815 = pneg %p324
        %p816 = pneg %p348
        %p817 = pneg %p345
        %p818 = pneg %p369
        %p819 = pneg %p366
        %p820 = pneg %p390
        %p821 = pneg %p387
        %p822 = pneg %p411
        %p823 = pneg %p408
        %p824 = pneg %p432
        %p825 = pneg %p429
        %p826 = pneg %p458
        %p827 = pneg %p455
        %s828 = sand.u32 %s445, 1
        %s829 = scalar_lea.sflag [#allocation4], %s828
        %s830 = sand.u32 %s445, 1
        %s831 = smul.addr %s830, 16
        %s832 = scalar_lea.vmem [#allocation19], %s831
        %p833 = scmp.lt.s32.totalorder %s45, 1
        %s834 = scalar_select %p833, %s45, 1
        %s835 = smul.addr %s834, 2
        %s836 = smul.addr %s835, 8
        %s837 = scalar_lea.vmem %s0, %s836
        %v839 = vld [vmem:[%s837] sm:$0xff]
        %v840 = vld [vmem:[%s837 + $0x8] sm:$0xff]
        %v841 = vld [vmem:[%s687] sm:$0xff]
        %v842 = vld [vmem:[%s687 + $0x8] sm:$0xff]
        %v843 = vld [vmem:[%s706] sm:$0xff]
        %v844 = vld [vmem:[%s706 + $0x8] sm:$0xff]
        %v845 = vld [vmem:[%s725] sm:$0xff]
        %v846 = vld [vmem:[%s725 + $0x8] sm:$0xff]
        %v847 = vlaneseq
        %v848 = vshrl.u32 %v847, 7
        %v849 = vadd.s32 %v848, 8
        %v850 = vlaneseq
        %v851 = vand.u32 %v850, 127
        %vm852 = vcmp.ge.s32.totalorder %v848, %v851
        %vm853 = vcmp.ge.s32.totalorder %v849, %v851
        %v854 = vsel %vm852, 0.0, -1e+20
        %v855 = vsel %vm853, 0.0, -1e+20
        %v856 = vld [vmem:[%s696] sm:$0x1]
        %vm857 = vcmp.ne.f32.partialorder %v856, 0.0
        %v858 = vsel %vm857, 1, 0
        %v859 = vperm.slane %v858, 0
        %vm860 = vcmp.eq.s32.totalorder %v859, 1
        %v861 = vsel %vm860, 0.0, -1e+20
        %v862 = vld [vmem:[%s715] sm:$0x1]
        %vm863 = vcmp.ne.f32.partialorder %v862, 0.0
        %v864 = vsel %vm863, 1, 0
        %v865 = vperm.slane %v864, 0
        %vm866 = vcmp.eq.s32.totalorder %v865, 1
        %v867 = vsel %vm866, 0.0, -1e+20
        %v868 = vld [vmem:[%s734] sm:$0x1]
        %vm869 = vcmp.ne.f32.partialorder %v868, 0.0
        %v870 = vsel %vm869, 1, 0
        %v871 = vperm.slane %v870, 0
        %vm872 = vcmp.eq.s32.totalorder %v871, 1
        %v873 = vsel %vm872, 0.0, -1e+20
        %v874 = vld [vmem:[%s13] sm:$0xf]
        %v875 = vld [vmem:[%s13 + $0x4] sm:$0xf]
        %v876 = vld [vmem:[%s13 + $0x8] sm:$0xf]
        %v877 = vld [vmem:[%s13 + $0xc] sm:$0xf]
        %v878 = vld [vmem:[%s14] sm:$0x1]
        %v879 = vld [vmem:[%s15] sm:$0xf]
        %v880 = vld [vmem:[%s15 + $0x4] sm:$0xf]
        %v881 = vld [vmem:[%s15 + $0x8] sm:$0xf]
        %v882 = vld [vmem:[%s15 + $0xc] sm:$0xf]
        %v883 = vld [vmem:[%s15 + $0x10] sm:$0xf]
        %v884 = vld [vmem:[%s15 + $0x14] sm:$0xf]
        %v885 = vld [vmem:[%s15 + $0x18] sm:$0xf]
        %v886 = vld [vmem:[%s15 + $0x1c] sm:$0xf]
        %v887 = vld [vmem:[%s16] sm:$0x1]
        %v888 = vld [vmem:[#allocation13] sm:$0xf]
        %v889 = vld [vmem:[#allocation13 + $0x4] sm:$0xf]
        %v890 = vld [vmem:[#allocation13 + $0x8] sm:$0xf]
        %v891 = vld [vmem:[#allocation13 + $0xc] sm:$0xf]
        %v892 = vld [vmem:[#allocation14] sm:$0x1]
        %v893 = vpack.c.bf16 %v840, %v839
        %v895 = vperm.slane %v892, 0
        %v901 = vunpack.c.l.b16 %v888
        %v902 = vunpack.c.l.b16 %v889
        %v903 = vunpack.c.l.b16 %v890
        %v904 = vunpack.c.l.b16 %v891
        %v905 = vpack.c.b16 %v902, %v901
        %v906 = vpack.c.b16 %v904, %v903
        %vm909 = vcmask 261120
        %v911 = vsel %vm909, %v893, 0
        %913 = vmatpush.bf16.msra.mxu0 0
        %914 = vmatpush.bf16.msra.mxu0 0
        %915 = vmatpush.bf16.msra.mxu0 0
        %916 = vmatpush.bf16.msra.mxu0 0
        %917 = vmatpush.bf16.msra.mxu0 0
        %918 = vmatpush.bf16.msra.mxu0 0
        %919 = vmatpush.bf16.msra.mxu0 %v906
        %920 = vmatpush.bf16.msra.mxu0 %v905
        %921 = vmatmul.bf16.gmra.mxu0 %v911
        %v922 = vpop.f32.mrf.mxu0
        %v923 = vadd.f32 %v895, %v922
        %v924 = vpop.f32.mrf.mxu0
        %v925 = vadd.f32 %v895, %v924
        %926 = vdwg.mxu0
        %v927 = vpack.c.bf16 %v923, %v923
        %v928 = vpack.c.bf16 %v925, %v925
        %v931 = vunpack.c.l.b16 %v927
        %v932 = vunpack.c.l.b16 %v928
        %v933 = vpack.c.b16 %v932, %v931
        %934 = vrot.lane.b32.xlu0 %v933, 96
        %v935 = vpop.permute.xlu0 %934
        %vm936 = vcmask 130048
        %v938 = vsel %vm936, %v933, 0
        %v941 = vsel %vm936, %v935, 0
        %943 = vmatpush.bf16.xpose.msra.mxu0 0
        %944 = vmatpush.bf16.xpose.msra.mxu0 0
        %945 = vmatpush.bf16.xpose.msra.mxu0 0
        %946 = vmatpush.bf16.xpose.msra.mxu0 0
        %947 = vmatpush.bf16.xpose.msra.mxu0 0
        %948 = vmatpush.bf16.xpose.msra.mxu0 0
        %949 = vmatpush.bf16.xpose.msra.mxu0 0
        %950 = vmatpush.bf16.xpose.msra.mxu0 %v941
        %951 = vmatmul.bf16.gmra.mxu0 %v938
        %v952 = vpop.f32.mrf.mxu0
        %v953 = vadd.f32 %v854, %v952
        %v954 = vpop.f32.mrf.mxu0
        %v955 = vadd.f32 %v855, %v954
        %956 = vdwg.mxu0
        %v957 = vsel %vm936, %v953, -inf
        %958 = vmax.xlane.f32.xlu0 %v957
        %v959 = vpop.xlane.xlu0 %958
        %v960 = vsel %vm936, %v955, -inf
        %961 = vmax.xlane.f32.xlu0 %v960
        %v962 = vpop.xlane.xlu0 %961
        %v963 = vsub.f32 %v953, %v959
        %v964 = vsub.f32 %v955, %v962
        %v965 = vmul.f32 %v963, 1.442695
        %v966 = vpow.pop %v965
        %v967 = vmul.f32 %v964, 1.442695
        %v968 = vpow.pop %v967
        %v969 = vsel %vm936, %v966, 0.0
        %970 = vadd.xlane.f32.xlu0 %v969
        %v971 = vpop.xlane.xlu0 %970
        %v972 = vsel %vm936, %v968, 0.0
        %973 = vadd.xlane.f32.xlu0 %v972
        %v974 = vpop.xlane.xlu0 %973
        %v975 = vpack.c.bf16 %v966, %v966
        %v976 = vpack.c.bf16 %v968, %v968
        %v979 = vunpack.c.l.b16 %v975
        %v980 = vunpack.c.l.b16 %v976
        %v981 = vpack.c.b16 %v980, %v979
        %982 = vrot.lane.b32.xlu0 %v933, 64
        %v983 = vpop.permute.xlu0 %982
        %v986 = vsel %vm936, %v981, 0
        %988 = vmatpush.bf16.msra.mxu0 0
        %989 = vmatpush.bf16.msra.mxu0 0
        %990 = vmatpush.bf16.msra.mxu0 0
        %991 = vmatpush.bf16.msra.mxu0 0
        %992 = vmatpush.bf16.msra.mxu0 0
        %993 = vmatpush.bf16.msra.mxu0 0
        %994 = vmatpush.bf16.msra.mxu0 0
        %995 = vmatpush.bf16.msra.mxu0 %v983
        %996 = vmatmul.bf16.gmra.mxu0 %v986
        %v997 = vpop.f32.mrf.mxu0
        %v998 = vadd.f32 0.0, %v997
        %v999 = vpop.f32.mrf.mxu0
        %v1000 = vadd.f32 0.0, %v999
        %1001 = vdwg.mxu0
        %v1002 = vrcp.pop %v971
        %v1003 = vrcp.pop %v974
        %v1004 = vmul.f32 %v998, %v1002
        %v1005 = vmul.f32 %v1000, %v1003
        %v1006 = vpack.c.bf16 %v1005, %v1004
        %v1007 = vld [vmem:[#allocation16] sm:$0xf]
        %v1008 = vld [vmem:[#allocation16 + $0x4] sm:$0xf]
        %1009 = vrot.lane.b32.xlu0 %v933, 112
        %v1010 = vpop.permute.xlu0 %1009
        %1011 = vrot.lane.b32.xlu0 %v933, 80
        %v1012 = vpop.permute.xlu0 %1011
        %v1014 = vsel %vm936, %v1010, 0
        %v1017 = vsel %vm936, %v1012, 0
        %1019 = vmatpush.bf16.xpose.msra.mxu0 0
        %1020 = vmatpush.bf16.xpose.msra.mxu0 0
        %1021 = vmatpush.bf16.xpose.msra.mxu0 0
        %1022 = vmatpush.bf16.xpose.msra.mxu0 0
        %1023 = vmatpush.bf16.xpose.msra.mxu0 0
        %1024 = vmatpush.bf16.xpose.msra.mxu0 0
        %1025 = vmatpush.bf16.xpose.msra.mxu0 0
        %1026 = vmatpush.bf16.xpose.msra.mxu0 %v1017
        %1027 = vmatmul.bf16.gmra.mxu0 %v1014
        %v1028 = vpop.f32.mrf.mxu0
        %v1029 = vadd.f32 %v854, %v1028
        %v1030 = vpop.f32.mrf.mxu0
        %v1031 = vadd.f32 %v855, %v1030
        %1032 = vdwg.mxu0
        %v1033 = vsel %vm936, %v1029, -inf
        %1034 = vmax.xlane.f32.xlu0 %v1033
        %v1035 = vpop.xlane.xlu0 %1034
        %v1036 = vsel %vm936, %v1031, -inf
        %1037 = vmax.xlane.f32.xlu0 %v1036
        %v1038 = vpop.xlane.xlu0 %1037
        %v1039 = vsub.f32 %v1029, %v1035
        %v1040 = vsub.f32 %v1031, %v1038
        %v1041 = vmul.f32 %v1039, 1.442695
        %v1042 = vpow.pop %v1041
        %v1043 = vmul.f32 %v1040, 1.442695
        %v1044 = vpow.pop %v1043
        %v1045 = vsel %vm936, %v1042, 0.0
        %1046 = vadd.xlane.f32.xlu0 %v1045
        %v1047 = vpop.xlane.xlu0 %1046
        %v1048 = vsel %vm936, %v1044, 0.0
        %1049 = vadd.xlane.f32.xlu0 %v1048
        %v1050 = vpop.xlane.xlu0 %1049
        %v1051 = vpack.c.bf16 %v1042, %v1042
        %v1052 = vpack.c.bf16 %v1044, %v1044
        %v1055 = vunpack.c.l.b16 %v1051
        %v1056 = vunpack.c.l.b16 %v1052
        %v1057 = vpack.c.b16 %v1056, %v1055
        %1058 = vrot.lane.b32.xlu0 %v933, 48
        %v1059 = vpop.permute.xlu0 %1058
        %v1062 = vsel %vm936, %v1057, 0
        %1064 = vmatpush.bf16.msra.mxu0 0
        %1065 = vmatpush.bf16.msra.mxu0 0
        %1066 = vmatpush.bf16.msra.mxu0 0
        %1067 = vmatpush.bf16.msra.mxu0 0
        %1068 = vmatpush.bf16.msra.mxu0 0
        %1069 = vmatpush.bf16.msra.mxu0 0
        %1070 = vmatpush.bf16.msra.mxu0 0
        %1071 = vmatpush.bf16.msra.mxu0 %v1059
        %1072 = vmatmul.bf16.gmra.mxu0 %v1062
        %v1073 = vpop.f32.mrf.mxu0
        %v1074 = vadd.f32 0.0, %v1073
        %v1075 = vpop.f32.mrf.mxu0
        %v1076 = vadd.f32 0.0, %v1075
        %1077 = vdwg.mxu0
        %v1078 = vrcp.pop %v1047
        %v1079 = vrcp.pop %v1050
        %v1080 = vmul.f32 %v1074, %v1078
        %v1081 = vmul.f32 %v1076, %v1079
        %v1082 = vpack.c.bf16 %v1081, %v1080
        %s1083 = scalar_lea.vmem [#allocation16], 8
        %v1084 = vld [vmem:[%s1083] sm:$0xf]
        %v1085 = vld [vmem:[%s1083 + $0x4] sm:$0xf]
        %v1088 = vunpack.c.l.b16 %v1084
        %v1089 = vunpack.c.l.b16 %v1085
        %v1090 = vpack.c.b16 %v1089, %v1088
        %v1093 = vsel %vm936, %v1082, 0
        %1095 = vmatpush.bf16.msra.mxu0 0
        %1096 = vmatpush.bf16.msra.mxu0 0
        %1097 = vmatpush.bf16.msra.mxu0 0
        %1098 = vmatpush.bf16.msra.mxu0 0
        %1099 = vmatpush.bf16.msra.mxu0 0
        %1100 = vmatpush.bf16.msra.mxu0 0
        %1101 = vmatpush.bf16.msra.mxu0 0
        %1102 = vmatpush.bf16.msra.mxu0 %v1090
        %1103 = vmatmul.bf16.gmra.mxu0 %v1093
        %v1104 = vpop.f32.mrf.mxu0
        %v1105 = vadd.f32 0.0, %v1104
        %v1106 = vpop.f32.mrf.mxu0
        %v1107 = vadd.f32 0.0, %v1106
        %1108 = vdwg.mxu0
        %v1111 = vunpack.c.l.b16 %v1007
        %v1112 = vunpack.c.l.b16 %v1008
        %v1113 = vpack.c.b16 %v1112, %v1111
        %v1116 = vsel %vm936, %v1006, 0
        %1118 = vmatpush.bf16.msra.mxu0 0
        %1119 = vmatpush.bf16.msra.mxu0 0
        %1120 = vmatpush.bf16.msra.mxu0 0
        %1121 = vmatpush.bf16.msra.mxu0 0
        %1122 = vmatpush.bf16.msra.mxu0 0
        %1123 = vmatpush.bf16.msra.mxu0 0
        %1124 = vmatpush.bf16.msra.mxu0 0
        %1125 = vmatpush.bf16.msra.mxu0 %v1113
        %1126 = vmatmul.bf16.gmra.mxu0 %v1116
        %v1127 = vpop.f32.mrf.mxu0
        %v1128 = vadd.f32 %v1105, %v1127
        %v1129 = vpop.f32.mrf.mxu0
        %v1130 = vadd.f32 %v1107, %v1129
        %1131 = vdwg.mxu0
        %v1132 = vld [vmem:[#allocation17] sm:$0x1]
        %v1134 = vperm.slane %v1132, 0
        %v1136 = vadd.f32 %v1128, %v1134
        %v1137 = vadd.f32 %v1130, %v1134
        %v1138 = vadd.f32 %v839, %v1136
        %v1139 = vadd.f32 %v840, %v1137
        %v1140 = vld [vmem:[%s11] sm:$0x1]
        %v1141 = vld [vmem:[%s12] sm:$0x1]
        %v1142 = vsel %vm909, %v1138, 0.0
        %1143 = vadd.xlane.f32.xlu0 %v1142
        %v1144 = vpop.xlane.xlu0 %1143
        %v1145 = vsel %vm909, %v1139, 0.0
        %1146 = vadd.xlane.f32.xlu0 %v1145
        %v1147 = vpop.xlane.xlu0 %1146
        %v1148 = vrcp.pop 32.0
        %v1149 = vmul.f32 32.0, %v1148
        %v1150 = vsub.f32 1.0, %v1149
        %v1151 = vmul.f32 %v1148, %v1150
        %v1152 = vadd.f32 %v1148, %v1151
        %vm1153 = vweird.f32 %v1148
        %v1154 = vsel %vm1153, %v1148, %v1152
        %v1155 = vmul.f32 %v1144, %v1154
        %v1156 = vmul.f32 %v1147, %v1154
        %v1157 = vsub.f32 %v1138, %v1155
        %v1158 = vsub.f32 %v1139, %v1156
        %v1159 = vmul.f32 %v1157, %v1157
        %v1160 = vmul.f32 %v1158, %v1158
        %v1161 = vsel %vm909, %v1159, 0.0
        %1162 = vadd.xlane.f32.xlu0 %v1161
        %v1163 = vpop.xlane.xlu0 %1162
        %v1164 = vsel %vm909, %v1160, 0.0
        %1165 = vadd.xlane.f32.xlu0 %v1164
        %v1166 = vpop.xlane.xlu0 %1165
        %v1167 = vmul.f32 %v1163, %v1154
        %v1168 = vmul.f32 %v1166, %v1154
        %v1169 = vadd.f32 %v1167, 1e-05
        %v1170 = vadd.f32 %v1168, 1e-05
        %v1171 = vrsqrt.pop %v1169
        %v1172 = vmul.f32 %v1171, %v1169
        %v1173 = vmul.f32 %v1172, %v1171
        %v1174 = vmul.f32 0.5, %v1173
        %v1175 = vsub.f32 1.5, %v1174
        %v1176 = vmul.f32 %v1171, %v1175
        %vm1177 = vweird.f32 %v1169
        %vm1178 = vweird.f32 %v1171
        %vm1179 = vmor %vm1177, %vm1178
        %v1180 = vsel %vm1179, %v1171, %v1176
        %v1181 = vrsqrt.pop %v1170
        %v1182 = vmul.f32 %v1181, %v1170
        %v1183 = vmul.f32 %v1182, %v1181
        %v1184 = vmul.f32 0.5, %v1183
        %v1185 = vsub.f32 1.5, %v1184
        %v1186 = vmul.f32 %v1181, %v1185
        %vm1187 = vweird.f32 %v1170
        %vm1188 = vweird.f32 %v1181
        %vm1189 = vmor %vm1187, %vm1188
        %v1190 = vsel %vm1189, %v1181, %v1186
        %v1191 = vmul.f32 %v1157, %v1180
        %v1192 = vmul.f32 %v1158, %v1190
        %v1194 = vperm.slane %v1140, 0
        %v1196 = vmul.f32 %v1191, %v1194
        %v1197 = vmul.f32 %v1192, %v1194
        %v1199 = vperm.slane %v1141, 0
        %v1201 = vadd.f32 %v1196, %v1199
        %v1202 = vadd.f32 %v1197, %v1199
        %s1203 = scalar_lea.vmem [#allocation13], 16
        %v1204 = vld [vmem:[%s1203] sm:$0xf]
        %v1205 = vld [vmem:[%s1203 + $0x4] sm:$0xf]
        %v1206 = vld [vmem:[%s1203 + $0x8] sm:$0xf]
        %v1207 = vld [vmem:[%s1203 + $0xc] sm:$0xf]
        %s1208 = scalar_lea.vmem [#allocation14], 1
        %v1209 = vld [vmem:[%s1208] sm:$0x1]
        %v1210 = vpack.c.bf16 %v1202, %v1201
        %v1212 = vperm.slane %v1209, 0
        %v1218 = vunpack.c.l.b16 %v1204
        %v1219 = vunpack.c.l.b16 %v1205
        %v1220 = vunpack.c.l.b16 %v1206
        %v1221 = vunpack.c.l.b16 %v1207
        %v1222 = vpack.c.b16 %v1219, %v1218
        %v1223 = vpack.c.b16 %v1221, %v1220
        %v1227 = vsel %vm909, %v1210, 0
        %1229 = vmatpush.bf16.msra.mxu0 0
        %1230 = vmatpush.bf16.msra.mxu0 0
        %1231 = vmatpush.bf16.msra.mxu0 0
        %1232 = vmatpush.bf16.msra.mxu0 0
        %1233 = vmatpush.bf16.msra.mxu0 0
        %1234 = vmatpush.bf16.msra.mxu0 0
        %1235 = vmatpush.bf16.msra.mxu0 %v1223
        %1236 = vmatpush.bf16.msra.mxu0 %v1222
        %1237 = vmatmul.bf16.gmra.mxu0 %v1227
        %v1238 = vpop.f32.mrf.mxu0
        %v1239 = vadd.f32 %v1212, %v1238
        %v1240 = vpop.f32.mrf.mxu0
        %v1241 = vadd.f32 %v1212, %v1240
        %1242 = vdwg.mxu0
        %v1243 = vpack.c.bf16 %v846, %v845
        %1244 = vrot.lane.b32.xlu0 %v1222, 96
        %v1245 = vpop.permute.xlu0 %1244
        %1246 = vrot.lane.b32.xlu0 %v1223, 96
        %v1247 = vpop.permute.xlu0 %1246
        %1250 = vrot.lane.b32.xlu0 %v1212, 96
        %v1251 = vpop.permute.xlu0 %1250
        %v1254 = vsel %vm909, %v1243, 0
        %1256 = vmatpush.bf16.msra.mxu0 0
        %1257 = vmatpush.bf16.msra.mxu0 0
        %1258 = vmatpush.bf16.msra.mxu0 0
        %1259 = vmatpush.bf16.msra.mxu0 0
        %1260 = vmatpush.bf16.msra.mxu0 0
        %1261 = vmatpush.bf16.msra.mxu0 0
        %1262 = vmatpush.bf16.msra.mxu0 %v1247
        %1263 = vmatpush.bf16.msra.mxu0 %v1245
        %1264 = vmatmul.bf16.gmra.mxu0 %v1254
        %v1265 = vpop.f32.mrf.mxu0
        %v1266 = vadd.f32 %v1251, %v1265
        %v1267 = vpop.f32.mrf.mxu0
        %v1268 = vadd.f32 %v1251, %v1267
        %1269 = vdwg.mxu0
        %v1270 = vpack.c.bf16 %v1239, %v1239
        %v1271 = vpack.c.bf16 %v1241, %v1241
        %v1272 = vpack.c.bf16 %v1266, %v1266
        %v1273 = vpack.c.bf16 %v1268, %v1268
        %v1276 = vunpack.c.l.b16 %v1270
        %v1277 = vunpack.c.l.b16 %v1271
        %v1278 = vpack.c.b16 %v1277, %v1276
        %v1281 = vunpack.c.l.b16 %v1272
        %v1282 = vunpack.c.l.b16 %v1273
        %v1283 = vpack.c.b16 %v1282, %v1281
        %v1285 = vsel %vm936, %v1278, 0
        %v1288 = vsel %vm936, %v1283, 0
        %1290 = vmatpush.bf16.xpose.msra.mxu0 0
        %1291 = vmatpush.bf16.xpose.msra.mxu0 0
        %1292 = vmatpush.bf16.xpose.msra.mxu0 0
        %1293 = vmatpush.bf16.xpose.msra.mxu0 0
        %1294 = vmatpush.bf16.xpose.msra.mxu0 0
        %1295 = vmatpush.bf16.xpose.msra.mxu0 0
        %1296 = vmatpush.bf16.xpose.msra.mxu0 0
        %1297 = vmatpush.bf16.xpose.msra.mxu0 %v1288
        %1298 = vmatmul.bf16.gmra.mxu0 %v1285
        %v1299 = vpop.f32.mrf.mxu0
        %v1300 = vadd.f32 %v873, %v1299
        %v1301 = vpop.f32.mrf.mxu0
        %v1302 = vadd.f32 %v873, %v1301
        %1303 = vdwg.mxu0
        %v1304 = vsel %vm936, %v1300, -inf
        %1305 = vmax.xlane.f32.xlu0 %v1304
        %v1306 = vpop.xlane.xlu0 %1305
        %v1307 = vsel %vm936, %v1302, -inf
        %1308 = vmax.xlane.f32.xlu0 %v1307
        %v1309 = vpop.xlane.xlu0 %1308
        %v1310 = vsub.f32 %v1300, %v1306
        %v1311 = vsub.f32 %v1302, %v1309
        %v1312 = vmul.f32 %v1310, 1.442695
        %v1313 = vpow.pop %v1312
        %v1314 = vmul.f32 %v1311, 1.442695
        %v1315 = vpow.pop %v1314
        %v1316 = vsel %vm936, %v1313, 0.0
        %1317 = vadd.xlane.f32.xlu0 %v1316
        %v1318 = vpop.xlane.xlu0 %1317
        %v1319 = vsel %vm936, %v1315, 0.0
        %1320 = vadd.xlane.f32.xlu0 %v1319
        %v1321 = vpop.xlane.xlu0 %1320
        %v1322 = vpack.c.bf16 %v1313, %v1313
        %v1323 = vpack.c.bf16 %v1315, %v1315
        %v1326 = vunpack.c.l.b16 %v1322
        %v1327 = vunpack.c.l.b16 %v1323
        %v1328 = vpack.c.b16 %v1327, %v1326
        %1329 = vrot.lane.b32.xlu0 %v1283, 96
        %v1330 = vpop.permute.xlu0 %1329
        %v1333 = vsel %vm936, %v1328, 0
        %1335 = vmatpush.bf16.msra.mxu0 0
        %1336 = vmatpush.bf16.msra.mxu0 0
        %1337 = vmatpush.bf16.msra.mxu0 0
        %1338 = vmatpush.bf16.msra.mxu0 0
        %1339 = vmatpush.bf16.msra.mxu0 0
        %1340 = vmatpush.bf16.msra.mxu0 0
        %1341 = vmatpush.bf16.msra.mxu0 0
        %1342 = vmatpush.bf16.msra.mxu0 %v1330
        %1343 = vmatmul.bf16.gmra.mxu0 %v1333
        %v1344 = vpop.f32.mrf.mxu0
        %v1345 = vadd.f32 0.0, %v1344
        %v1346 = vpop.f32.mrf.mxu0
        %v1347 = vadd.f32 0.0, %v1346
        %1348 = vdwg.mxu0
        %v1349 = vrcp.pop %v1318
        %v1350 = vrcp.pop %v1321
        %v1351 = vmul.f32 %v1345, %v1349
        %v1352 = vmul.f32 %v1347, %v1350
        %v1353 = vpack.c.bf16 %v1352, %v1351
        %s1354 = scalar_lea.vmem [#allocation16], 16
        %v1355 = vld [vmem:[%s1354] sm:$0xf]
        %v1356 = vld [vmem:[%s1354 + $0x4] sm:$0xf]
        %1357 = vrot.lane.b32.xlu0 %v1278, 112
        %v1358 = vpop.permute.xlu0 %1357
        %1359 = vrot.lane.b32.xlu0 %v1283, 112
        %v1360 = vpop.permute.xlu0 %1359
        %v1362 = vsel %vm936, %v1358, 0
        %v1365 = vsel %vm936, %v1360, 0
        %1367 = vmatpush.bf16.xpose.msra.mxu0 0
        %1368 = vmatpush.bf16.xpose.msra.mxu0 0
        %1369 = vmatpush.bf16.xpose.msra.mxu0 0
        %1370 = vmatpush.bf16.xpose.msra.mxu0 0
        %1371 = vmatpush.bf16.xpose.msra.mxu0 0
        %1372 = vmatpush.bf16.xpose.msra.mxu0 0
        %1373 = vmatpush.bf16.xpose.msra.mxu0 0
        %1374 = vmatpush.bf16.xpose.msra.mxu0 %v1365
        %1375 = vmatmul.bf16.gmra.mxu0 %v1362
        %v1376 = vpop.f32.mrf.mxu0
        %v1377 = vadd.f32 %v873, %v1376
        %v1378 = vpop.f32.mrf.mxu0
        %v1379 = vadd.f32 %v873, %v1378
        %1380 = vdwg.mxu0
        %v1381 = vsel %vm936, %v1377, -inf
        %1382 = vmax.xlane.f32.xlu0 %v1381
        %v1383 = vpop.xlane.xlu0 %1382
        %v1384 = vsel %vm936, %v1379, -inf
        %1385 = vmax.xlane.f32.xlu0 %v1384
        %v1386 = vpop.xlane.xlu0 %1385
        %v1387 = vsub.f32 %v1377, %v1383
        %v1388 = vsub.f32 %v1379, %v1386
        %v1389 = vmul.f32 %v1387, 1.442695
        %v1390 = vpow.pop %v1389
        %v1391 = vmul.f32 %v1388, 1.442695
        %v1392 = vpow.pop %v1391
        %v1393 = vsel %vm936, %v1390, 0.0
        %1394 = vadd.xlane.f32.xlu0 %v1393
        %v1395 = vpop.xlane.xlu0 %1394
        %v1396 = vsel %vm936, %v1392, 0.0
        %1397 = vadd.xlane.f32.xlu0 %v1396
        %v1398 = vpop.xlane.xlu0 %1397
        %v1399 = vpack.c.bf16 %v1390, %v1390
        %v1400 = vpack.c.bf16 %v1392, %v1392
        %v1403 = vunpack.c.l.b16 %v1399
        %v1404 = vunpack.c.l.b16 %v1400
        %v1405 = vpack.c.b16 %v1404, %v1403
        %1406 = vrot.lane.b32.xlu0 %v1283, 80
        %v1407 = vpop.permute.xlu0 %1406
        %v1410 = vsel %vm936, %v1405, 0
        %1412 = vmatpush.bf16.msra.mxu0 0
        %1413 = vmatpush.bf16.msra.mxu0 0
        %1414 = vmatpush.bf16.msra.mxu0 0
        %1415 = vmatpush.bf16.msra.mxu0 0
        %1416 = vmatpush.bf16.msra.mxu0 0
        %1417 = vmatpush.bf16.msra.mxu0 0
        %1418 = vmatpush.bf16.msra.mxu0 0
        %1419 = vmatpush.bf16.msra.mxu0 %v1407
        %1420 = vmatmul.bf16.gmra.mxu0 %v1410
        %v1421 = vpop.f32.mrf.mxu0
        %v1422 = vadd.f32 0.0, %v1421
        %v1423 = vpop.f32.mrf.mxu0
        %v1424 = vadd.f32 0.0, %v1423
        %1425 = vdwg.mxu0
        %v1426 = vrcp.pop %v1395
        %v1427 = vrcp.pop %v1398
        %v1428 = vmul.f32 %v1422, %v1426
        %v1429 = vmul.f32 %v1424, %v1427
        %v1430 = vpack.c.bf16 %v1429, %v1428
        %s1431 = scalar_lea.vmem [#allocation16], 24
        %v1432 = vld [vmem:[%s1431] sm:$0xf]
        %v1433 = vld [vmem:[%s1431 + $0x4] sm:$0xf]
        %v1436 = vunpack.c.l.b16 %v1432
        %v1437 = vunpack.c.l.b16 %v1433
        %v1438 = vpack.c.b16 %v1437, %v1436
        %v1441 = vsel %vm936, %v1430, 0
        %1443 = vmatpush.bf16.msra.mxu0 0
        %1444 = vmatpush.bf16.msra.mxu0 0
        %1445 = vmatpush.bf16.msra.mxu0 0
        %1446 = vmatpush.bf16.msra.mxu0 0
        %1447 = vmatpush.bf16.msra.mxu0 0
        %1448 = vmatpush.bf16.msra.mxu0 0
        %1449 = vmatpush.bf16.msra.mxu0 0
        %1450 = vmatpush.bf16.msra.mxu0 %v1438
        %1451 = vmatmul.bf16.gmra.mxu0 %v1441
        %v1452 = vpop.f32.mrf.mxu0
        %v1453 = vadd.f32 0.0, %v1452
        %v1454 = vpop.f32.mrf.mxu0
        %v1455 = vadd.f32 0.0, %v1454
        %1456 = vdwg.mxu0
        %v1459 = vunpack.c.l.b16 %v1355
        %v1460 = vunpack.c.l.b16 %v1356
        %v1461 = vpack.c.b16 %v1460, %v1459
        %v1464 = vsel %vm936, %v1353, 0
        %1466 = vmatpush.bf16.msra.mxu0 0
        %1467 = vmatpush.bf16.msra.mxu0 0
        %1468 = vmatpush.bf16.msra.mxu0 0
        %1469 = vmatpush.bf16.msra.mxu0 0
        %1470 = vmatpush.bf16.msra.mxu0 0
        %1471 = vmatpush.bf16.msra.mxu0 0
        %1472 = vmatpush.bf16.msra.mxu0 0
        %1473 = vmatpush.bf16.msra.mxu0 %v1461
        %1474 = vmatmul.bf16.gmra.mxu0 %v1464
        %v1475 = vpop.f32.mrf.mxu0
        %v1476 = vadd.f32 %v1453, %v1475
        %v1477 = vpop.f32.mrf.mxu0
        %v1478 = vadd.f32 %v1455, %v1477
        %1479 = vdwg.mxu0
        %s1480 = scalar_lea.vmem [#allocation17], 1
        %v1481 = vld [vmem:[%s1480] sm:$0x1]
        %v1483 = vperm.slane %v1481, 0
        %v1485 = vadd.f32 %v1476, %v1483
        %v1486 = vadd.f32 %v1478, %v1483
        %v1487 = vadd.f32 %v1201, %v1485
        %v1488 = vadd.f32 %v1202, %v1486
        %s1489 = scalar_lea.vmem %s11, 1
        %v1490 = vld [vmem:[%s1489] sm:$0x1]
        %s1491 = scalar_lea.vmem %s12, 1
        %v1492 = vld [vmem:[%s1491] sm:$0x1]
        %v1493 = vsel %vm909, %v1487, 0.0
        %1494 = vadd.xlane.f32.xlu0 %v1493
        %v1495 = vpop.xlane.xlu0 %1494
        %v1496 = vsel %vm909, %v1488, 0.0
        %1497 = vadd.xlane.f32.xlu0 %v1496
        %v1498 = vpop.xlane.xlu0 %1497
        %v1499 = vmul.f32 %v1495, %v1154
        %v1500 = vmul.f32 %v1498, %v1154
        %v1501 = vsub.f32 %v1487, %v1499
        %v1502 = vsub.f32 %v1488, %v1500
        %v1503 = vmul.f32 %v1501, %v1501
        %v1504 = vmul.f32 %v1502, %v1502
        %v1505 = vsel %vm909, %v1503, 0.0
        %1506 = vadd.xlane.f32.xlu0 %v1505
        %v1507 = vpop.xlane.xlu0 %1506
        %v1508 = vsel %vm909, %v1504, 0.0
        %1509 = vadd.xlane.f32.xlu0 %v1508
        %v1510 = vpop.xlane.xlu0 %1509
        %v1511 = vmul.f32 %v1507, %v1154
        %v1512 = vmul.f32 %v1510, %v1154
        %v1513 = vadd.f32 %v1511, 1e-05
        %v1514 = vadd.f32 %v1512, 1e-05
        %v1515 = vrsqrt.pop %v1513
        %v1516 = vmul.f32 %v1515, %v1513
        %v1517 = vmul.f32 %v1516, %v1515
        %v1518 = vmul.f32 0.5, %v1517
        %v1519 = vsub.f32 1.5, %v1518
        %v1520 = vmul.f32 %v1515, %v1519
        %vm1521 = vweird.f32 %v1513
        %vm1522 = vweird.f32 %v1515
        %vm1523 = vmor %vm1521, %vm1522
        %v1524 = vsel %vm1523, %v1515, %v1520
        %v1525 = vrsqrt.pop %v1514
        %v1526 = vmul.f32 %v1525, %v1514
        %v1527 = vmul.f32 %v1526, %v1525
        %v1528 = vmul.f32 0.5, %v1527
        %v1529 = vsub.f32 1.5, %v1528
        %v1530 = vmul.f32 %v1525, %v1529
        %vm1531 = vweird.f32 %v1514
        %vm1532 = vweird.f32 %v1525
        %vm1533 = vmor %vm1531, %vm1532
        %v1534 = vsel %vm1533, %v1525, %v1530
        %v1535 = vmul.f32 %v1501, %v1524
        %v1536 = vmul.f32 %v1502, %v1534
        %v1538 = vperm.slane %v1490, 0
        %v1540 = vmul.f32 %v1535, %v1538
        %v1541 = vmul.f32 %v1536, %v1538
        %v1543 = vperm.slane %v1492, 0
        %v1545 = vadd.f32 %v1540, %v1543
        %v1546 = vadd.f32 %v1541, %v1543
        %s1547 = scalar_lea.vmem [#allocation13], 32
        %v1548 = vld [vmem:[%s1547] sm:$0xf]
        %v1549 = vld [vmem:[%s1547 + $0x4] sm:$0xf]
        %v1550 = vld [vmem:[%s1547 + $0x8] sm:$0xf]
        %v1551 = vld [vmem:[%s1547 + $0xc] sm:$0xf]
        %s1552 = scalar_lea.vmem [#allocation14], 2
        %v1553 = vld [vmem:[%s1552] sm:$0x1]
        %v1554 = vpack.c.bf16 %v1546, %v1545
        %v1556 = vperm.slane %v1553, 0
        %v1562 = vunpack.c.l.b16 %v1548
        %v1563 = vunpack.c.l.b16 %v1549
        %v1564 = vunpack.c.l.b16 %v1550
        %v1565 = vunpack.c.l.b16 %v1551
        %v1566 = vpack.c.b16 %v1563, %v1562
        %v1567 = vpack.c.b16 %v1565, %v1564
        %v1571 = vsel %vm909, %v1554, 0
        %1573 = vmatpush.bf16.msra.mxu0 0
        %1574 = vmatpush.bf16.msra.mxu0 0
        %1575 = vmatpush.bf16.msra.mxu0 0
        %1576 = vmatpush.bf16.msra.mxu0 0
        %1577 = vmatpush.bf16.msra.mxu0 0
        %1578 = vmatpush.bf16.msra.mxu0 0
        %1579 = vmatpush.bf16.msra.mxu0 %v1567
        %1580 = vmatpush.bf16.msra.mxu0 %v1566
        %1581 = vmatmul.bf16.gmra.mxu0 %v1571
        %v1582 = vpop.f32.mrf.mxu0
        %v1583 = vadd.f32 %v1556, %v1582
        %v1584 = vpop.f32.mrf.mxu0
        %v1585 = vadd.f32 %v1556, %v1584
        %1586 = vdwg.mxu0
        %v1587 = vpack.c.bf16 %v844, %v843
        %1588 = vrot.lane.b32.xlu0 %v1566, 96
        %v1589 = vpop.permute.xlu0 %1588
        %1590 = vrot.lane.b32.xlu0 %v1567, 96
        %v1591 = vpop.permute.xlu0 %1590
        %1594 = vrot.lane.b32.xlu0 %v1556, 96
        %v1595 = vpop.permute.xlu0 %1594
        %v1598 = vsel %vm909, %v1587, 0
        %1600 = vmatpush.bf16.msra.mxu0 0
        %1601 = vmatpush.bf16.msra.mxu0 0
        %1602 = vmatpush.bf16.msra.mxu0 0
        %1603 = vmatpush.bf16.msra.mxu0 0
        %1604 = vmatpush.bf16.msra.mxu0 0
        %1605 = vmatpush.bf16.msra.mxu0 0
        %1606 = vmatpush.bf16.msra.mxu0 %v1591
        %1607 = vmatpush.bf16.msra.mxu0 %v1589
        %1608 = vmatmul.bf16.gmra.mxu0 %v1598
        %v1609 = vpop.f32.mrf.mxu0
        %v1610 = vadd.f32 %v1595, %v1609
        %v1611 = vpop.f32.mrf.mxu0
        %v1612 = vadd.f32 %v1595, %v1611
        %1613 = vdwg.mxu0
        %v1614 = vpack.c.bf16 %v1583, %v1583
        %v1615 = vpack.c.bf16 %v1585, %v1585
        %v1616 = vpack.c.bf16 %v1610, %v1610
        %v1617 = vpack.c.bf16 %v1612, %v1612
        %v1620 = vunpack.c.l.b16 %v1614
        %v1621 = vunpack.c.l.b16 %v1615
        %v1622 = vpack.c.b16 %v1621, %v1620
        %v1625 = vunpack.c.l.b16 %v1616
        %v1626 = vunpack.c.l.b16 %v1617
        %v1627 = vpack.c.b16 %v1626, %v1625
        %v1629 = vsel %vm936, %v1622, 0
        %v1632 = vsel %vm936, %v1627, 0
        %1634 = vmatpush.bf16.xpose.msra.mxu0 0
        %1635 = vmatpush.bf16.xpose.msra.mxu0 0
        %1636 = vmatpush.bf16.xpose.msra.mxu0 0
        %1637 = vmatpush.bf16.xpose.msra.mxu0 0
        %1638 = vmatpush.bf16.xpose.msra.mxu0 0
        %1639 = vmatpush.bf16.xpose.msra.mxu0 0
        %1640 = vmatpush.bf16.xpose.msra.mxu0 0
        %1641 = vmatpush.bf16.xpose.msra.mxu0 %v1632
        %1642 = vmatmul.bf16.gmra.mxu0 %v1629
        %v1643 = vpop.f32.mrf.mxu0
        %v1644 = vadd.f32 %v867, %v1643
        %v1645 = vpop.f32.mrf.mxu0
        %v1646 = vadd.f32 %v867, %v1645
        %1647 = vdwg.mxu0
        %v1648 = vsel %vm936, %v1644, -inf
        %1649 = vmax.xlane.f32.xlu0 %v1648
        %v1650 = vpop.xlane.xlu0 %1649
        %v1651 = vsel %vm936, %v1646, -inf
        %1652 = vmax.xlane.f32.xlu0 %v1651
        %v1653 = vpop.xlane.xlu0 %1652
        %v1654 = vsub.f32 %v1644, %v1650
        %v1655 = vsub.f32 %v1646, %v1653
        %v1656 = vmul.f32 %v1654, 1.442695
        %v1657 = vpow.pop %v1656
        %v1658 = vmul.f32 %v1655, 1.442695
        %v1659 = vpow.pop %v1658
        %v1660 = vsel %vm936, %v1657, 0.0
        %1661 = vadd.xlane.f32.xlu0 %v1660
        %v1662 = vpop.xlane.xlu0 %1661
        %v1663 = vsel %vm936, %v1659, 0.0
        %1664 = vadd.xlane.f32.xlu0 %v1663
        %v1665 = vpop.xlane.xlu0 %1664
        %v1666 = vpack.c.bf16 %v1657, %v1657
        %v1667 = vpack.c.bf16 %v1659, %v1659
        %v1670 = vunpack.c.l.b16 %v1666
        %v1671 = vunpack.c.l.b16 %v1667
        %v1672 = vpack.c.b16 %v1671, %v1670
        %1673 = vrot.lane.b32.xlu0 %v1627, 96
        %v1674 = vpop.permute.xlu0 %1673
        %v1677 = vsel %vm936, %v1672, 0
        %1679 = vmatpush.bf16.msra.mxu0 0
        %1680 = vmatpush.bf16.msra.mxu0 0
        %1681 = vmatpush.bf16.msra.mxu0 0
        %1682 = vmatpush.bf16.msra.mxu0 0
        %1683 = vmatpush.bf16.msra.mxu0 0
        %1684 = vmatpush.bf16.msra.mxu0 0
        %1685 = vmatpush.bf16.msra.mxu0 0
        %1686 = vmatpush.bf16.msra.mxu0 %v1674
        %1687 = vmatmul.bf16.gmra.mxu0 %v1677
        %v1688 = vpop.f32.mrf.mxu0
        %v1689 = vadd.f32 0.0, %v1688
        %v1690 = vpop.f32.mrf.mxu0
        %v1691 = vadd.f32 0.0, %v1690
        %1692 = vdwg.mxu0
        %v1693 = vrcp.pop %v1662
        %v1694 = vrcp.pop %v1665
        %v1695 = vmul.f32 %v1689, %v1693
        %v1696 = vmul.f32 %v1691, %v1694
        %v1697 = vpack.c.bf16 %v1696, %v1695
        %s1698 = scalar_lea.vmem [#allocation16], 32
        %v1699 = vld [vmem:[%s1698] sm:$0xf]
        %v1700 = vld [vmem:[%s1698 + $0x4] sm:$0xf]
        %1701 = vrot.lane.b32.xlu0 %v1622, 112
        %v1702 = vpop.permute.xlu0 %1701
        %1703 = vrot.lane.b32.xlu0 %v1627, 112
        %v1704 = vpop.permute.xlu0 %1703
        %v1706 = vsel %vm936, %v1702, 0
        %v1709 = vsel %vm936, %v1704, 0
        %1711 = vmatpush.bf16.xpose.msra.mxu0 0
        %1712 = vmatpush.bf16.xpose.msra.mxu0 0
        %1713 = vmatpush.bf16.xpose.msra.mxu0 0
        %1714 = vmatpush.bf16.xpose.msra.mxu0 0
        %1715 = vmatpush.bf16.xpose.msra.mxu0 0
        %1716 = vmatpush.bf16.xpose.msra.mxu0 0
        %1717 = vmatpush.bf16.xpose.msra.mxu0 0
        %1718 = vmatpush.bf16.xpose.msra.mxu0 %v1709
        %1719 = vmatmul.bf16.gmra.mxu0 %v1706
        %v1720 = vpop.f32.mrf.mxu0
        %v1721 = vadd.f32 %v867, %v1720
        %v1722 = vpop.f32.mrf.mxu0
        %v1723 = vadd.f32 %v867, %v1722
        %1724 = vdwg.mxu0
        %v1725 = vsel %vm936, %v1721, -inf
        %1726 = vmax.xlane.f32.xlu0 %v1725
        %v1727 = vpop.xlane.xlu0 %1726
        %v1728 = vsel %vm936, %v1723, -inf
        %1729 = vmax.xlane.f32.xlu0 %v1728
        %v1730 = vpop.xlane.xlu0 %1729
        %v1731 = vsub.f32 %v1721, %v1727
        %v1732 = vsub.f32 %v1723, %v1730
        %v1733 = vmul.f32 %v1731, 1.442695
        %v1734 = vpow.pop %v1733
        %v1735 = vmul.f32 %v1732, 1.442695
        %v1736 = vpow.pop %v1735
        %v1737 = vsel %vm936, %v1734, 0.0
        %1738 = vadd.xlane.f32.xlu0 %v1737
        %v1739 = vpop.xlane.xlu0 %1738
        %v1740 = vsel %vm936, %v1736, 0.0
        %1741 = vadd.xlane.f32.xlu0 %v1740
        %v1742 = vpop.xlane.xlu0 %1741
        %v1743 = vpack.c.bf16 %v1734, %v1734
        %v1744 = vpack.c.bf16 %v1736, %v1736
        %v1747 = vunpack.c.l.b16 %v1743
        %v1748 = vunpack.c.l.b16 %v1744
        %v1749 = vpack.c.b16 %v1748, %v1747
        %1750 = vrot.lane.b32.xlu0 %v1627, 80
        %v1751 = vpop.permute.xlu0 %1750
        %v1754 = vsel %vm936, %v1749, 0
        %1756 = vmatpush.bf16.msra.mxu0 0
        %1757 = vmatpush.bf16.msra.mxu0 0
        %1758 = vmatpush.bf16.msra.mxu0 0
        %1759 = vmatpush.bf16.msra.mxu0 0
        %1760 = vmatpush.bf16.msra.mxu0 0
        %1761 = vmatpush.bf16.msra.mxu0 0
        %1762 = vmatpush.bf16.msra.mxu0 0
        %1763 = vmatpush.bf16.msra.mxu0 %v1751
        %1764 = vmatmul.bf16.gmra.mxu0 %v1754
        %v1765 = vpop.f32.mrf.mxu0
        %v1766 = vadd.f32 0.0, %v1765
        %v1767 = vpop.f32.mrf.mxu0
        %v1768 = vadd.f32 0.0, %v1767
        %1769 = vdwg.mxu0
        %v1770 = vrcp.pop %v1739
        %v1771 = vrcp.pop %v1742
        %v1772 = vmul.f32 %v1766, %v1770
        %v1773 = vmul.f32 %v1768, %v1771
        %v1774 = vpack.c.bf16 %v1773, %v1772
        %s1775 = scalar_lea.vmem [#allocation16], 40
        %v1776 = vld [vmem:[%s1775] sm:$0xf]
        %v1777 = vld [vmem:[%s1775 + $0x4] sm:$0xf]
        %v1780 = vunpack.c.l.b16 %v1776
        %v1781 = vunpack.c.l.b16 %v1777
        %v1782 = vpack.c.b16 %v1781, %v1780
        %v1785 = vsel %vm936, %v1774, 0
        %1787 = vmatpush.bf16.msra.mxu0 0
        %1788 = vmatpush.bf16.msra.mxu0 0
        %1789 = vmatpush.bf16.msra.mxu0 0
        %1790 = vmatpush.bf16.msra.mxu0 0
        %1791 = vmatpush.bf16.msra.mxu0 0
        %1792 = vmatpush.bf16.msra.mxu0 0
        %1793 = vmatpush.bf16.msra.mxu0 0
        %1794 = vmatpush.bf16.msra.mxu0 %v1782
        %1795 = vmatmul.bf16.gmra.mxu0 %v1785
        %v1796 = vpop.f32.mrf.mxu0
        %v1797 = vadd.f32 0.0, %v1796
        %v1798 = vpop.f32.mrf.mxu0
        %v1799 = vadd.f32 0.0, %v1798
        %1800 = vdwg.mxu0
        %v1803 = vunpack.c.l.b16 %v1699
        %v1804 = vunpack.c.l.b16 %v1700
        %v1805 = vpack.c.b16 %v1804, %v1803
        %v1808 = vsel %vm936, %v1697, 0
        %1810 = vmatpush.bf16.msra.mxu0 0
        %1811 = vmatpush.bf16.msra.mxu0 0
        %1812 = vmatpush.bf16.msra.mxu0 0
        %1813 = vmatpush.bf16.msra.mxu0 0
        %1814 = vmatpush.bf16.msra.mxu0 0
        %1815 = vmatpush.bf16.msra.mxu0 0
        %1816 = vmatpush.bf16.msra.mxu0 0
        %1817 = vmatpush.bf16.msra.mxu0 %v1805
        %1818 = vmatmul.bf16.gmra.mxu0 %v1808
        %v1819 = vpop.f32.mrf.mxu0
        %v1820 = vadd.f32 %v1797, %v1819
        %v1821 = vpop.f32.mrf.mxu0
        %v1822 = vadd.f32 %v1799, %v1821
        %1823 = vdwg.mxu0
        %s1824 = scalar_lea.vmem [#allocation17], 2
        %v1825 = vld [vmem:[%s1824] sm:$0x1]
        %v1827 = vperm.slane %v1825, 0
        %v1829 = vadd.f32 %v1820, %v1827
        %v1830 = vadd.f32 %v1822, %v1827
        %v1831 = vadd.f32 %v1545, %v1829
        %v1832 = vadd.f32 %v1546, %v1830
        %s1833 = scalar_lea.vmem %s11, 2
        %v1834 = vld [vmem:[%s1833] sm:$0x1]
        %s1835 = scalar_lea.vmem %s12, 2
        %v1836 = vld [vmem:[%s1835] sm:$0x1]
        %v1837 = vsel %vm909, %v1831, 0.0
        %1838 = vadd.xlane.f32.xlu0 %v1837
        %v1839 = vpop.xlane.xlu0 %1838
        %v1840 = vsel %vm909, %v1832, 0.0
        %1841 = vadd.xlane.f32.xlu0 %v1840
        %v1842 = vpop.xlane.xlu0 %1841
        %v1843 = vmul.f32 %v1839, %v1154
        %v1844 = vmul.f32 %v1842, %v1154
        %v1845 = vsub.f32 %v1831, %v1843
        %v1846 = vsub.f32 %v1832, %v1844
        %v1847 = vmul.f32 %v1845, %v1845
        %v1848 = vmul.f32 %v1846, %v1846
        %v1849 = vsel %vm909, %v1847, 0.0
        %1850 = vadd.xlane.f32.xlu0 %v1849
        %v1851 = vpop.xlane.xlu0 %1850
        %v1852 = vsel %vm909, %v1848, 0.0
        %1853 = vadd.xlane.f32.xlu0 %v1852
        %v1854 = vpop.xlane.xlu0 %1853
        %v1855 = vmul.f32 %v1851, %v1154
        %v1856 = vmul.f32 %v1854, %v1154
        %v1857 = vadd.f32 %v1855, 1e-05
        %v1858 = vadd.f32 %v1856, 1e-05
        %v1859 = vrsqrt.pop %v1857
        %v1860 = vmul.f32 %v1859, %v1857
        %v1861 = vmul.f32 %v1860, %v1859
        %v1862 = vmul.f32 0.5, %v1861
        %v1863 = vsub.f32 1.5, %v1862
        %v1864 = vmul.f32 %v1859, %v1863
        %vm1865 = vweird.f32 %v1857
        %vm1866 = vweird.f32 %v1859
        %vm1867 = vmor %vm1865, %vm1866
        %v1868 = vsel %vm1867, %v1859, %v1864
        %v1869 = vrsqrt.pop %v1858
        %v1870 = vmul.f32 %v1869, %v1858
        %v1871 = vmul.f32 %v1870, %v1869
        %v1872 = vmul.f32 0.5, %v1871
        %v1873 = vsub.f32 1.5, %v1872
        %v1874 = vmul.f32 %v1869, %v1873
        %vm1875 = vweird.f32 %v1858
        %vm1876 = vweird.f32 %v1869
        %vm1877 = vmor %vm1875, %vm1876
        %v1878 = vsel %vm1877, %v1869, %v1874
        %v1879 = vmul.f32 %v1845, %v1868
        %v1880 = vmul.f32 %v1846, %v1878
        %v1882 = vperm.slane %v1834, 0
        %v1884 = vmul.f32 %v1879, %v1882
        %v1885 = vmul.f32 %v1880, %v1882
        %v1887 = vperm.slane %v1836, 0
        %v1889 = vadd.f32 %v1884, %v1887
        %v1890 = vadd.f32 %v1885, %v1887
        %s1891 = scalar_lea.vmem [#allocation13], 48
        %v1892 = vld [vmem:[%s1891] sm:$0xf]
        %v1893 = vld [vmem:[%s1891 + $0x4] sm:$0xf]
        %v1894 = vld [vmem:[%s1891 + $0x8] sm:$0xf]
        %v1895 = vld [vmem:[%s1891 + $0xc] sm:$0xf]
        %s1896 = scalar_lea.vmem [#allocation14], 3
        %v1897 = vld [vmem:[%s1896] sm:$0x1]
        %v1898 = vpack.c.bf16 %v1890, %v1889
        %v1900 = vperm.slane %v1897, 0
        %v1906 = vunpack.c.l.b16 %v1892
        %v1907 = vunpack.c.l.b16 %v1893
        %v1908 = vunpack.c.l.b16 %v1894
        %v1909 = vunpack.c.l.b16 %v1895
        %v1910 = vpack.c.b16 %v1907, %v1906
        %v1911 = vpack.c.b16 %v1909, %v1908
        %v1915 = vsel %vm909, %v1898, 0
        %1917 = vmatpush.bf16.msra.mxu0 0
        %1918 = vmatpush.bf16.msra.mxu0 0
        %1919 = vmatpush.bf16.msra.mxu0 0
        %1920 = vmatpush.bf16.msra.mxu0 0
        %1921 = vmatpush.bf16.msra.mxu0 0
        %1922 = vmatpush.bf16.msra.mxu0 0
        %1923 = vmatpush.bf16.msra.mxu0 %v1911
        %1924 = vmatpush.bf16.msra.mxu0 %v1910
        %1925 = vmatmul.bf16.gmra.mxu0 %v1915
        %v1926 = vpop.f32.mrf.mxu0
        %v1927 = vadd.f32 %v1900, %v1926
        %v1928 = vpop.f32.mrf.mxu0
        %v1929 = vadd.f32 %v1900, %v1928
        %1930 = vdwg.mxu0
        %v1931 = vpack.c.bf16 %v842, %v841
        %1932 = vrot.lane.b32.xlu0 %v1910, 96
        %v1933 = vpop.permute.xlu0 %1932
        %1934 = vrot.lane.b32.xlu0 %v1911, 96
        %v1935 = vpop.permute.xlu0 %1934
        %1938 = vrot.lane.b32.xlu0 %v1900, 96
        %v1939 = vpop.permute.xlu0 %1938
        %v1942 = vsel %vm909, %v1931, 0
        %1944 = vmatpush.bf16.msra.mxu0 0
        %1945 = vmatpush.bf16.msra.mxu0 0
        %1946 = vmatpush.bf16.msra.mxu0 0
        %1947 = vmatpush.bf16.msra.mxu0 0
        %1948 = vmatpush.bf16.msra.mxu0 0
        %1949 = vmatpush.bf16.msra.mxu0 0
        %1950 = vmatpush.bf16.msra.mxu0 %v1935
        %1951 = vmatpush.bf16.msra.mxu0 %v1933
        %1952 = vmatmul.bf16.gmra.mxu0 %v1942
        %v1953 = vpop.f32.mrf.mxu0
        %v1954 = vadd.f32 %v1939, %v1953
        %v1955 = vpop.f32.mrf.mxu0
        %v1956 = vadd.f32 %v1939, %v1955
        %1957 = vdwg.mxu0
        %v1958 = vpack.c.bf16 %v1927, %v1927
        %v1959 = vpack.c.bf16 %v1929, %v1929
        %v1960 = vpack.c.bf16 %v1954, %v1954
        %v1961 = vpack.c.bf16 %v1956, %v1956
        %v1964 = vunpack.c.l.b16 %v1958
        %v1965 = vunpack.c.l.b16 %v1959
        %v1966 = vpack.c.b16 %v1965, %v1964
        %v1969 = vunpack.c.l.b16 %v1960
        %v1970 = vunpack.c.l.b16 %v1961
        %v1971 = vpack.c.b16 %v1970, %v1969
        %v1973 = vsel %vm936, %v1966, 0
        %v1976 = vsel %vm936, %v1971, 0
        %1978 = vmatpush.bf16.xpose.msra.mxu0 0
        %1979 = vmatpush.bf16.xpose.msra.mxu0 0
        %1980 = vmatpush.bf16.xpose.msra.mxu0 0
        %1981 = vmatpush.bf16.xpose.msra.mxu0 0
        %1982 = vmatpush.bf16.xpose.msra.mxu0 0
        %1983 = vmatpush.bf16.xpose.msra.mxu0 0
        %1984 = vmatpush.bf16.xpose.msra.mxu0 0
        %1985 = vmatpush.bf16.xpose.msra.mxu0 %v1976
        %1986 = vmatmul.bf16.gmra.mxu0 %v1973
        %v1987 = vpop.f32.mrf.mxu0
        %v1988 = vadd.f32 %v861, %v1987
        %v1989 = vpop.f32.mrf.mxu0
        %v1990 = vadd.f32 %v861, %v1989
        %1991 = vdwg.mxu0
        %v1992 = vsel %vm936, %v1988, -inf
        %1993 = vmax.xlane.f32.xlu0 %v1992
        %v1994 = vpop.xlane.xlu0 %1993
        %v1995 = vsel %vm936, %v1990, -inf
        %1996 = vmax.xlane.f32.xlu0 %v1995
        %v1997 = vpop.xlane.xlu0 %1996
        %v1998 = vsub.f32 %v1988, %v1994
        %v1999 = vsub.f32 %v1990, %v1997
        %v2000 = vmul.f32 %v1998, 1.442695
        %v2001 = vpow.pop %v2000
        %v2002 = vmul.f32 %v1999, 1.442695
        %v2003 = vpow.pop %v2002
        %v2004 = vsel %vm936, %v2001, 0.0
        %2005 = vadd.xlane.f32.xlu0 %v2004
        %v2006 = vpop.xlane.xlu0 %2005
        %v2007 = vsel %vm936, %v2003, 0.0
        %2008 = vadd.xlane.f32.xlu0 %v2007
        %v2009 = vpop.xlane.xlu0 %2008
        %v2010 = vpack.c.bf16 %v2001, %v2001
        %v2011 = vpack.c.bf16 %v2003, %v2003
        %v2014 = vunpack.c.l.b16 %v2010
        %v2015 = vunpack.c.l.b16 %v2011
        %v2016 = vpack.c.b16 %v2015, %v2014
        %2017 = vrot.lane.b32.xlu0 %v1971, 96
        %v2018 = vpop.permute.xlu0 %2017
        %v2021 = vsel %vm936, %v2016, 0
        %2023 = vmatpush.bf16.msra.mxu0 0
        %2024 = vmatpush.bf16.msra.mxu0 0
        %2025 = vmatpush.bf16.msra.mxu0 0
        %2026 = vmatpush.bf16.msra.mxu0 0
        %2027 = vmatpush.bf16.msra.mxu0 0
        %2028 = vmatpush.bf16.msra.mxu0 0
        %2029 = vmatpush.bf16.msra.mxu0 0
        %2030 = vmatpush.bf16.msra.mxu0 %v2018
        %2031 = vmatmul.bf16.gmra.mxu0 %v2021
        %v2032 = vpop.f32.mrf.mxu0
        %v2033 = vadd.f32 0.0, %v2032
        %v2034 = vpop.f32.mrf.mxu0
        %v2035 = vadd.f32 0.0, %v2034
        %2036 = vdwg.mxu0
        %v2037 = vrcp.pop %v2006
        %v2038 = vrcp.pop %v2009
        %v2039 = vmul.f32 %v2033, %v2037
        %v2040 = vmul.f32 %v2035, %v2038
        %v2041 = vpack.c.bf16 %v2040, %v2039
        %s2042 = scalar_lea.vmem [#allocation16], 48
        %v2043 = vld [vmem:[%s2042] sm:$0xf]
        %v2044 = vld [vmem:[%s2042 + $0x4] sm:$0xf]
        %2045 = vrot.lane.b32.xlu0 %v1966, 112
        %v2046 = vpop.permute.xlu0 %2045
        %2047 = vrot.lane.b32.xlu0 %v1971, 112
        %v2048 = vpop.permute.xlu0 %2047
        %v2050 = vsel %vm936, %v2046, 0
        %v2053 = vsel %vm936, %v2048, 0
        %2055 = vmatpush.bf16.xpose.msra.mxu0 0
        %2056 = vmatpush.bf16.xpose.msra.mxu0 0
        %2057 = vmatpush.bf16.xpose.msra.mxu0 0
        %2058 = vmatpush.bf16.xpose.msra.mxu0 0
        %2059 = vmatpush.bf16.xpose.msra.mxu0 0
        %2060 = vmatpush.bf16.xpose.msra.mxu0 0
        %2061 = vmatpush.bf16.xpose.msra.mxu0 0
        %2062 = vmatpush.bf16.xpose.msra.mxu0 %v2053
        %2063 = vmatmul.bf16.gmra.mxu0 %v2050
        %v2064 = vpop.f32.mrf.mxu0
        %v2065 = vadd.f32 %v861, %v2064
        %v2066 = vpop.f32.mrf.mxu0
        %v2067 = vadd.f32 %v861, %v2066
        %2068 = vdwg.mxu0
        %v2069 = vsel %vm936, %v2065, -inf
        %2070 = vmax.xlane.f32.xlu0 %v2069
        %v2071 = vpop.xlane.xlu0 %2070
        %v2072 = vsel %vm936, %v2067, -inf
        %2073 = vmax.xlane.f32.xlu0 %v2072
        %v2074 = vpop.xlane.xlu0 %2073
        %v2075 = vsub.f32 %v2065, %v2071
        %v2076 = vsub.f32 %v2067, %v2074
        %v2077 = vmul.f32 %v2075, 1.442695
        %v2078 = vpow.pop %v2077
        %v2079 = vmul.f32 %v2076, 1.442695
        %v2080 = vpow.pop %v2079
        %v2081 = vsel %vm936, %v2078, 0.0
        %2082 = vadd.xlane.f32.xlu0 %v2081
        %v2083 = vpop.xlane.xlu0 %2082
        %v2084 = vsel %vm936, %v2080, 0.0
        %2085 = vadd.xlane.f32.xlu0 %v2084
        %v2086 = vpop.xlane.xlu0 %2085
        %v2087 = vpack.c.bf16 %v2078, %v2078
        %v2088 = vpack.c.bf16 %v2080, %v2080
        %v2091 = vunpack.c.l.b16 %v2087
        %v2092 = vunpack.c.l.b16 %v2088
        %v2093 = vpack.c.b16 %v2092, %v2091
        %2094 = vrot.lane.b32.xlu0 %v1971, 80
        %v2095 = vpop.permute.xlu0 %2094
        %v2098 = vsel %vm936, %v2093, 0
        %2100 = vmatpush.bf16.msra.mxu0 0
        %2101 = vmatpush.bf16.msra.mxu0 0
        %2102 = vmatpush.bf16.msra.mxu0 0
        %2103 = vmatpush.bf16.msra.mxu0 0
        %2104 = vmatpush.bf16.msra.mxu0 0
        %2105 = vmatpush.bf16.msra.mxu0 0
        %2106 = vmatpush.bf16.msra.mxu0 0
        %2107 = vmatpush.bf16.msra.mxu0 %v2095
        %2108 = vmatmul.bf16.gmra.mxu0 %v2098
        %v2109 = vpop.f32.mrf.mxu0
        %v2110 = vadd.f32 0.0, %v2109
        %v2111 = vpop.f32.mrf.mxu0
        %v2112 = vadd.f32 0.0, %v2111
        %2113 = vdwg.mxu0
        %v2114 = vrcp.pop %v2083
        %v2115 = vrcp.pop %v2086
        %v2116 = vmul.f32 %v2110, %v2114
        %v2117 = vmul.f32 %v2112, %v2115
        %v2118 = vpack.c.bf16 %v2117, %v2116
        %s2119 = scalar_lea.vmem [#allocation16], 56
        %v2120 = vld [vmem:[%s2119] sm:$0xf]
        %v2121 = vld [vmem:[%s2119 + $0x4] sm:$0xf]
        %v2124 = vunpack.c.l.b16 %v2120
        %v2125 = vunpack.c.l.b16 %v2121
        %v2126 = vpack.c.b16 %v2125, %v2124
        %v2129 = vsel %vm936, %v2118, 0
        %2131 = vmatpush.bf16.msra.mxu0 0
        %2132 = vmatpush.bf16.msra.mxu0 0
        %2133 = vmatpush.bf16.msra.mxu0 0
        %2134 = vmatpush.bf16.msra.mxu0 0
        %2135 = vmatpush.bf16.msra.mxu0 0
        %2136 = vmatpush.bf16.msra.mxu0 0
        %2137 = vmatpush.bf16.msra.mxu0 0
        %2138 = vmatpush.bf16.msra.mxu0 %v2126
        %2139 = vmatmul.bf16.gmra.mxu0 %v2129
        %v2140 = vpop.f32.mrf.mxu0
        %v2141 = vadd.f32 0.0, %v2140
        %v2142 = vpop.f32.mrf.mxu0
        %v2143 = vadd.f32 0.0, %v2142
        %2144 = vdwg.mxu0
        %v2147 = vunpack.c.l.b16 %v2043
        %v2148 = vunpack.c.l.b16 %v2044
        %v2149 = vpack.c.b16 %v2148, %v2147
        %v2152 = vsel %vm936, %v2041, 0
        %2154 = vmatpush.bf16.msra.mxu0 0
        %2155 = vmatpush.bf16.msra.mxu0 0
        %2156 = vmatpush.bf16.msra.mxu0 0
        %2157 = vmatpush.bf16.msra.mxu0 0
        %2158 = vmatpush.bf16.msra.mxu0 0
        %2159 = vmatpush.bf16.msra.mxu0 0
        %2160 = vmatpush.bf16.msra.mxu0 0
        %2161 = vmatpush.bf16.msra.mxu0 %v2149
        %2162 = vmatmul.bf16.gmra.mxu0 %v2152
        %v2163 = vpop.f32.mrf.mxu0
        %v2164 = vadd.f32 %v2141, %v2163
        %v2165 = vpop.f32.mrf.mxu0
        %v2166 = vadd.f32 %v2143, %v2165
        %2167 = vdwg.mxu0
        %s2168 = scalar_lea.vmem [#allocation17], 3
        %v2169 = vld [vmem:[%s2168] sm:$0x1]
        %v2171 = vperm.slane %v2169, 0
        %v2173 = vadd.f32 %v2164, %v2171
        %v2174 = vadd.f32 %v2166, %v2171
        %v2175 = vadd.f32 %v1889, %v2173
        %v2176 = vadd.f32 %v1890, %v2174
        %s2177 = scalar_lea.vmem %s11, 3
        %v2178 = vld [vmem:[%s2177] sm:$0x1]
        %s2179 = scalar_lea.vmem %s12, 3
        %v2180 = vld [vmem:[%s2179] sm:$0x1]
        %v2181 = vsel %vm909, %v2175, 0.0
        %2182 = vadd.xlane.f32.xlu0 %v2181
        %v2183 = vpop.xlane.xlu0 %2182
        %v2184 = vsel %vm909, %v2176, 0.0
        %2185 = vadd.xlane.f32.xlu0 %v2184
        %v2186 = vpop.xlane.xlu0 %2185
        %v2187 = vmul.f32 %v2183, %v1154
        %v2188 = vmul.f32 %v2186, %v1154
        %v2189 = vsub.f32 %v2175, %v2187
        %v2190 = vsub.f32 %v2176, %v2188
        %v2191 = vmul.f32 %v2189, %v2189
        %v2192 = vmul.f32 %v2190, %v2190
        %v2193 = vsel %vm909, %v2191, 0.0
        %2194 = vadd.xlane.f32.xlu0 %v2193
        %v2195 = vpop.xlane.xlu0 %2194
        %v2196 = vsel %vm909, %v2192, 0.0
        %2197 = vadd.xlane.f32.xlu0 %v2196
        %v2198 = vpop.xlane.xlu0 %2197
        %v2199 = vmul.f32 %v2195, %v1154
        %v2200 = vmul.f32 %v2198, %v1154
        %v2201 = vadd.f32 %v2199, 1e-05
        %v2202 = vadd.f32 %v2200, 1e-05
        %v2203 = vrsqrt.pop %v2201
        %v2204 = vmul.f32 %v2203, %v2201
        %v2205 = vmul.f32 %v2204, %v2203
        %v2206 = vmul.f32 0.5, %v2205
        %v2207 = vsub.f32 1.5, %v2206
        %v2208 = vmul.f32 %v2203, %v2207
        %vm2209 = vweird.f32 %v2201
        %vm2210 = vweird.f32 %v2203
        %vm2211 = vmor %vm2209, %vm2210
        %v2212 = vsel %vm2211, %v2203, %v2208
        %v2213 = vrsqrt.pop %v2202
        %v2214 = vmul.f32 %v2213, %v2202
        %v2215 = vmul.f32 %v2214, %v2213
        %v2216 = vmul.f32 0.5, %v2215
        %v2217 = vsub.f32 1.5, %v2216
        %v2218 = vmul.f32 %v2213, %v2217
        %vm2219 = vweird.f32 %v2202
        %vm2220 = vweird.f32 %v2213
        %vm2221 = vmor %vm2219, %vm2220
        %v2222 = vsel %vm2221, %v2213, %v2218
        %v2223 = vmul.f32 %v2189, %v2212
        %v2224 = vmul.f32 %v2190, %v2222
        %v2226 = vperm.slane %v2178, 0
        %v2228 = vmul.f32 %v2223, %v2226
        %v2229 = vmul.f32 %v2224, %v2226
        %v2231 = vperm.slane %v2180, 0
        %v2233 = vadd.f32 %v2228, %v2231
        %v2234 = vadd.f32 %v2229, %v2231
        %v2235 = vpack.c.bf16 %v2234, %v2233
        %v2237 = vperm.slane %v878, 0
        %v2243 = vunpack.c.l.b16 %v874
        %v2244 = vunpack.c.l.b16 %v875
        %v2245 = vunpack.c.l.b16 %v876
        %v2246 = vunpack.c.l.b16 %v877
        %v2247 = vpack.c.b16 %v2244, %v2243
        %v2248 = vpack.c.b16 %v2246, %v2245
        %v2252 = vsel %vm909, %v2235, 0
        %2254 = vmatpush.bf16.msra.mxu0 0
        %2255 = vmatpush.bf16.msra.mxu0 0
        %2256 = vmatpush.bf16.msra.mxu0 0
        %2257 = vmatpush.bf16.msra.mxu0 0
        %2258 = vmatpush.bf16.msra.mxu0 0
        %2259 = vmatpush.bf16.msra.mxu0 0
        %2260 = vmatpush.bf16.msra.mxu0 %v2248
        %2261 = vmatpush.bf16.msra.mxu0 %v2247
        %2262 = vmatmul.bf16.gmra.mxu0 %v2252
        %v2263 = vpop.f32.mrf.mxu0
        %v2264 = vadd.f32 %v2237, %v2263
        %v2265 = vpop.f32.mrf.mxu0
        %v2266 = vadd.f32 %v2237, %v2265
        %2267 = vdwg.mxu0
        %v2268 = vmax.f32 %v2264, 0.0
        %v2269 = vmax.f32 %v2266, 0.0
        %v2270 = vpack.c.bf16 %v2269, %v2268
        %v2272 = vperm.slane %v887, 0
        %v2282 = vunpack.c.l.b16 %v879
        %v2283 = vunpack.c.l.b16 %v880
        %v2284 = vunpack.c.l.b16 %v881
        %v2285 = vunpack.c.l.b16 %v882
        %v2286 = vunpack.c.l.b16 %v883
        %v2287 = vunpack.c.l.b16 %v884
        %v2288 = vunpack.c.l.b16 %v885
        %v2289 = vunpack.c.l.b16 %v886
        %v2290 = vpack.c.b16 %v2283, %v2282
        %v2291 = vpack.c.b16 %v2285, %v2284
        %v2292 = vpack.c.b16 %v2287, %v2286
        %v2293 = vpack.c.b16 %v2289, %v2288
        %vm2298 = vcmask 523264
        %v2300 = vsel %vm2298, %v2270, 0
        %2302 = vmatpush.bf16.msra.mxu0 0
        %2303 = vmatpush.bf16.msra.mxu0 0
        %2304 = vmatpush.bf16.msra.mxu0 0
        %2305 = vmatpush.bf16.msra.mxu0 0
        %2306 = vmatpush.bf16.msra.mxu0 %v2293
        %2307 = vmatpush.bf16.msra.mxu0 %v2292
        %2308 = vmatpush.bf16.msra.mxu0 %v2291
        %2309 = vmatpush.bf16.msra.mxu0 %v2290
        %2310 = vmatmul.bf16.gmra.mxu0 %v2300
        %v2311 = vpop.f32.mrf.mxu0
        %v2312 = vadd.f32 %v2272, %v2311
        %v2313 = vpop.f32.mrf.mxu0
        %v2314 = vadd.f32 %v2272, %v2313
        %2315 = vdwg.mxu0
        %v2316 = vadd.f32 %v2233, %v2312
        %v2317 = vadd.f32 %v2234, %v2314
        %s2318 = scalar_lea.vmem %s11, 4
        %v2319 = vld [vmem:[%s2318] sm:$0x1]
        %s2320 = scalar_lea.vmem %s12, 4
        %v2321 = vld [vmem:[%s2320] sm:$0x1]
        %v2322 = vsel %vm909, %v2316, 0.0
        %2323 = vadd.xlane.f32.xlu0 %v2322
        %v2324 = vpop.xlane.xlu0 %2323
        %v2325 = vsel %vm909, %v2317, 0.0
        %2326 = vadd.xlane.f32.xlu0 %v2325
        %v2327 = vpop.xlane.xlu0 %2326
        %v2328 = vmul.f32 %v2324, %v1154
        %v2329 = vmul.f32 %v2327, %v1154
        %v2330 = vsub.f32 %v2316, %v2328
        %v2331 = vsub.f32 %v2317, %v2329
        %v2332 = vmul.f32 %v2330, %v2330
        %v2333 = vmul.f32 %v2331, %v2331
        %v2334 = vsel %vm909, %v2332, 0.0
        %2335 = vadd.xlane.f32.xlu0 %v2334
        %v2336 = vpop.xlane.xlu0 %2335
        %v2337 = vsel %vm909, %v2333, 0.0
        %2338 = vadd.xlane.f32.xlu0 %v2337
        %v2339 = vpop.xlane.xlu0 %2338
        %v2340 = vmul.f32 %v2336, %v1154
        %v2341 = vmul.f32 %v2339, %v1154
        %v2342 = vadd.f32 %v2340, 1e-05
        %v2343 = vadd.f32 %v2341, 1e-05
        %v2344 = vrsqrt.pop %v2342
        %v2345 = vmul.f32 %v2344, %v2342
        %v2346 = vmul.f32 %v2345, %v2344
        %v2347 = vmul.f32 0.5, %v2346
        %v2348 = vsub.f32 1.5, %v2347
        %v2349 = vmul.f32 %v2344, %v2348
        %vm2350 = vweird.f32 %v2342
        %vm2351 = vweird.f32 %v2344
        %vm2352 = vmor %vm2350, %vm2351
        %v2353 = vsel %vm2352, %v2344, %v2349
        %v2354 = vrsqrt.pop %v2343
        %v2355 = vmul.f32 %v2354, %v2343
        %v2356 = vmul.f32 %v2355, %v2354
        %v2357 = vmul.f32 0.5, %v2356
        %v2358 = vsub.f32 1.5, %v2357
        %v2359 = vmul.f32 %v2354, %v2358
        %vm2360 = vweird.f32 %v2343
        %vm2361 = vweird.f32 %v2354
        %vm2362 = vmor %vm2360, %vm2361
        %v2363 = vsel %vm2362, %v2354, %v2359
        %v2364 = vmul.f32 %v2330, %v2353
        %v2365 = vmul.f32 %v2331, %v2363
        %v2367 = vperm.slane %v2319, 0
        %v2369 = vmul.f32 %v2364, %v2367
        %v2370 = vmul.f32 %v2365, %v2367
        %v2372 = vperm.slane %v2321, 0
        %v2374 = vadd.f32 %v2369, %v2372
        %v2375 = vadd.f32 %v2370, %v2372
        %2376 = vst.msk [vmem:[%s832] sm:$0xff] %vm909, %v2374
        %2377 = vst.msk [vmem:[%s832 + $0x8] sm:$0xff] %vm909, %v2375
        %s2378 = sand.u32 %s445, 1
        %s2379 = scalar_lea.sflag [#allocation4], %s2378
        %s2380 = sand.u32 %s445, 1
        %s2381 = smul.addr %s2380, 16
        %s2382 = scalar_lea.vmem [#allocation19], %s2381
        // Predicated region
        $region129: #{tpu_custom_call.1} parent=87 // pred_check
          %p2383 = pneg %p455
        $region130: #{tpu_custom_call.1} parent=87 // pred_check_branch
          %2385 = sbr.rel (%p2383) target = $region132
        $region131: #{tpu_custom_call.1} parent=87 // pred_region
          %2387 = vsyncadd %s2379, 0
          %s2388 = smul.addr %s45, 2
          %s2389 = smul.addr %s2388, 8
          %s2390 = scalar_lea.hbm %s17, %s2389
          %s2391 = sshll.u32 %s2382, 4
          %s2392 = int_to_ptr.vmem [resolvable:$true] %s2391
          %s2393 = sshll.u32 %s2390, 4
          %s2394 = int_to_ptr.hbm [resolvable:$true] %s2393
          %2399 = dma.vmem_to_hbm [thread:$0]  %s2392, 256, %s2394, %s2379, 128, 128, 8
        $region132: #{tpu_custom_call.1} parent=87 // pred_fallthru
          _
      $region88: #{tpu_custom_call.1} parent=5 // pred_fallthru
        _
      %p2400 = scmp.le.s32.totalorder 2, %s40
      // Predicated region
      $region133: #{tpu_custom_call.1} parent=5 // pred_check
        %p2401 = pneg %p2400
      $region134: #{tpu_custom_call.1} parent=5 // pred_check_branch
        %2403 = sbr.rel (%p2401) target = $region136
      $region135: #{tpu_custom_call.1} parent=5 // pred_region
        %s2404 = ssub.s32 %s40, 2
        // Predicated region
        $region137: #{tpu_custom_call.1} parent=135 // pred_check
          %p2405 = pneg %p461
        $region138: #{tpu_custom_call.1} parent=135 // pred_check_branch
          %2407 = sbr.rel (%p2405) target = $region140
        $region139: #{tpu_custom_call.1} parent=135 // pred_region
          %s2408 = sand.u32 %s446, 1
          %s2409 = scalar_lea.sflag [#allocation4], %s2408
          %s2410 = sand.u32 %s446, 1
          %s2411 = smul.addr %s2410, 16
          %s2412 = scalar_lea.vmem [#allocation19], %s2411
          %2414 = dma.done %s2409, 256
        $region140: #{tpu_custom_call.1} parent=135 // pred_fallthru
          _
      $region136: #{tpu_custom_call.1} parent=5 // pred_fallthru
        _
    $region6: #{tpu_custom_call.1} parent=1 // loop_footer
      %s44 = sadd.s32 1, %s40
    $region7: #{tpu_custom_call.1} parent=1 // loop_footer_branch
      %39 = sbr.rel target = $region3
    $region8: #{tpu_custom_call.1} parent=1 // loop_exit
      _
    %2415 = vsyncpa [#allocation3], 1
    %s2416 = scalar_lea.sflag [#allocation3], 1
    %2417 = vsyncpa %s2416, 1
    %2418 = vsyncpa [#allocation6], 1
    %s2419 = scalar_lea.sflag [#allocation6], 1
    %2420 = vsyncpa %s2419, 1
    %2421 = vsyncpa [#allocation9], 1
    %s2422 = scalar_lea.sflag [#allocation9], 1
    %2423 = vsyncpa %s2422, 1
    %2424 = vsyncpa [#allocation12], 1
    %s2425 = scalar_lea.sflag [#allocation12], 1
    %2426 = vsyncpa %s2425, 1
    %2427 = vsyncpa [#allocation15], 1
    %2428 = vsyncpa [#allocation18], 1
    %2429 = vsyncpa [#allocation4], 1
    %s2430 = scalar_lea.sflag [#allocation4], 1
    %2431 = vsyncpa %s2430, 1

</llo_original>
